<compile_context>
chip_gen: v7x
topology: tpu7x:2x2x1
jax: 0.10.0
libtpu: 0.0.40
codegen_flags: <defaults>
</compile_context>

<pallas_src>
import functools

import jax
import jax.numpy as jnp
import numpy as np
from jax.experimental import pallas as pl
from jax.experimental.pallas import tpu as pltpu

BN_EPS = 1e-5


# ----------------------------------------------------------------------------
# Weight folding (x2 nearest upsample folded into 9 per-tap weights)
# ----------------------------------------------------------------------------
def _phase_fold_matrix():
    # a[kh, kw, pi, pj, dh+1, dw+1] = 1 iff tap (dh, dw) of the conv on the upsampled image
    # collapses onto tap (kh, kw) of the padded original image for sub-pixel phase (pi, pj).
    a = np.zeros((3, 3, 2, 2, 3, 3), np.float32)
    for pi in range(2):
        for pj in range(2):
            for dh in (-1, 0, 1):
                for dw in (-1, 0, 1):
                    kh = (pi + dh) // 2 + 1
                    kw = (pj + dw) // 2 + 1
                    a[kh, kw, pi, pj, dh + 1, dw + 1] = 1.0
    return a


def _fold_weights(w_oihw):
    # (Cout, Cin, 3, 3) -> (9, Cin, 4*Cout); taps ordered (kh, kw), cols ordered (pi, pj, co).
    cout, cin = int(w_oihw.shape[0]), int(w_oihw.shape[1])
    w_t = jnp.transpose(w_oihw, (2, 3, 1, 0)).astype(jnp.float32)      # (dh, dw, ci, co)
    fold = jnp.asarray(_phase_fold_matrix())
    wf = jnp.einsum("xypqde,deco->xycpqo", fold, w_t)                  # (3,3,Cin,2,2,Cout)
    return wf.reshape(9, cin, 4 * cout)


# ----------------------------------------------------------------------------
# In-kernel conv (9-tap im2col from the VMEM-resident padded image)
# ----------------------------------------------------------------------------
def _conv_tile(xp_ref, w_ref, rh, W):
    """Bias-free conv for `rh` output rows of the current batch image.

    xp_ref : (1, H+2, W+2, Cin) bf16  padded image block (resident across the row axis)
    w_ref  : (9, Cin, 4*Cout)   bf16  per-tap folded weights (resident)
    returns: (rh*W, 4*Cout) f32 accumulator (MXU, f32 accumulation)
    """
    r0 = pl.program_id(1) * rh
    xwin = xp_ref[0, pl.ds(r0, rh + 2), :, :]                 # (rh+2, W+2, Cin) bf16
    cin = xwin.shape[-1]
    acc = None
    for kh in range(3):
        for kw in range(3):
            tap = xwin[kh:kh + rh, kw:kw + W, :].reshape(rh * W, cin)
            part = jnp.dot(tap, w_ref[kh * 3 + kw],
                           preferred_element_type=jnp.float32)
            acc = part if acc is None else acc + part
    return acc


def _stats_kernel(xp_ref, w_ref, s_ref, ss_ref, *, rh, W):
    # Pass 1: per-tile BN partial sums of the bias-free conv output.
    acc = _conv_tile(xp_ref, w_ref, rh, W)                    # (rh*W, 4*Cout) f32
    s_ref[0, 0] = jnp.sum(acc, axis=0, keepdims=True)
    ss_ref[0, 0] = jnp.sum(acc * acc, axis=0, keepdims=True)


def _apply_kernel(xp_ref, w_ref, scale_ref, shift_ref, o_ref, *, rh, W, transposed):
    # Pass 2: recompute conv, apply fused BN scale/shift, lane-dense store.
    acc = _conv_tile(xp_ref, w_ref, rh, W)                    # (rh*W, 4*Cout) f32
    y = acc * scale_ref[...] + shift_ref[...]
    if transposed:                                            # 4*Cout < 128: channel-major
        o_ref[0] = y.T                                        # (4*Cout, rh*W) lane-dense
    else:
        o_ref[0] = y                                          # (rh*W, 4*Cout)


# ----------------------------------------------------------------------------
# Tiling helpers (generation-aware)
# ----------------------------------------------------------------------------
def _vmem_limit_bytes():
    try:
        cap = int(pltpu.get_tpu_info().vmem_capacity_bytes)
    except Exception:
        cap = 64 * 1024 * 1024
    # 75% of physical: ~96 MiB on v5e/v6e (128 MiB), ~48 MiB on v7x (64 MiB).
    return int(min(cap * 3 // 4, 100 * 1024 * 1024))


def _pick_rows(H, W, lane_mult, max_tm):
    """Largest rh dividing H with rh*W % lane_mult == 0 and rh*W <= max_tm; else the smallest
    aligned divisor; else rh = H (block dims then equal the full per-image dims => legal)."""
    divs = [r for r in range(1, H + 1) if H % r == 0]
    ok = [r for r in divs if (r * W) % lane_mult == 0]
    under = [r for r in ok if r * W <= max_tm]
    if under:
        return max(under)
    if ok:
        return min(ok)
    return H


# ----------------------------------------------------------------------------
# UpConv forward
# ----------------------------------------------------------------------------
def upconv(x_nchw, w_oihw, b, gamma, beta, *, max_tm=None):
    """UpConv forward. x_nchw: (N, Cin, H, W) -> (N, Cout, 2H, 2W) float32."""
    N, Cin, H, W = (int(d) for d in x_nchw.shape)
    Cout = int(w_oihw.shape[0])
    assert tuple(w_oihw.shape[2:]) == (3, 3), "only 3x3 kernels supported"
    C4 = 4 * Cout                    # 4 sub-pixel phases x Cout (lane axis)
    M = H * W                        # output rows per image at original resolution

    vmem_limit = _vmem_limit_bytes()
    if max_tm is None:
        # budget ~1/6 of the VMEM limit for the double-buffered f32 output block
        max_tm = max(128, vmem_limit // (6 * 4 * C4))
    narrow = C4 < 128                          # lane-sparse output -> store channel-major
    rh = _pick_rows(H, W, 128 if narrow else 8, max_tm)
    nblk = H // rh
    tm = rh * W

    # --- XLA-side prep (tiny tensors only: padded bf16 input + folded weights) ---
    # NOTE: casting x to bf16 here is intentional (MXU inputs); covered by the test tolerance.
    xp = jnp.pad(jnp.transpose(x_nchw, (0, 2, 3, 1)).astype(jnp.bfloat16),
                 ((0, 0), (1, 1), (1, 1), (0, 0)))                       # (N, H+2, W+2, Cin)
    wtap = _fold_weights(w_oihw).astype(jnp.bfloat16)                    # (9, Cin, C4)

    cparams = pltpu.CompilerParams(
        dimension_semantics=("parallel", "parallel"),
        vmem_limit_bytes=vmem_limit)

    xp_spec = pl.BlockSpec((1, H + 2, W + 2, Cin), lambda n, r: (n, 0, 0, 0))  # resident per n
    w_spec = pl.BlockSpec((9, Cin, C4), lambda n, r: (0, 0, 0))                # resident

    # --- pass 1: stats-only (per-tile sum / sum-of-squares of the bias-free conv) ---
    s, ss = pl.pallas_call(
        functools.partial(_stats_kernel, rh=rh, W=W),
        grid=(N, nblk),
        in_specs=[xp_spec, w_spec],
        out_specs=(pl.BlockSpec((1, 1, 1, C4), lambda n, r: (n, r, 0, 0)),
                   pl.BlockSpec((1, 1, 1, C4), lambda n, r: (n, r, 0, 0))),
        out_shape=(jax.ShapeDtypeStruct((N, nblk, 1, C4), jnp.float32),
                   jax.ShapeDtypeStruct((N, nblk, 1, C4), jnp.float32)),
        compiler_params=cparams,
    )(xp, wtap)

    # --- tiny XLA reduce: pool tiles + 4 sub-pixel phases per channel -> scale / shift ---
    count = jnp.float32(N * M * 4)                           # = N * 2H * 2W pixels per channel
    s_c = s.sum(axis=(0, 1, 2)).reshape(4, Cout).sum(axis=0)
    ss_c = ss.sum(axis=(0, 1, 2)).reshape(4, Cout).sum(axis=0)
    mean_c = s_c / count                                     # mean of the bias-free conv
    var_c = ss_c / count - mean_c * mean_c                   # biased variance (training BN)
    inv = jax.lax.rsqrt(var_c + BN_EPS)
    g1 = gamma.astype(jnp.float32) * inv
    c1 = beta.astype(jnp.float32) - mean_c * g1              # conv bias `b` cancels exactly
    del b                                                    # (kept in signature for fidelity)
    scale4 = jnp.tile(g1, 4).reshape(1, C4)
    shift4 = jnp.tile(c1, 4).reshape(1, C4)

    # --- pass 2: recompute conv + fused scale/shift, lane-dense store ---
    if narrow:
        out_shape = jax.ShapeDtypeStruct((N, C4, M), jnp.float32)
        out_spec = pl.BlockSpec((1, C4, tm), lambda n, r: (n, 0, r))
    else:
        out_shape = jax.ShapeDtypeStruct((N, M, C4), jnp.float32)
        out_spec = pl.BlockSpec((1, tm, C4), lambda n, r: (n, r, 0))

    out = pl.pallas_call(
        functools.partial(_apply_kernel, rh=rh, W=W, transposed=narrow),
        grid=(N, nblk),
        in_specs=[xp_spec, w_spec,
                  pl.BlockSpec((1, C4), lambda n, r: (0, 0)),
                  pl.BlockSpec((1, C4), lambda n, r: (0, 0))],
        out_specs=out_spec,
        out_shape=out_shape,
        compiler_params=cparams,
    )(xp, wtap, scale4, shift4)

    # --- sub-pixel interleave fused with the NHWC->NCHW change (single XLA transpose) ---
    if narrow:
        o6 = out.reshape(N, 2, 2, Cout, H, W)                # (n, pi, pj, co, a, b)
        o6 = jnp.transpose(o6, (0, 3, 4, 1, 5, 2))           # (n, co, a, pi, b, pj)
    else:
        o6 = out.reshape(N, H, W, 2, 2, Cout)                # (n, a, b, pi, pj, co)
        o6 = jnp.transpose(o6, (0, 5, 1, 3, 2, 4))           # (n, co, a, pi, b, pj)
    return o6.reshape(N, Cout, 2 * H, 2 * W)


# ----------------------------------------------------------------------------
# Pure-JAX reference (mirrors the PyTorch module: upsample -> conv -> training-mode BN)
# ----------------------------------------------------------------------------
def upconv_ref(x, w, b, gamma, beta):
    xu = jnp.repeat(jnp.repeat(x, 2, axis=2), 2, axis=3)
    y = jax.lax.conv_general_dilated(
        xu.astype(jnp.float32), w.astype(jnp.float32),
        window_strides=(1, 1), padding=((1, 1), (1, 1)),
        dimension_numbers=("NCHW", "OIHW", "NCHW"),
    )
    y = y + b[None, :, None, None]
    mean = jnp.mean(y, axis=(0, 2, 3), keepdims=True)
    var = jnp.mean((y - mean) ** 2, axis=(0, 2, 3), keepdims=True)
    y = (y - mean) * jax.lax.rsqrt(var + BN_EPS)
    return y * gamma[None, :, None, None] + beta[None, :, None, None]


if __name__ == "__main__":
    key = jax.random.PRNGKey(0)
    k_x, k_w, k_b, k_g, k_be = jax.random.split(key, 5)

    # Small deterministic setup: N=2, Cin=4, H=W=16 (upsampled to 32x32), Cout=8.
    N, Cin, H, W, Cout = 2, 4, 16, 16, 8
    x = jax.random.normal(k_x, (N, Cin, H, W), dtype=jnp.float32)
    w = 0.1 * jax.random.normal(k_w, (Cout, Cin, 3, 3), dtype=jnp.float32)
    b = 0.1 * jax.random.normal(k_b, (Cout,), dtype=jnp.float32)
    gamma = 1.0 + 0.1 * jax.random.normal(k_g, (Cout,), dtype=jnp.float32)
    beta = 0.1 * jax.random.normal(k_be, (Cout,), dtype=jnp.float32)

    # max_tm=128 -> rh=8 rows/tile -> grid (N=2, row_blocks=2): exercises the resident-image
    # inner axis, the multi-tile BN stats combine, and the even 'parallel' batch split (v7x).
    run = jax.jit(lambda x, w, b, g, be: upconv(x, w, b, g, be, max_tm=128))
    out = jax.block_until_ready(run(x, w, b, gamma, beta))

    ref = upconv_ref(x, w, b, gamma, beta)
    assert out.shape == (N, Cout, 2 * H, 2 * W), out.shape
    # bf16 MXU inputs (f32 accumulation) => ~1e-2 abs error on the unit-variance BN output.
    assert jnp.allclose(out, ref, atol=2.5e-2, rtol=2.5e-2), float(jnp.max(jnp.abs(out - ref)))

    print("KERNEL_OK")
</pallas_src>

<mosaic_0001>
module attributes {stable_mosaic.version = 11 : i64} {
  func.func @_stats_kernel(%arg0: i32, %arg1: i32, %arg2: memref<1x18x18x4xbf16, #tpu.memory_space<vmem>>, %arg3: memref<9x4x32xbf16, #tpu.memory_space<vmem>>, %arg4: memref<1x1x1x32xf32, #tpu.memory_space<vmem>>, %arg5: memref<1x1x1x32xf32, #tpu.memory_space<vmem>>) attributes {dimension_semantics = [#tpu.dimension_semantics<parallel>, #tpu.dimension_semantics<parallel>], iteration_bounds = array<i64: 2, 2>, scalar_prefetch = 0 : i64, scratch_operands = 0 : i64, tpu.core_type = #tpu.core_type<tc>, window_params = [{transform_indices = @transform_0, window_bounds = array<i64: 1, 18, 18, 4>}, {pipeline_mode = #tpu.pipeline_mode<synchronous>, transform_indices = @transform_1, window_bounds = array<i64: 9, 4, 32>}, {transform_indices = @transform_2, window_bounds = array<i64: 1, 1, 1, 32>}, {transform_indices = @transform_3, window_bounds = array<i64: 1, 1, 1, 32>}]} {
    %c8_i32 = arith.constant 8 : i32
    %0 = arith.muli %arg1, %c8_i32 : i32
    %c0 = arith.constant 0 : index
    %1 = arith.index_cast %0 : i32 to index
    %c0_0 = arith.constant 0 : index
    %c0_1 = arith.constant 0 : index
    %2 = vector.load %arg2[%c0, %1, %c0_0, %c0_1] : memref<1x18x18x4xbf16, #tpu.memory_space<vmem>>, vector<1x10x18x4xbf16>
    %3 = vector.shape_cast %2 : vector<1x10x18x4xbf16> to vector<10x18x4xbf16>
    %4 = vector.extract_strided_slice %3 {offsets = [0, 0, 0], sizes = [8, 16, 4], strides = [1, 1, 1]} : vector<10x18x4xbf16> to vector<8x16x4xbf16>
    %5 = vector.shape_cast %4 : vector<8x16x4xbf16> to vector<128x4xbf16>
    %c0_2 = arith.constant 0 : index
    %c0_3 = arith.constant 0 : index
    %c0_4 = arith.constant 0 : index
    %6 = vector.load %arg3[%c0_2, %c0_3, %c0_4] : memref<9x4x32xbf16, #tpu.memory_space<vmem>>, vector<1x4x32xbf16>
    %7 = vector.shape_cast %6 : vector<1x4x32xbf16> to vector<4x32xbf16>
    %cst = arith.constant dense<0.000000e+00> : vector<128x32xf32>
    %8 = tpu.matmul %5, %7, %cst {dimension_numbers = #tpu.dot_dimension_numbers<[1], [0], [0], [1], [0, 0, 1, 1], [], []>} : vector<128x4xbf16>, vector<4x32xbf16>, vector<128x32xf32> -> vector<128x32xf32>
    %9 = vector.extract_strided_slice %3 {offsets = [0, 1, 0], sizes = [8, 16, 4], strides = [1, 1, 1]} : vector<10x18x4xbf16> to vector<8x16x4xbf16>
    %10 = vector.shape_cast %9 : vector<8x16x4xbf16> to vector<128x4xbf16>
    %c1 = arith.constant 1 : index
    %c0_5 = arith.constant 0 : index
    %c0_6 = arith.constant 0 : index
    %11 = vector.load %arg3[%c1, %c0_5, %c0_6] : memref<9x4x32xbf16, #tpu.memory_space<vmem>>, vector<1x4x32xbf16>
    %12 = vector.shape_cast %11 : vector<1x4x32xbf16> to vector<4x32xbf16>
    %cst_7 = arith.constant dense<0.000000e+00> : vector<128x32xf32>
    %13 = tpu.matmul %10, %12, %cst_7 {dimension_numbers = #tpu.dot_dimension_numbers<[1], [0], [0], [1], [0, 0, 1, 1], [], []>} : vector<128x4xbf16>, vector<4x32xbf16>, vector<128x32xf32> -> vector<128x32xf32>
    %14 = arith.addf %8, %13 : vector<128x32xf32>
    %15 = vector.extract_strided_slice %3 {offsets = [0, 2, 0], sizes = [8, 16, 4], strides = [1, 1, 1]} : vector<10x18x4xbf16> to vector<8x16x4xbf16>
    %16 = vector.shape_cast %15 : vector<8x16x4xbf16> to vector<128x4xbf16>
    %c2 = arith.constant 2 : index
    %c0_8 = arith.constant 0 : index
    %c0_9 = arith.constant 0 : index
    %17 = vector.load %arg3[%c2, %c0_8, %c0_9] : memref<9x4x32xbf16, #tpu.memory_space<vmem>>, vector<1x4x32xbf16>
    %18 = vector.shape_cast %17 : vector<1x4x32xbf16> to vector<4x32xbf16>
    %cst_10 = arith.constant dense<0.000000e+00> : vector<128x32xf32>
    %19 = tpu.matmul %16, %18, %cst_10 {dimension_numbers = #tpu.dot_dimension_numbers<[1], [0], [0], [1], [0, 0, 1, 1], [], []>} : vector<128x4xbf16>, vector<4x32xbf16>, vector<128x32xf32> -> vector<128x32xf32>
    %20 = arith.addf %14, %19 : vector<128x32xf32>
    %21 = vector.extract_strided_slice %3 {offsets = [1, 0, 0], sizes = [8, 16, 4], strides = [1, 1, 1]} : vector<10x18x4xbf16> to vector<8x16x4xbf16>
    %22 = vector.shape_cast %21 : vector<8x16x4xbf16> to vector<128x4xbf16>
    %c3 = arith.constant 3 : index
    %c0_11 = arith.constant 0 : index
    %c0_12 = arith.constant 0 : index
    %23 = vector.load %arg3[%c3, %c0_11, %c0_12] : memref<9x4x32xbf16, #tpu.memory_space<vmem>>, vector<1x4x32xbf16>
    %24 = vector.shape_cast %23 : vector<1x4x32xbf16> to vector<4x32xbf16>
    %cst_13 = arith.constant dense<0.000000e+00> : vector<128x32xf32>
    %25 = tpu.matmul %22, %24, %cst_13 {dimension_numbers = #tpu.dot_dimension_numbers<[1], [0], [0], [1], [0, 0, 1, 1], [], []>} : vector<128x4xbf16>, vector<4x32xbf16>, vector<128x32xf32> -> vector<128x32xf32>
    %26 = arith.addf %20, %25 : vector<128x32xf32>
    %27 = vector.extract_strided_slice %3 {offsets = [1, 1, 0], sizes = [8, 16, 4], strides = [1, 1, 1]} : vector<10x18x4xbf16> to vector<8x16x4xbf16>
    %28 = vector.shape_cast %27 : vector<8x16x4xbf16> to vector<128x4xbf16>
    %c4 = arith.constant 4 : index
    %c0_14 = arith.constant 0 : index
    %c0_15 = arith.constant 0 : index
    %29 = vector.load %arg3[%c4, %c0_14, %c0_15] : memref<9x4x32xbf16, #tpu.memory_space<vmem>>, vector<1x4x32xbf16>
    %30 = vector.shape_cast %29 : vector<1x4x32xbf16> to vector<4x32xbf16>
    %cst_16 = arith.constant dense<0.000000e+00> : vector<128x32xf32>
    %31 = tpu.matmul %28, %30, %cst_16 {dimension_numbers = #tpu.dot_dimension_numbers<[1], [0], [0], [1], [0, 0, 1, 1], [], []>} : vector<128x4xbf16>, vector<4x32xbf16>, vector<128x32xf32> -> vector<128x32xf32>
    %32 = arith.addf %26, %31 : vector<128x32xf32>
    %33 = vector.extract_strided_slice %3 {offsets = [1, 2, 0], sizes = [8, 16, 4], strides = [1, 1, 1]} : vector<10x18x4xbf16> to vector<8x16x4xbf16>
    %34 = vector.shape_cast %33 : vector<8x16x4xbf16> to vector<128x4xbf16>
    %c5 = arith.constant 5 : index
    %c0_17 = arith.constant 0 : index
    %c0_18 = arith.constant 0 : index
    %35 = vector.load %arg3[%c5, %c0_17, %c0_18] : memref<9x4x32xbf16, #tpu.memory_space<vmem>>, vector<1x4x32xbf16>
    %36 = vector.shape_cast %35 : vector<1x4x32xbf16> to vector<4x32xbf16>
    %cst_19 = arith.constant dense<0.000000e+00> : vector<128x32xf32>
    %37 = tpu.matmul %34, %36, %cst_19 {dimension_numbers = #tpu.dot_dimension_numbers<[1], [0], [0], [1], [0, 0, 1, 1], [], []>} : vector<128x4xbf16>, vector<4x32xbf16>, vector<128x32xf32> -> vector<128x32xf32>
    %38 = arith.addf %32, %37 : vector<128x32xf32>
    %39 = vector.extract_strided_slice %3 {offsets = [2, 0, 0], sizes = [8, 16, 4], strides = [1, 1, 1]} : vector<10x18x4xbf16> to vector<8x16x4xbf16>
    %40 = vector.shape_cast %39 : vector<8x16x4xbf16> to vector<128x4xbf16>
    %c6 = arith.constant 6 : index
    %c0_20 = arith.constant 0 : index
    %c0_21 = arith.constant 0 : index
    %41 = vector.load %arg3[%c6, %c0_20, %c0_21] : memref<9x4x32xbf16, #tpu.memory_space<vmem>>, vector<1x4x32xbf16>
    %42 = vector.shape_cast %41 : vector<1x4x32xbf16> to vector<4x32xbf16>
    %cst_22 = arith.constant dense<0.000000e+00> : vector<128x32xf32>
    %43 = tpu.matmul %40, %42, %cst_22 {dimension_numbers = #tpu.dot_dimension_numbers<[1], [0], [0], [1], [0, 0, 1, 1], [], []>} : vector<128x4xbf16>, vector<4x32xbf16>, vector<128x32xf32> -> vector<128x32xf32>
    %44 = arith.addf %38, %43 : vector<128x32xf32>
    %45 = vector.extract_strided_slice %3 {offsets = [2, 1, 0], sizes = [8, 16, 4], strides = [1, 1, 1]} : vector<10x18x4xbf16> to vector<8x16x4xbf16>
    %46 = vector.shape_cast %45 : vector<8x16x4xbf16> to vector<128x4xbf16>
    %c7 = arith.constant 7 : index
    %c0_23 = arith.constant 0 : index
    %c0_24 = arith.constant 0 : index
    %47 = vector.load %arg3[%c7, %c0_23, %c0_24] : memref<9x4x32xbf16, #tpu.memory_space<vmem>>, vector<1x4x32xbf16>
    %48 = vector.shape_cast %47 : vector<1x4x32xbf16> to vector<4x32xbf16>
    %cst_25 = arith.constant dense<0.000000e+00> : vector<128x32xf32>
    %49 = tpu.matmul %46, %48, %cst_25 {dimension_numbers = #tpu.dot_dimension_numbers<[1], [0], [0], [1], [0, 0, 1, 1], [], []>} : vector<128x4xbf16>, vector<4x32xbf16>, vector<128x32xf32> -> vector<128x32xf32>
    %50 = arith.addf %44, %49 : vector<128x32xf32>
    %51 = vector.extract_strided_slice %3 {offsets = [2, 2, 0], sizes = [8, 16, 4], strides = [1, 1, 1]} : vector<10x18x4xbf16> to vector<8x16x4xbf16>
    %52 = vector.shape_cast %51 : vector<8x16x4xbf16> to vector<128x4xbf16>
    %c8 = arith.constant 8 : index
    %c0_26 = arith.constant 0 : index
    %c0_27 = arith.constant 0 : index
    %53 = vector.load %arg3[%c8, %c0_26, %c0_27] : memref<9x4x32xbf16, #tpu.memory_space<vmem>>, vector<1x4x32xbf16>
    %54 = vector.shape_cast %53 : vector<1x4x32xbf16> to vector<4x32xbf16>
    %cst_28 = arith.constant dense<0.000000e+00> : vector<128x32xf32>
    %55 = tpu.matmul %52, %54, %cst_28 {dimension_numbers = #tpu.dot_dimension_numbers<[1], [0], [0], [1], [0, 0, 1, 1], [], []>} : vector<128x4xbf16>, vector<4x32xbf16>, vector<128x32xf32> -> vector<128x32xf32>
    %56 = arith.addf %50, %55 : vector<128x32xf32>
    %cst_29 = arith.constant dense<0.000000e+00> : vector<32xf32>
    %57 = vector.multi_reduction <add>, %56, %cst_29 [0] : vector<128x32xf32> to vector<32xf32>
    %58 = vector.shape_cast %57 : vector<32xf32> to vector<1x32xf32>
    %c0_30 = arith.constant 0 : index
    %c0_31 = arith.constant 0 : index
    %c0_32 = arith.constant 0 : index
    %c0_33 = arith.constant 0 : index
    %59 = vector.load %arg4[%c0_30, %c0_31, %c0_32, %c0_33] : memref<1x1x1x32xf32, #tpu.memory_space<vmem>>, vector<1x1x1x32xf32>
    %60 = vector.shape_cast %59 : vector<1x1x1x32xf32> to vector<1x32xf32>
    %61 = vector.shape_cast %58 : vector<1x32xf32> to vector<1x1x1x32xf32>
    tpu.vector_store %arg4[%c0_30, %c0_31, %c0_32, %c0_33], %61 {strides = array<i32>} : memref<1x1x1x32xf32, #tpu.memory_space<vmem>>, vector<1x1x1x32xf32>,
    %62 = arith.mulf %56, %56 : vector<128x32xf32>
    %cst_34 = arith.constant dense<0.000000e+00> : vector<32xf32>
    %63 = vector.multi_reduction <add>, %62, %cst_34 [0] : vector<128x32xf32> to vector<32xf32>
    %64 = vector.shape_cast %63 : vector<32xf32> to vector<1x32xf32>
    %c0_35 = arith.constant 0 : index
    %c0_36 = arith.constant 0 : index
    %c0_37 = arith.constant 0 : index
    %c0_38 = arith.constant 0 : index
    %65 = vector.load %arg5[%c0_35, %c0_36, %c0_37, %c0_38] : memref<1x1x1x32xf32, #tpu.memory_space<vmem>>, vector<1x1x1x32xf32>
    %66 = vector.shape_cast %65 : vector<1x1x1x32xf32> to vector<1x32xf32>
    %67 = vector.shape_cast %64 : vector<1x32xf32> to vector<1x1x1x32xf32>
    tpu.vector_store %arg5[%c0_35, %c0_36, %c0_37, %c0_38], %67 {strides = array<i32>} : memref<1x1x1x32xf32, #tpu.memory_space<vmem>>, vector<1x1x1x32xf32>,
    return
  }
  func.func @transform_0(%arg0: i32, %arg1: i32) -> (i32, i32, i32, i32) {
    %c0_i32 = arith.constant 0 : i32
    %c0_i32_0 = arith.constant 0 : i32
    %c0_i32_1 = arith.constant 0 : i32
    %c0_i32_2 = arith.constant 0 : i32
    return %arg0, %c0_i32, %c0_i32_0, %c0_i32_1 : i32, i32, i32, i32
  }
  func.func @transform_1(%arg0: i32, %arg1: i32) -> (i32, i32, i32) {
    %c0_i32 = arith.constant 0 : i32
    %c0_i32_0 = arith.constant 0 : i32
    %c0_i32_1 = arith.constant 0 : i32
    %c0_i32_2 = arith.constant 0 : i32
    return %c0_i32, %c0_i32_0, %c0_i32_1 : i32, i32, i32
  }
  func.func @transform_2(%arg0: i32, %arg1: i32) -> (i32, i32, i32, i32) {
    %c0_i32 = arith.constant 0 : i32
    %c0_i32_0 = arith.constant 0 : i32
    %c0_i32_1 = arith.constant 0 : i32
    return %arg0, %arg1, %c0_i32, %c0_i32_0 : i32, i32, i32, i32
  }
  func.func @transform_3(%arg0: i32, %arg1: i32) -> (i32, i32, i32, i32) {
    %c0_i32 = arith.constant 0 : i32
    %c0_i32_0 = arith.constant 0 : i32
    %c0_i32_1 = arith.constant 0 : i32
    return %arg0, %arg1, %c0_i32, %c0_i32_0 : i32, i32, i32, i32
  }
}

module attributes {stable_mosaic.version = 11 : i64} {
  func.func @_apply_kernel(%arg0: i32, %arg1: i32, %arg2: memref<1x18x18x4xbf16, #tpu.memory_space<vmem>>, %arg3: memref<9x4x32xbf16, #tpu.memory_space<vmem>>, %arg4: memref<1x32xf32, #tpu.memory_space<vmem>>, %arg5: memref<1x32xf32, #tpu.memory_space<vmem>>, %arg6: memref<1x32x128xf32, #tpu.memory_space<vmem>>) attributes {dimension_semantics = [#tpu.dimension_semantics<parallel>, #tpu.dimension_semantics<parallel>], iteration_bounds = array<i64: 2, 2>, scalar_prefetch = 0 : i64, scratch_operands = 0 : i64, tpu.core_type = #tpu.core_type<tc>, window_params = [{transform_indices = @transform_0, window_bounds = array<i64: 1, 18, 18, 4>}, {pipeline_mode = #tpu.pipeline_mode<synchronous>, transform_indices = @transform_1, window_bounds = array<i64: 9, 4, 32>}, {pipeline_mode = #tpu.pipeline_mode<synchronous>, transform_indices = @transform_2, window_bounds = array<i64: 1, 32>}, {pipeline_mode = #tpu.pipeline_mode<synchronous>, transform_indices = @transform_3, window_bounds = array<i64: 1, 32>}, {transform_indices = @transform_4, window_bounds = array<i64: 1, 32, 128>}]} {
    %c8_i32 = arith.constant 8 : i32
    %0 = arith.muli %arg1, %c8_i32 : i32
    %c0 = arith.constant 0 : index
    %1 = arith.index_cast %0 : i32 to index
    %c0_0 = arith.constant 0 : index
    %c0_1 = arith.constant 0 : index
    %2 = vector.load %arg2[%c0, %1, %c0_0, %c0_1] : memref<1x18x18x4xbf16, #tpu.memory_space<vmem>>, vector<1x10x18x4xbf16>
    %3 = vector.shape_cast %2 : vector<1x10x18x4xbf16> to vector<10x18x4xbf16>
    %4 = vector.extract_strided_slice %3 {offsets = [0, 0, 0], sizes = [8, 16, 4], strides = [1, 1, 1]} : vector<10x18x4xbf16> to vector<8x16x4xbf16>
    %5 = vector.shape_cast %4 : vector<8x16x4xbf16> to vector<128x4xbf16>
    %c0_2 = arith.constant 0 : index
    %c0_3 = arith.constant 0 : index
    %c0_4 = arith.constant 0 : index
    %6 = vector.load %arg3[%c0_2, %c0_3, %c0_4] : memref<9x4x32xbf16, #tpu.memory_space<vmem>>, vector<1x4x32xbf16>
    %7 = vector.shape_cast %6 : vector<1x4x32xbf16> to vector<4x32xbf16>
    %cst = arith.constant dense<0.000000e+00> : vector<128x32xf32>
    %8 = tpu.matmul %5, %7, %cst {dimension_numbers = #tpu.dot_dimension_numbers<[1], [0], [0], [1], [0, 0, 1, 1], [], []>} : vector<128x4xbf16>, vector<4x32xbf16>, vector<128x32xf32> -> vector<128x32xf32>
    %9 = vector.extract_strided_slice %3 {offsets = [0, 1, 0], sizes = [8, 16, 4], strides = [1, 1, 1]} : vector<10x18x4xbf16> to vector<8x16x4xbf16>
    %10 = vector.shape_cast %9 : vector<8x16x4xbf16> to vector<128x4xbf16>
    %c1 = arith.constant 1 : index
    %c0_5 = arith.constant 0 : index
    %c0_6 = arith.constant 0 : index
    %11 = vector.load %arg3[%c1, %c0_5, %c0_6] : memref<9x4x32xbf16, #tpu.memory_space<vmem>>, vector<1x4x32xbf16>
    %12 = vector.shape_cast %11 : vector<1x4x32xbf16> to vector<4x32xbf16>
    %cst_7 = arith.constant dense<0.000000e+00> : vector<128x32xf32>
    %13 = tpu.matmul %10, %12, %cst_7 {dimension_numbers = #tpu.dot_dimension_numbers<[1], [0], [0], [1], [0, 0, 1, 1], [], []>} : vector<128x4xbf16>, vector<4x32xbf16>, vector<128x32xf32> -> vector<128x32xf32>
    %14 = arith.addf %8, %13 : vector<128x32xf32>
    %15 = vector.extract_strided_slice %3 {offsets = [0, 2, 0], sizes = [8, 16, 4], strides = [1, 1, 1]} : vector<10x18x4xbf16> to vector<8x16x4xbf16>
    %16 = vector.shape_cast %15 : vector<8x16x4xbf16> to vector<128x4xbf16>
    %c2 = arith.constant 2 : index
    %c0_8 = arith.constant 0 : index
    %c0_9 = arith.constant 0 : index
    %17 = vector.load %arg3[%c2, %c0_8, %c0_9] : memref<9x4x32xbf16, #tpu.memory_space<vmem>>, vector<1x4x32xbf16>
    %18 = vector.shape_cast %17 : vector<1x4x32xbf16> to vector<4x32xbf16>
    %cst_10 = arith.constant dense<0.000000e+00> : vector<128x32xf32>
    %19 = tpu.matmul %16, %18, %cst_10 {dimension_numbers = #tpu.dot_dimension_numbers<[1], [0], [0], [1], [0, 0, 1, 1], [], []>} : vector<128x4xbf16>, vector<4x32xbf16>, vector<128x32xf32> -> vector<128x32xf32>
    %20 = arith.addf %14, %19 : vector<128x32xf32>
    %21 = vector.extract_strided_slice %3 {offsets = [1, 0, 0], sizes = [8, 16, 4], strides = [1, 1, 1]} : vector<10x18x4xbf16> to vector<8x16x4xbf16>
    %22 = vector.shape_cast %21 : vector<8x16x4xbf16> to vector<128x4xbf16>
    %c3 = arith.constant 3 : index
    %c0_11 = arith.constant 0 : index
    %c0_12 = arith.constant 0 : index
    %23 = vector.load %arg3[%c3, %c0_11, %c0_12] : memref<9x4x32xbf16, #tpu.memory_space<vmem>>, vector<1x4x32xbf16>
    %24 = vector.shape_cast %23 : vector<1x4x32xbf16> to vector<4x32xbf16>
    %cst_13 = arith.constant dense<0.000000e+00> : vector<128x32xf32>
    %25 = tpu.matmul %22, %24, %cst_13 {dimension_numbers = #tpu.dot_dimension_numbers<[1], [0], [0], [1], [0, 0, 1, 1], [], []>} : vector<128x4xbf16>, vector<4x32xbf16>, vector<128x32xf32> -> vector<128x32xf32>
    %26 = arith.addf %20, %25 : vector<128x32xf32>
    %27 = vector.extract_strided_slice %3 {offsets = [1, 1, 0], sizes = [8, 16, 4], strides = [1, 1, 1]} : vector<10x18x4xbf16> to vector<8x16x4xbf16>
    %28 = vector.shape_cast %27 : vector<8x16x4xbf16> to vector<128x4xbf16>
    %c4 = arith.constant 4 : index
    %c0_14 = arith.constant 0 : index
    %c0_15 = arith.constant 0 : index
    %29 = vector.load %arg3[%c4, %c0_14, %c0_15] : memref<9x4x32xbf16, #tpu.memory_space<vmem>>, vector<1x4x32xbf16>
    %30 = vector.shape_cast %29 : vector<1x4x32xbf16> to vector<4x32xbf16>
    %cst_16 = arith.constant dense<0.000000e+00> : vector<128x32xf32>
    %31 = tpu.matmul %28, %30, %cst_16 {dimension_numbers = #tpu.dot_dimension_numbers<[1], [0], [0], [1], [0, 0, 1, 1], [], []>} : vector<128x4xbf16>, vector<4x32xbf16>, vector<128x32xf32> -> vector<128x32xf32>
    %32 = arith.addf %26, %31 : vector<128x32xf32>
    %33 = vector.extract_strided_slice %3 {offsets = [1, 2, 0], sizes = [8, 16, 4], strides = [1, 1, 1]} : vector<10x18x4xbf16> to vector<8x16x4xbf16>
    %34 = vector.shape_cast %33 : vector<8x16x4xbf16> to vector<128x4xbf16>
    %c5 = arith.constant 5 : index
    %c0_17 = arith.constant 0 : index
    %c0_18 = arith.constant 0 : index
    %35 = vector.load %arg3[%c5, %c0_17, %c0_18] : memref<9x4x32xbf16, #tpu.memory_space<vmem>>, vector<1x4x32xbf16>
    %36 = vector.shape_cast %35 : vector<1x4x32xbf16> to vector<4x32xbf16>
    %cst_19 = arith.constant dense<0.000000e+00> : vector<128x32xf32>
    %37 = tpu.matmul %34, %36, %cst_19 {dimension_numbers = #tpu.dot_dimension_numbers<[1], [0], [0], [1], [0, 0, 1, 1], [], []>} : vector<128x4xbf16>, vector<4x32xbf16>, vector<128x32xf32> -> vector<128x32xf32>
    %38 = arith.addf %32, %37 : vector<128x32xf32>
    %39 = vector.extract_strided_slice %3 {offsets = [2, 0, 0], sizes = [8, 16, 4], strides = [1, 1, 1]} : vector<10x18x4xbf16> to vector<8x16x4xbf16>
    %40 = vector.shape_cast %39 : vector<8x16x4xbf16> to vector<128x4xbf16>
    %c6 = arith.constant 6 : index
    %c0_20 = arith.constant 0 : index
    %c0_21 = arith.constant 0 : index
    %41 = vector.load %arg3[%c6, %c0_20, %c0_21] : memref<9x4x32xbf16, #tpu.memory_space<vmem>>, vector<1x4x32xbf16>
    %42 = vector.shape_cast %41 : vector<1x4x32xbf16> to vector<4x32xbf16>
    %cst_22 = arith.constant dense<0.000000e+00> : vector<128x32xf32>
    %43 = tpu.matmul %40, %42, %cst_22 {dimension_numbers = #tpu.dot_dimension_numbers<[1], [0], [0], [1], [0, 0, 1, 1], [], []>} : vector<128x4xbf16>, vector<4x32xbf16>, vector<128x32xf32> -> vector<128x32xf32>
    %44 = arith.addf %38, %43 : vector<128x32xf32>
    %45 = vector.extract_strided_slice %3 {offsets = [2, 1, 0], sizes = [8, 16, 4], strides = [1, 1, 1]} : vector<10x18x4xbf16> to vector<8x16x4xbf16>
    %46 = vector.shape_cast %45 : vector<8x16x4xbf16> to vector<128x4xbf16>
    %c7 = arith.constant 7 : index
    %c0_23 = arith.constant 0 : index
    %c0_24 = arith.constant 0 : index
    %47 = vector.load %arg3[%c7, %c0_23, %c0_24] : memref<9x4x32xbf16, #tpu.memory_space<vmem>>, vector<1x4x32xbf16>
    %48 = vector.shape_cast %47 : vector<1x4x32xbf16> to vector<4x32xbf16>
    %cst_25 = arith.constant dense<0.000000e+00> : vector<128x32xf32>
    %49 = tpu.matmul %46, %48, %cst_25 {dimension_numbers = #tpu.dot_dimension_numbers<[1], [0], [0], [1], [0, 0, 1, 1], [], []>} : vector<128x4xbf16>, vector<4x32xbf16>, vector<128x32xf32> -> vector<128x32xf32>
    %50 = arith.addf %44, %49 : vector<128x32xf32>
    %51 = vector.extract_strided_slice %3 {offsets = [2, 2, 0], sizes = [8, 16, 4], strides = [1, 1, 1]} : vector<10x18x4xbf16> to vector<8x16x4xbf16>
    %52 = vector.shape_cast %51 : vector<8x16x4xbf16> to vector<128x4xbf16>
    %c8 = arith.constant 8 : index
    %c0_26 = arith.constant 0 : index
    %c0_27 = arith.constant 0 : index
    %53 = vector.load %arg3[%c8, %c0_26, %c0_27] : memref<9x4x32xbf16, #tpu.memory_space<vmem>>, vector<1x4x32xbf16>
    %54 = vector.shape_cast %53 : vector<1x4x32xbf16> to vector<4x32xbf16>
    %cst_28 = arith.constant dense<0.000000e+00> : vector<128x32xf32>
    %55 = tpu.matmul %52, %54, %cst_28 {dimension_numbers = #tpu.dot_dimension_numbers<[1], [0], [0], [1], [0, 0, 1, 1], [], []>} : vector<128x4xbf16>, vector<4x32xbf16>, vector<128x32xf32> -> vector<128x32xf32>
    %56 = arith.addf %50, %55 : vector<128x32xf32>
    %c0_29 = arith.constant 0 : index
    %c0_30 = arith.constant 0 : index
    %57 = vector.load %arg4[%c0_29, %c0_30] : memref<1x32xf32, #tpu.memory_space<vmem>>, vector<1x32xf32>
    %58 = vector.broadcast %57 : vector<1x32xf32> to vector<128x32xf32>
    %59 = arith.mulf %56, %58 : vector<128x32xf32>
    %c0_31 = arith.constant 0 : index
    %c0_32 = arith.constant 0 : index
    %60 = vector.load %arg5[%c0_31, %c0_32] : memref<1x32xf32, #tpu.memory_space<vmem>>, vector<1x32xf32>
    %61 = vector.broadcast %60 : vector<1x32xf32> to vector<128x32xf32>
    %62 = arith.addf %59, %61 : vector<128x32xf32>
    %63 = tpu.transpose %62, [1, 0] : vector<128x32xf32> -> vector<32x128xf32>
    %c0_33 = arith.constant 0 : index
    %c0_34 = arith.constant 0 : index
    %c0_35 = arith.constant 0 : index
    %64 = vector.load %arg6[%c0_33, %c0_34, %c0_35] : memref<1x32x128xf32, #tpu.memory_space<vmem>>, vector<1x32x128xf32>
    %65 = vector.shape_cast %64 : vector<1x32x128xf32> to vector<32x128xf32>
    %66 = vector.shape_cast %63 : vector<32x128xf32> to vector<1x32x128xf32>
    tpu.vector_store %arg6[%c0_33, %c0_34, %c0_35], %66 {strides = array<i32>} : memref<1x32x128xf32, #tpu.memory_space<vmem>>, vector<1x32x128xf32>,
    return
  }
  func.func @transform_0(%arg0: i32, %arg1: i32) -> (i32, i32, i32, i32) {
    %c0_i32 = arith.constant 0 : i32
    %c0_i32_0 = arith.constant 0 : i32
    %c0_i32_1 = arith.constant 0 : i32
    %c0_i32_2 = arith.constant 0 : i32
    return %arg0, %c0_i32, %c0_i32_0, %c0_i32_1 : i32, i32, i32, i32
  }
  func.func @transform_1(%arg0: i32, %arg1: i32) -> (i32, i32, i32) {
    %c0_i32 = arith.constant 0 : i32
    %c0_i32_0 = arith.constant 0 : i32
    %c0_i32_1 = arith.constant 0 : i32
    %c0_i32_2 = arith.constant 0 : i32
    return %c0_i32, %c0_i32_0, %c0_i32_1 : i32, i32, i32
  }
  func.func @transform_2(%arg0: i32, %arg1: i32) -> (i32, i32) {
    %c0_i32 = arith.constant 0 : i32
    %c0_i32_0 = arith.constant 0 : i32
    %c0_i32_1 = arith.constant 0 : i32
    return %c0_i32, %c0_i32_0 : i32, i32
  }
  func.func @transform_3(%arg0: i32, %arg1: i32) -> (i32, i32) {
    %c0_i32 = arith.constant 0 : i32
    %c0_i32_0 = arith.constant 0 : i32
    %c0_i32_1 = arith.constant 0 : i32
    return %c0_i32, %c0_i32_0 : i32, i32
  }
  func.func @transform_4(%arg0: i32, %arg1: i32) -> (i32, i32, i32) {
    %c0_i32 = arith.constant 0 : i32
    %c0_i32_0 = arith.constant 0 : i32
    return %arg0, %c0_i32, %arg1 : i32, i32, i32
  }
}

</mosaic_0001>

<llo_original>
// kernel: tile.18
$region0: #{tile.18}
  #allocation0 [shape = 's32[1]{0}', space=sflag, size = 0x4, scoped, tag = 'scoped memory for tile.18']
  %s0 = inlined_call_operand.vmem [shape: f32[8], index: 0, kind: input, shape index: {}]
  %s1 = inlined_call_operand.vmem [shape: f32[4,8], index: 1, kind: output, shape index: {}]
  // Predicated region
  $region2: #{tile.18} parent=0 // pred_check
    _
  $region3: #{tile.18} parent=0 // pred_check_branch
    %3 = sbr.rel (0) target = $region5
  $region4: #{tile.18} parent=0 // pred_region
    _
  $region5: #{tile.18} parent=0 // pred_fallthru
    _
  %v4 = vld [vmem:[%s0] ss:$0 sm:$0xff]
  %5 = vst [vmem:[%s1] sm:$0xf] %v4

// kernel: tile.19
$region0: #{tile.19}
  %s0 = inlined_call_operand.vmem [shape: f32[4,8], index: 0, kind: input, shape index: {}]
  %s1 = inlined_call_operand.vmem [shape: f32[1,32], index: 1, kind: output, shape index: {}]
  $region1: #{tile.19} parent=0
    #allocation0 [shape = 'u8[4096]{0}', space=vmem, size = 0x1000, scoped, tag = 'scoped mem for output reshape']
    #allocation1 [shape = 'u8[4096]{0}', space=vmem, size = 0x1000, scoped, tag = 'scoped mem for input reshape']
    %s3 = sshllo.u32 0, 4
    %v4 = vld [vmem:[%s0] sm:%s3]
    %5 = vst [vmem:[#allocation1] sm:%s3] %v4
    %v6 = vld [vmem:[#allocation1] sm:$0x1]
    %vm7 = vcmask 64512
    %8 = vst.msk [vmem:[#allocation0] sm:$0x1] %vm7, %v6
    %s9 = scalar_lea.vmem [#allocation1], 3
    %v10 = vld [vmem:[%s9] sm:$0x1]
    %11 = vrot.lane.b32.xlu0 %v10, 24
    %v12 = vpop.permute.xlu0 %11
    %vm13 = vcmask 261312
    %14 = vst.msk [vmem:[#allocation0] sm:$0x1] %vm13, %v12
    %s15 = scalar_lea.vmem [#allocation1], 2
    %v16 = vld [vmem:[%s15] sm:$0x1]
    %17 = vrot.lane.b32.xlu0 %v16, 16
    %v18 = vpop.permute.xlu0 %17
    %vm19 = vcmask 195712
    %20 = vst.msk [vmem:[#allocation0] sm:$0x1] %vm19, %v18
    %s21 = scalar_lea.vmem [#allocation1], 1
    %v22 = vld [vmem:[%s21] sm:$0x1]
    %23 = vrot.lane.b32.xlu0 %v22, 8
    %v24 = vpop.permute.xlu0 %23
    %vm25 = vcmask 130112
    %26 = vst.msk [vmem:[#allocation0] sm:$0x1] %vm25, %v24
    %s28 = sshllo.u32 0, 1
    %v30 = vld [vmem:[#allocation0] sm:%s28]
    %s31 = sshllo.u32 0, 1
    %32 = vst [vmem:[%s1] sm:%s31] %v30

// kernel: _lambda_.2
$region0: #{_lambda_.2}
  #allocation0 [shape = 'u32[]', space=smem, size = 0x4, offset = 0x4, fixed_abs, tag = 'smem constant byte address 0x4 - core index']
  #allocation1 [shape = 'u32[144,128]{1,0:T(1,128)}', space=vmem, size = 0x12000, scoped, tag = 'internal scratch']
  %s0 = inlined_call_operand.vmem [shape: bf16[2,18,18,4], index: 0, kind: input, shape index: {}]
  %s1 = inlined_call_operand.vmem [shape: bf16[9,4,32], index: 1, kind: input, shape index: {}]
  %s2 = inlined_call_operand.vmem [shape: f32[2,2,1,32], index: 2, kind: output, shape index: {0}]
  %s3 = inlined_call_operand.vmem [shape: f32[2,2,1,32], index: 3, kind: output, shape index: {1}]
  %4 = xla_tuple %s2, %s3
  %s5 = sld [smem:[#allocation0]]
  $region49: #{_lambda_.2} parent=0
    _
  %s7 = ssub.s32 1, %s5
  %s8 = scalar_select 0, %s7, %s5
  loop: start=0, step=1, limit=6
  $region2: #{_lambda_.2} parent=0 // loop_pre_header
    _
  $region3: #{_lambda_.2} parent=0 // loop_header
    %s10 = sphi 0, %s14
    %p11 = scmp.ge.s32.totalorder %s10, 6
    %s17 = sphi 0, %s29
    %s18 = sphi 0, %s25
    %s19 = sphi 0, %s17
    %s20 = sphi 0, %s18
    %s21 = sphi 0, %s19
    %s22 = sphi 0, %s20
    %s32 = sphi 0, %s34
    %s35 = sphi 0, %s32
    %s36 = sphi 0, %s35
    %s52 = sphi 0, %s36
    %s56 = sphi 0, %s56
    %s58 = sphi 0, %s56
    %s59 = sphi 0, %s58
    %s73 = sphi 0, %s59
    %s81 = sphi 0, %s83
    %s84 = sphi 0, %s81
    %s85 = sphi 0, %s84
    %s101 = sphi 0, %s85
    %s109 = sphi 0, %s111
    %s112 = sphi 0, %s109
    %s113 = sphi 0, %s112
    %s129 = sphi 0, %s113
  $region4: #{_lambda_.2} parent=0 // loop_header_branch
    %13 = sbr.rel (%p11) target = $region8
  $region5: #{_lambda_.2} parent=0 // loop_body
    %s15 = ssub.s32 %s10, 1
    %s16 = ssub.s32 %s10, 2
    %s23 = sadd.s32 1, %s18
    %p24 = scmp.ge.s32.totalorder %s23, 2
    %s25 = scalar_select %p24, 0, %s23
    %s26 = sadd.s32 1, %s17
    %s27 = scalar_select %p24, %s26, %s17
    %p28 = scmp.ge.s32.totalorder %s27, 2
    %s29 = scalar_select %p28, 0, %s27
    %s30 = ssub.s32 %s17, %s29
    %p31 = scmp.eq.s32.totalorder %s30, 0
    %s33 = sadd.s32 %s32, 1
    %s34 = scalar_select %p31, %s32, %s33
    %p37 = pneg %p31
    %p38 = scmp.eq.s32.totalorder %s10, 3
    %p39 = por %p37, %p38
    %p40 = scmp.ne.s32.totalorder %s32, %s35
    %p41 = scmp.eq.s32.totalorder %s10, 0
    %p42 = por %p40, %p41
    %p43 = scmp.ne.s32.totalorder %s32, %s35
    %p44 = scmp.eq.s32.totalorder %s15, 3
    %p45 = por %p43, %p44
    %p46 = scmp.ne.s32.totalorder %s35, %s36
    %p47 = scmp.eq.s32.totalorder %s15, 0
    %p48 = por %p46, %p47
    %p49 = scmp.ne.s32.totalorder %s35, %s36
    %p50 = scmp.eq.s32.totalorder %s16, 3
    %p51 = por %p49, %p50
    %p53 = scmp.ne.s32.totalorder %s36, %s52
    %p54 = scmp.eq.s32.totalorder %s16, 0
    %p55 = por %p53, %p54
    %s57 = sadd.s32 %s56, 1
    %p60 = scmp.eq.s32.totalorder %s10, 3
    %p61 = scmp.ne.s32.totalorder %s56, %s58
    %p62 = scmp.eq.s32.totalorder %s10, 0
    %p63 = por %p61, %p62
    %p64 = scmp.ne.s32.totalorder %s56, %s58
    %p65 = scmp.eq.s32.totalorder %s15, 3
    %p66 = por %p64, %p65
    %p67 = scmp.ne.s32.totalorder %s58, %s59
    %p68 = scmp.eq.s32.totalorder %s15, 0
    %p69 = por %p67, %p68
    %p70 = scmp.ne.s32.totalorder %s58, %s59
    %p71 = scmp.eq.s32.totalorder %s16, 3
    %p72 = por %p70, %p71
    %p74 = scmp.ne.s32.totalorder %s59, %s73
    %p75 = scmp.eq.s32.totalorder %s16, 0
    %p76 = por %p74, %p75
    %s77 = ssub.s32 %s17, %s29
    %s78 = ssub.s32 %s18, %s25
    %s79 = sor.u32 %s77, %s78
    %p80 = scmp.eq.s32.totalorder %s79, 0
    %s82 = sadd.s32 %s81, 1
    %s83 = scalar_select %p80, %s81, %s82
    %p86 = pneg %p80
    %p87 = scmp.eq.s32.totalorder %s10, 3
    %p88 = por %p86, %p87
    %p89 = scmp.ne.s32.totalorder %s81, %s84
    %p90 = scmp.eq.s32.totalorder %s10, 0
    %p91 = por %p89, %p90
    %p92 = scmp.ne.s32.totalorder %s81, %s84
    %p93 = scmp.eq.s32.totalorder %s15, 3
    %p94 = por %p92, %p93
    %p95 = scmp.ne.s32.totalorder %s84, %s85
    %p96 = scmp.eq.s32.totalorder %s15, 0
    %p97 = por %p95, %p96
    %p98 = scmp.ne.s32.totalorder %s84, %s85
    %p99 = scmp.eq.s32.totalorder %s16, 3
    %p100 = por %p98, %p99
    %p102 = scmp.ne.s32.totalorder %s85, %s101
    %p103 = scmp.eq.s32.totalorder %s16, 0
    %p104 = por %p102, %p103
    %s105 = ssub.s32 %s17, %s29
    %s106 = ssub.s32 %s18, %s25
    %s107 = sor.u32 %s105, %s106
    %p108 = scmp.eq.s32.totalorder %s107, 0
    %s110 = sadd.s32 %s109, 1
    %s111 = scalar_select %p108, %s109, %s110
    %p114 = pneg %p108
    %p115 = scmp.eq.s32.totalorder %s10, 3
    %p116 = por %p114, %p115
    %p117 = scmp.ne.s32.totalorder %s109, %s112
    %p118 = scmp.eq.s32.totalorder %s10, 0
    %p119 = por %p117, %p118
    %p120 = scmp.ne.s32.totalorder %s109, %s112
    %p121 = scmp.eq.s32.totalorder %s15, 3
    %p122 = por %p120, %p121
    %p123 = scmp.ne.s32.totalorder %s112, %s113
    %p124 = scmp.eq.s32.totalorder %s15, 0
    %p125 = por %p123, %p124
    %p126 = scmp.ne.s32.totalorder %s112, %s113
    %p127 = scmp.eq.s32.totalorder %s16, 3
    %p128 = por %p126, %p127
    %p130 = scmp.ne.s32.totalorder %s113, %s129
    %p131 = scmp.eq.s32.totalorder %s16, 0
    %p132 = por %p130, %p131
    %p133 = scmp.le.s32.totalorder 1, %s10
    %p134 = scmp.lt.s32.totalorder %s10, 5
    %p135 = pnand %p133, %p134
    %p136 = pneg %p135
    // Predicated region
    $region9: #{_lambda_.2} parent=5 // pred_check
      _
    $region10: #{_lambda_.2} parent=5 // pred_check_branch
      %138 = sbr.rel (%p135) target = $region12
    $region11: #{_lambda_.2} parent=5 // pred_region
      %s139 = ssub.s32 %s10, 1
      // Predicated region
      $region13: #{_lambda_.2} parent=11 // pred_check
        %p140 = pneg %p69
      $region14: #{_lambda_.2} parent=11 // pred_check_branch
        %142 = sbr.rel (%p140) target = $region16
      $region15: #{_lambda_.2} parent=11 // pred_region
        _
      $region16: #{_lambda_.2} parent=11 // pred_fallthru
        _
    $region12: #{_lambda_.2} parent=5 // pred_fallthru
      _
    %p143 = scmp.lt.s32.totalorder %s10, 4
    // Predicated region
    $region17: #{_lambda_.2} parent=5 // pred_check
      %p144 = pneg %p143
    $region18: #{_lambda_.2} parent=5 // pred_check_branch
      %146 = sbr.rel (%p144) target = $region20
    $region19: #{_lambda_.2} parent=5 // pred_region
      // Predicated region
      $region21: #{_lambda_.2} parent=19 // pred_check
        %p147 = pneg %p42
      $region22: #{_lambda_.2} parent=19 // pred_check_branch
        %149 = sbr.rel (%p147) target = $region24
      $region23: #{_lambda_.2} parent=19 // pred_region
        %p150 = scmp.lt.s32.totalorder %s17, 1
        %s151 = scalar_select %p150, %s17, 1
        %s152 = smul.addr %s151, 54
        %s153 = smul.addr %s152, 4
        %s154 = scalar_lea.vmem %s0, %s153
      $region24: #{_lambda_.2} parent=19 // pred_fallthru
        _
    $region20: #{_lambda_.2} parent=5 // pred_fallthru
      _
    %p155 = scmp.le.s32.totalorder 1, %s10
    %p156 = scmp.lt.s32.totalorder %s10, 5
    %p157 = pnand %p155, %p156
    %p158 = pneg %p157
    // Predicated region
    $region25: #{_lambda_.2} parent=5 // pred_check
      _
    $region26: #{_lambda_.2} parent=5 // pred_check_branch
      %160 = sbr.rel (%p157) target = $region28
    $region27: #{_lambda_.2} parent=5 // pred_region
      %s161 = ssub.s32 %s10, 1
      %p162 = scmp.lt.s32.totalorder %s19, 1
      %s163 = scalar_select %p162, %s19, 1
      %s164 = smul.addr %s163, 54
      %s165 = smul.addr %s164, 4
      %s166 = scalar_lea.vmem %s0, %s165
      %p167 = pneg %p48
      %p168 = pneg %p45
      %p169 = pneg %p69
      %p170 = pneg %p66
      %p171 = pneg %p97
      %p172 = pneg %p94
      %p173 = scmp.lt.s32.totalorder %s19, 1
      %s174 = scalar_select %p173, %s19, 1
      %p175 = scmp.lt.s32.totalorder %s20, 1
      %s176 = scalar_select %p175, %s20, 1
      %s177 = smul.addr %s174, 2
      %s178 = sadd.s32 %s176, %s177
      %s179 = scalar_lea.vmem %s2, %s178
      %p180 = pneg %p125
      %p181 = pneg %p122
      %p182 = scmp.lt.s32.totalorder %s19, 1
      %s183 = scalar_select %p182, %s19, 1
      %p184 = scmp.lt.s32.totalorder %s20, 1
      %s185 = scalar_select %p184, %s20, 1
      %s186 = smul.addr %s183, 2
      %s187 = sadd.s32 %s185, %s186
      %s188 = scalar_lea.vmem %s3, %s187
      %p189 = scmp.lt.s32.totalorder %s19, 1
      %s190 = scalar_select %p189, %s19, 1
      %s191 = smul.addr %s190, 54
      %s192 = smul.addr %s191, 4
      %s193 = scalar_lea.vmem %s0, %s192
      %p194 = scmp.lt.s32.totalorder %s19, 1
      %s195 = scalar_select %p194, %s19, 1
      %p196 = scmp.lt.s32.totalorder %s20, 1
      %s197 = scalar_select %p196, %s20, 1
      %s198 = smul.addr %s195, 2
      %s199 = sadd.s32 %s197, %s198
      %s200 = scalar_lea.vmem %s2, %s199
      %p201 = scmp.lt.s32.totalorder %s19, 1
      %s202 = scalar_select %p201, %s19, 1
      %p203 = scmp.lt.s32.totalorder %s20, 1
      %s204 = scalar_select %p203, %s20, 1
      %s205 = smul.addr %s202, 2
      %s206 = sadd.s32 %s204, %s205
      %s207 = scalar_lea.vmem %s3, %s206
      %s209 = smul.u32 %s20, 8
      %s210 = smul.u32 %s209, 3
      %s211 = smul.addr %s210, 4
      %s212 = scalar_lea.vmem %s193, %s211
      %v213 = vld [vmem:[%s212] sm:$0xf]
      %v214 = vld [vmem:[%s212 + $0x4] sm:$0xf]
      %v215 = vld [vmem:[%s212 + $0x8] sm:$0x1]
      %v216 = vld [vmem:[%s212 + $0xc] sm:$0xf]
      %v217 = vld [vmem:[%s212 + $0x10] sm:$0xf]
      %v218 = vld [vmem:[%s212 + $0x14] sm:$0x1]
      %v219 = vld [vmem:[%s212 + $0x18] sm:$0xf]
      %v220 = vld [vmem:[%s212 + $0x1c] sm:$0xf]
      %v221 = vld [vmem:[%s212 + $0x20] sm:$0x1]
      %v222 = vld [vmem:[%s212 + $0x24] sm:$0xf]
      %v223 = vld [vmem:[%s212 + $0x28] sm:$0xf]
      %v224 = vld [vmem:[%s212 + $0x2c] sm:$0x1]
      %v225 = vld [vmem:[%s212 + $0x30] sm:$0xf]
      %v226 = vld [vmem:[%s212 + $0x34] sm:$0xf]
      %v227 = vld [vmem:[%s212 + $0x38] sm:$0x1]
      %v228 = vld [vmem:[%s212 + $0x3c] sm:$0xf]
      %v229 = vld [vmem:[%s212 + $0x40] sm:$0xf]
      %v230 = vld [vmem:[%s212 + $0x44] sm:$0x1]
      %v231 = vld [vmem:[%s212 + $0x48] sm:$0xf]
      %v232 = vld [vmem:[%s212 + $0x4c] sm:$0xf]
      %v233 = vld [vmem:[%s212 + $0x50] sm:$0x1]
      %v234 = vld [vmem:[%s212 + $0x54] sm:$0xf]
      %v235 = vld [vmem:[%s212 + $0x58] sm:$0xf]
      %v236 = vld [vmem:[%s212 + $0x5c] sm:$0x1]
      %v237 = vld [vmem:[%s212 + $0x60] sm:$0xf]
      %v238 = vld [vmem:[%s212 + $0x64] sm:$0xf]
      %v239 = vld [vmem:[%s212 + $0x68] sm:$0x1]
      %v240 = vld [vmem:[%s212 + $0x6c] sm:$0xf]
      %v241 = vld [vmem:[%s212 + $0x70] sm:$0xf]
      %v242 = vld [vmem:[%s212 + $0x74] sm:$0x1]
      %v243 = vld [vmem:[%s1] sm:$0x3]
      %vm244 = vsmask.f32 3328
      %vm245 = vsmask.f32 7440
      %vm246 = vmor %vm244, %vm245
      %v248 = vshrl.u32 %v213, 16
      %v250 = vrot.slane %v248, 4
      %v251 = vshll.u32 %v213, 16
      %v253 = vrot.slane %v251, 5
      %v254 = vor.u32 %v250, %v253
      %v255 = vrot.slane %v254, 4
      %v257 = vshll.u32 %v214, 16
      %v259 = vrot.slane %v257, 5
      %v260 = vsel %vm246, %v255, %v259
      %v261 = vshrl.u32 %v214, 16
      %v263 = vrot.slane %v261, 4
      %v264 = vor.u32 %v263, %v259
      %v265 = vrot.slane %v264, 4
      %v267 = vshll.u32 %v215, 16
      %v269 = vrot.slane %v267, 5
      %v270 = vsel %vm246, %v265, %v269
      %v272 = vshrl.u32 %v216, 16
      %v274 = vrot.slane %v272, 4
      %v275 = vshll.u32 %v216, 16
      %v277 = vrot.slane %v275, 5
      %v278 = vor.u32 %v274, %v277
      %v279 = vrot.slane %v278, 4
      %v281 = vshll.u32 %v217, 16
      %v283 = vrot.slane %v281, 5
      %v284 = vsel %vm246, %v279, %v283
      %v285 = vshrl.u32 %v217, 16
      %v287 = vrot.slane %v285, 4
      %v288 = vor.u32 %v287, %v283
      %v289 = vrot.slane %v288, 4
      %v291 = vshll.u32 %v218, 16
      %v293 = vrot.slane %v291, 5
      %v294 = vsel %vm246, %v289, %v293
      %v296 = vshrl.u32 %v219, 16
      %v298 = vrot.slane %v296, 4
      %v299 = vshll.u32 %v219, 16
      %v301 = vrot.slane %v299, 5
      %v302 = vor.u32 %v298, %v301
      %v303 = vrot.slane %v302, 4
      %v305 = vshll.u32 %v220, 16
      %v307 = vrot.slane %v305, 5
      %v308 = vsel %vm246, %v303, %v307
      %v309 = vshrl.u32 %v220, 16
      %v311 = vrot.slane %v309, 4
      %v312 = vor.u32 %v311, %v307
      %v313 = vrot.slane %v312, 4
      %v315 = vshll.u32 %v221, 16
      %v317 = vrot.slane %v315, 5
      %v318 = vsel %vm246, %v313, %v317
      %v320 = vshrl.u32 %v222, 16
      %v322 = vrot.slane %v320, 4
      %v323 = vshll.u32 %v222, 16
      %v325 = vrot.slane %v323, 5
      %v326 = vor.u32 %v322, %v325
      %v327 = vrot.slane %v326, 4
      %v329 = vshll.u32 %v223, 16
      %v331 = vrot.slane %v329, 5
      %v332 = vsel %vm246, %v327, %v331
      %v333 = vshrl.u32 %v223, 16
      %v335 = vrot.slane %v333, 4
      %v336 = vor.u32 %v335, %v331
      %v337 = vrot.slane %v336, 4
      %v339 = vshll.u32 %v224, 16
      %v341 = vrot.slane %v339, 5
      %v342 = vsel %vm246, %v337, %v341
      %v344 = vshrl.u32 %v225, 16
      %v346 = vrot.slane %v344, 4
      %v347 = vshll.u32 %v225, 16
      %v349 = vrot.slane %v347, 5
      %v350 = vor.u32 %v346, %v349
      %v351 = vrot.slane %v350, 4
      %v353 = vshll.u32 %v226, 16
      %v355 = vrot.slane %v353, 5
      %v356 = vsel %vm246, %v351, %v355
      %v357 = vshrl.u32 %v226, 16
      %v359 = vrot.slane %v357, 4
      %v360 = vor.u32 %v359, %v355
      %v361 = vrot.slane %v360, 4
      %v363 = vshll.u32 %v227, 16
      %v365 = vrot.slane %v363, 5
      %v366 = vsel %vm246, %v361, %v365
      %v368 = vshrl.u32 %v228, 16
      %v370 = vrot.slane %v368, 4
      %v371 = vshll.u32 %v228, 16
      %v373 = vrot.slane %v371, 5
      %v374 = vor.u32 %v370, %v373
      %v375 = vrot.slane %v374, 4
      %v377 = vshll.u32 %v229, 16
      %v379 = vrot.slane %v377, 5
      %v380 = vsel %vm246, %v375, %v379
      %v381 = vshrl.u32 %v229, 16
      %v383 = vrot.slane %v381, 4
      %v384 = vor.u32 %v383, %v379
      %v385 = vrot.slane %v384, 4
      %v387 = vshll.u32 %v230, 16
      %v389 = vrot.slane %v387, 5
      %v390 = vsel %vm246, %v385, %v389
      %v392 = vshrl.u32 %v231, 16
      %v394 = vrot.slane %v392, 4
      %v395 = vshll.u32 %v231, 16
      %v397 = vrot.slane %v395, 5
      %v398 = vor.u32 %v394, %v397
      %v399 = vrot.slane %v398, 4
      %v401 = vshll.u32 %v232, 16
      %v403 = vrot.slane %v401, 5
      %v404 = vsel %vm246, %v399, %v403
      %v405 = vshrl.u32 %v232, 16
      %v407 = vrot.slane %v405, 4
      %v408 = vor.u32 %v407, %v403
      %v409 = vrot.slane %v408, 4
      %v411 = vshll.u32 %v233, 16
      %v413 = vrot.slane %v411, 5
      %v414 = vsel %vm246, %v409, %v413
      %v416 = vshrl.u32 %v234, 16
      %v418 = vrot.slane %v416, 4
      %v419 = vshll.u32 %v234, 16
      %v421 = vrot.slane %v419, 5
      %v422 = vor.u32 %v418, %v421
      %v423 = vrot.slane %v422, 4
      %v425 = vshll.u32 %v235, 16
      %v427 = vrot.slane %v425, 5
      %v428 = vsel %vm246, %v423, %v427
      %v429 = vshrl.u32 %v235, 16
      %v431 = vrot.slane %v429, 4
      %v432 = vor.u32 %v431, %v427
      %v433 = vrot.slane %v432, 4
      %v435 = vshll.u32 %v236, 16
      %v437 = vrot.slane %v435, 5
      %v438 = vsel %vm246, %v433, %v437
      %s439 = scalar_lea.vmem %s1, 2
      %v440 = vld [vmem:[%s439] sm:$0x3]
      %v441 = vunpack.c.l.b16 %v260
      %v442 = vunpack.c.l.b16 %v270
      %v443 = vunpack.c.l.b16 %v284
      %v444 = vunpack.c.l.b16 %v294
      %v445 = vunpack.c.l.b16 %v308
      %v446 = vunpack.c.l.b16 %v318
      %v447 = vunpack.c.l.b16 %v332
      %v448 = vunpack.c.l.b16 %v342
      %v449 = vunpack.c.l.b16 %v356
      %v450 = vunpack.c.l.b16 %v366
      %v451 = vunpack.c.l.b16 %v380
      %v452 = vunpack.c.l.b16 %v390
      %v453 = vunpack.c.l.b16 %v404
      %v454 = vunpack.c.l.b16 %v414
      %v455 = vunpack.c.l.b16 %v428
      %v456 = vunpack.c.l.b16 %v438
      %v457 = vpack.c.b16 %v442, %v441
      %v458 = vpack.c.b16 %v444, %v443
      %v459 = vpack.c.b16 %v446, %v445
      %v460 = vpack.c.b16 %v448, %v447
      %v461 = vpack.c.b16 %v450, %v449
      %v462 = vpack.c.b16 %v452, %v451
      %v463 = vpack.c.b16 %v454, %v453
      %v464 = vpack.c.b16 %v456, %v455
      %vm465 = vcmask 31744
      %v467 = vsel %vm465, %v457, 0
      %v470 = vsel %vm465, %v458, 0
      %v473 = vsel %vm465, %v459, 0
      %v476 = vsel %vm465, %v460, 0
      %v479 = vsel %vm465, %v461, 0
      %v482 = vsel %vm465, %v462, 0
      %v485 = vsel %vm465, %v463, 0
      %v488 = vsel %vm465, %v464, 0
      %vm490 = vcmask 1041408
      %v492 = vsel %vm490, %v440, 0
      %494 = vmatprep.subr.bf16.mxu0 0
      %495 = vmatpush1.bf16.msra.mxu0 %v492
      %496 = vmatprep.subr.bf16.mxu0 0
      %497 = vmatpush1.bf16.msra.mxu0 0
      %498 = vmatprep.subr.bf16.mxu0 0
      %499 = vmatpush1.bf16.msra.mxu0 0
      %500 = vmatprep.subr.bf16.mxu0 0
      %501 = vmatpush1.bf16.msra.mxu0 0
      %502 = vmatprep.subr.bf16.mxu0 0
      %503 = vmatpush1.bf16.msra.mxu0 0
      %504 = vmatprep.subr.bf16.mxu0 0
      %505 = vmatpush1.bf16.msra.mxu0 0
      %506 = vmatprep.subr.bf16.mxu0 0
      %507 = vmatpush1.bf16.msra.mxu0 0
      %508 = vmatprep.subr.bf16.mxu0 0
      %509 = vmatpush1.bf16.msra.mxu0 0
      %510 = vmatprep.subr.bf16.mxu0 0
      %511 = vmatpush1.bf16.msra.mxu0 0
      %512 = vmatprep.subr.bf16.mxu0 0
      %513 = vmatpush1.bf16.msra.mxu0 0
      %514 = vmatprep.subr.bf16.mxu0 0
      %515 = vmatpush1.bf16.msra.mxu0 0
      %516 = vmatprep.subr.bf16.mxu0 0
      %517 = vmatpush1.bf16.msra.mxu0 0
      %518 = vmatprep.subr.bf16.mxu0 0
      %519 = vmatpush1.bf16.msra.mxu0 0
      %520 = vmatprep.subr.bf16.mxu0 0
      %521 = vmatpush1.bf16.msra.mxu0 0
      %522 = vmatprep.subr.bf16.mxu0 0
      %523 = vmatpush1.bf16.msra.mxu0 0
      %524 = vmatprep.subr.bf16.mxu0 0
      %525 = vmatpush1.bf16.msra.mxu0 0
      %526 = vmatprep.mubr.bf16.mxu0 0
      %527 = vmatmul.mubr.bf16.gmra.mrb[0].mxu0 %v467
      %v528 = vpop.f32.mrb[0].mxu0
      %v529 = vadd.f32 0.0, %v528
      %v530 = vpop.f32.mrb[0].mxu0
      %v531 = vpop.f32.mrb[0].mxu0
      %v532 = vadd.f32 0.0, %v531
      %v533 = vpop.f32.mrb[0].mxu0
      %534 = vmatprep.mubr.bf16.mxu0 0
      %535 = vmatmul.mubr.bf16.gmra.mrb[0].mxu0 %v470
      %v536 = vpop.f32.mrb[0].mxu0
      %v537 = vadd.f32 0.0, %v536
      %v538 = vpop.f32.mrb[0].mxu0
      %v539 = vpop.f32.mrb[0].mxu0
      %v540 = vadd.f32 0.0, %v539
      %v541 = vpop.f32.mrb[0].mxu0
      %542 = vmatprep.mubr.bf16.mxu0 0
      %543 = vmatmul.mubr.bf16.gmra.mrb[0].mxu0 %v473
      %v544 = vpop.f32.mrb[0].mxu0
      %v545 = vadd.f32 0.0, %v544
      %v546 = vpop.f32.mrb[0].mxu0
      %v547 = vpop.f32.mrb[0].mxu0
      %v548 = vadd.f32 0.0, %v547
      %v549 = vpop.f32.mrb[0].mxu0
      %550 = vmatprep.mubr.bf16.mxu0 0
      %551 = vmatmul.mubr.bf16.gmra.mrb[0].mxu0 %v476
      %v552 = vpop.f32.mrb[0].mxu0
      %v553 = vadd.f32 0.0, %v552
      %v554 = vpop.f32.mrb[0].mxu0
      %v555 = vpop.f32.mrb[0].mxu0
      %v556 = vadd.f32 0.0, %v555
      %v557 = vpop.f32.mrb[0].mxu0
      %558 = vmatprep.mubr.bf16.mxu0 0
      %559 = vmatmul.mubr.bf16.gmra.mrb[0].mxu0 %v479
      %v560 = vpop.f32.mrb[0].mxu0
      %v561 = vadd.f32 0.0, %v560
      %v562 = vpop.f32.mrb[0].mxu0
      %v563 = vpop.f32.mrb[0].mxu0
      %v564 = vadd.f32 0.0, %v563
      %v565 = vpop.f32.mrb[0].mxu0
      %566 = vmatprep.mubr.bf16.mxu0 0
      %567 = vmatmul.mubr.bf16.gmra.mrb[0].mxu0 %v482
      %v568 = vpop.f32.mrb[0].mxu0
      %v569 = vadd.f32 0.0, %v568
      %v570 = vpop.f32.mrb[0].mxu0
      %v571 = vpop.f32.mrb[0].mxu0
      %v572 = vadd.f32 0.0, %v571
      %v573 = vpop.f32.mrb[0].mxu0
      %574 = vmatprep.mubr.bf16.mxu0 0
      %575 = vmatmul.mubr.bf16.gmra.mrb[0].mxu0 %v485
      %v576 = vpop.f32.mrb[0].mxu0
      %v577 = vadd.f32 0.0, %v576
      %v578 = vpop.f32.mrb[0].mxu0
      %v579 = vpop.f32.mrb[0].mxu0
      %v580 = vadd.f32 0.0, %v579
      %v581 = vpop.f32.mrb[0].mxu0
      %582 = vmatprep.mubr.bf16.mxu0 0
      %583 = vmatmul.mubr.bf16.gmra.mrb[0].mxu0 %v488
      %v584 = vpop.f32.mrb[0].mxu0
      %v585 = vadd.f32 0.0, %v584
      %v586 = vpop.f32.mrb[0].mxu0
      %v587 = vpop.f32.mrb[0].mxu0
      %v588 = vadd.f32 0.0, %v587
      %v589 = vpop.f32.mrb[0].mxu0
      %590 = vdwg.mxu0
      %v607 = vunpack.c.l.b16 %v213
      %v608 = vunpack.c.l.b16 %v214
      %v609 = vunpack.c.l.b16 %v216
      %v610 = vunpack.c.l.b16 %v217
      %v611 = vunpack.c.l.b16 %v219
      %v612 = vunpack.c.l.b16 %v220
      %v613 = vunpack.c.l.b16 %v222
      %v614 = vunpack.c.l.b16 %v223
      %v615 = vunpack.c.l.b16 %v225
      %v616 = vunpack.c.l.b16 %v226
      %v617 = vunpack.c.l.b16 %v228
      %v618 = vunpack.c.l.b16 %v229
      %v619 = vunpack.c.l.b16 %v231
      %v620 = vunpack.c.l.b16 %v232
      %v621 = vunpack.c.l.b16 %v234
      %v622 = vunpack.c.l.b16 %v235
      %v623 = vpack.c.b16 %v608, %v607
      %v624 = vpack.c.b16 %v610, %v609
      %v625 = vpack.c.b16 %v612, %v611
      %v626 = vpack.c.b16 %v614, %v613
      %v627 = vpack.c.b16 %v616, %v615
      %v628 = vpack.c.b16 %v618, %v617
      %v629 = vpack.c.b16 %v620, %v619
      %v630 = vpack.c.b16 %v622, %v621
      %v632 = vsel %vm465, %v623, 0
      %v635 = vsel %vm465, %v624, 0
      %v638 = vsel %vm465, %v625, 0
      %v641 = vsel %vm465, %v626, 0
      %v644 = vsel %vm465, %v627, 0
      %v647 = vsel %vm465, %v628, 0
      %v650 = vsel %vm465, %v629, 0
      %v653 = vsel %vm465, %v630, 0
      %v656 = vsel %vm490, %v243, 0
      %658 = vmatprep.subr.bf16.mxu0 0
      %659 = vmatpush1.bf16.msra.mxu0 %v656
      %660 = vmatprep.subr.bf16.mxu0 0
      %661 = vmatpush1.bf16.msra.mxu0 0
      %662 = vmatprep.subr.bf16.mxu0 0
      %663 = vmatpush1.bf16.msra.mxu0 0
      %664 = vmatprep.subr.bf16.mxu0 0
      %665 = vmatpush1.bf16.msra.mxu0 0
      %666 = vmatprep.subr.bf16.mxu0 0
      %667 = vmatpush1.bf16.msra.mxu0 0
      %668 = vmatprep.subr.bf16.mxu0 0
      %669 = vmatpush1.bf16.msra.mxu0 0
      %670 = vmatprep.subr.bf16.mxu0 0
      %671 = vmatpush1.bf16.msra.mxu0 0
      %672 = vmatprep.subr.bf16.mxu0 0
      %673 = vmatpush1.bf16.msra.mxu0 0
      %674 = vmatprep.subr.bf16.mxu0 0
      %675 = vmatpush1.bf16.msra.mxu0 0
      %676 = vmatprep.subr.bf16.mxu0 0
      %677 = vmatpush1.bf16.msra.mxu0 0
      %678 = vmatprep.subr.bf16.mxu0 0
      %679 = vmatpush1.bf16.msra.mxu0 0
      %680 = vmatprep.subr.bf16.mxu0 0
      %681 = vmatpush1.bf16.msra.mxu0 0
      %682 = vmatprep.subr.bf16.mxu0 0
      %683 = vmatpush1.bf16.msra.mxu0 0
      %684 = vmatprep.subr.bf16.mxu0 0
      %685 = vmatpush1.bf16.msra.mxu0 0
      %686 = vmatprep.subr.bf16.mxu0 0
      %687 = vmatpush1.bf16.msra.mxu0 0
      %688 = vmatprep.subr.bf16.mxu0 0
      %689 = vmatpush1.bf16.msra.mxu0 0
      %690 = vmatprep.mubr.bf16.mxu0 0
      %691 = vmatmul.mubr.bf16.gmra.mrb[0].mxu0 %v632
      %v692 = vpop.f32.mrb[0].mxu0
      %v693 = vadd.f32 %v529, %v692
      %v694 = vpop.f32.mrb[0].mxu0
      %v695 = vpop.f32.mrb[0].mxu0
      %v696 = vadd.f32 %v532, %v695
      %v697 = vpop.f32.mrb[0].mxu0
      %698 = vmatprep.mubr.bf16.mxu0 0
      %699 = vmatmul.mubr.bf16.gmra.mrb[0].mxu0 %v635
      %v700 = vpop.f32.mrb[0].mxu0
      %v701 = vadd.f32 %v537, %v700
      %v702 = vpop.f32.mrb[0].mxu0
      %v703 = vpop.f32.mrb[0].mxu0
      %v704 = vadd.f32 %v540, %v703
      %v705 = vpop.f32.mrb[0].mxu0
      %706 = vmatprep.mubr.bf16.mxu0 0
      %707 = vmatmul.mubr.bf16.gmra.mrb[0].mxu0 %v638
      %v708 = vpop.f32.mrb[0].mxu0
      %v709 = vadd.f32 %v545, %v708
      %v710 = vpop.f32.mrb[0].mxu0
      %v711 = vpop.f32.mrb[0].mxu0
      %v712 = vadd.f32 %v548, %v711
      %v713 = vpop.f32.mrb[0].mxu0
      %714 = vmatprep.mubr.bf16.mxu0 0
      %715 = vmatmul.mubr.bf16.gmra.mrb[0].mxu0 %v641
      %v716 = vpop.f32.mrb[0].mxu0
      %v717 = vadd.f32 %v553, %v716
      %v718 = vpop.f32.mrb[0].mxu0
      %v719 = vpop.f32.mrb[0].mxu0
      %v720 = vadd.f32 %v556, %v719
      %v721 = vpop.f32.mrb[0].mxu0
      %722 = vmatprep.mubr.bf16.mxu0 0
      %723 = vmatmul.mubr.bf16.gmra.mrb[0].mxu0 %v644
      %v724 = vpop.f32.mrb[0].mxu0
      %v725 = vadd.f32 %v561, %v724
      %v726 = vpop.f32.mrb[0].mxu0
      %v727 = vpop.f32.mrb[0].mxu0
      %v728 = vadd.f32 %v564, %v727
      %v729 = vpop.f32.mrb[0].mxu0
      %730 = vmatprep.mubr.bf16.mxu0 0
      %731 = vmatmul.mubr.bf16.gmra.mrb[0].mxu0 %v647
      %v732 = vpop.f32.mrb[0].mxu0
      %v733 = vadd.f32 %v569, %v732
      %v734 = vpop.f32.mrb[0].mxu0
      %v735 = vpop.f32.mrb[0].mxu0
      %v736 = vadd.f32 %v572, %v735
      %v737 = vpop.f32.mrb[0].mxu0
      %738 = vmatprep.mubr.bf16.mxu0 0
      %739 = vmatmul.mubr.bf16.gmra.mrb[0].mxu0 %v650
      %v740 = vpop.f32.mrb[0].mxu0
      %v741 = vadd.f32 %v577, %v740
      %v742 = vpop.f32.mrb[0].mxu0
      %v743 = vpop.f32.mrb[0].mxu0
      %v744 = vadd.f32 %v580, %v743
      %v745 = vpop.f32.mrb[0].mxu0
      %746 = vmatprep.mubr.bf16.mxu0 0
      %747 = vmatmul.mubr.bf16.gmra.mrb[0].mxu0 %v653
      %v748 = vpop.f32.mrb[0].mxu0
      %v749 = vadd.f32 %v585, %v748
      %v750 = vpop.f32.mrb[0].mxu0
      %v751 = vpop.f32.mrb[0].mxu0
      %v752 = vadd.f32 %v588, %v751
      %v753 = vpop.f32.mrb[0].mxu0
      %754 = vdwg.mxu0
      %vm763 = vcmask 1042432
      %vm764 = vcmask 1046532
      %vm765 = vmor %vm763, %vm764
      %v766 = vrot.slane %v213, 5
      %v767 = vrot.slane %v766, 4
      %v768 = vrot.slane %v214, 5
      %v769 = vsel %vm765, %v767, %v768
      %v770 = vrot.slane %v768, 4
      %v771 = vrot.slane %v215, 5
      %v772 = vsel %vm765, %v770, %v771
      %v773 = vrot.slane %v216, 5
      %v774 = vrot.slane %v773, 4
      %v775 = vrot.slane %v217, 5
      %v776 = vsel %vm765, %v774, %v775
      %v777 = vrot.slane %v775, 4
      %v778 = vrot.slane %v218, 5
      %v779 = vsel %vm765, %v777, %v778
      %v780 = vrot.slane %v219, 5
      %v781 = vrot.slane %v780, 4
      %v782 = vrot.slane %v220, 5
      %v783 = vsel %vm765, %v781, %v782
      %v784 = vrot.slane %v782, 4
      %v785 = vrot.slane %v221, 5
      %v786 = vsel %vm765, %v784, %v785
      %v787 = vrot.slane %v222, 5
      %v788 = vrot.slane %v787, 4
      %v789 = vrot.slane %v223, 5
      %v790 = vsel %vm765, %v788, %v789
      %v791 = vrot.slane %v789, 4
      %v792 = vrot.slane %v224, 5
      %v793 = vsel %vm765, %v791, %v792
      %v794 = vrot.slane %v225, 5
      %v795 = vrot.slane %v794, 4
      %v796 = vrot.slane %v226, 5
      %v797 = vsel %vm765, %v795, %v796
      %v798 = vrot.slane %v796, 4
      %v799 = vrot.slane %v227, 5
      %v800 = vsel %vm765, %v798, %v799
      %v801 = vrot.slane %v228, 5
      %v802 = vrot.slane %v801, 4
      %v803 = vrot.slane %v229, 5
      %v804 = vsel %vm765, %v802, %v803
      %v805 = vrot.slane %v803, 4
      %v806 = vrot.slane %v230, 5
      %v807 = vsel %vm765, %v805, %v806
      %v808 = vrot.slane %v231, 5
      %v809 = vrot.slane %v808, 4
      %v810 = vrot.slane %v232, 5
      %v811 = vsel %vm765, %v809, %v810
      %v812 = vrot.slane %v810, 4
      %v813 = vrot.slane %v233, 5
      %v814 = vsel %vm765, %v812, %v813
      %v815 = vrot.slane %v234, 5
      %v816 = vrot.slane %v815, 4
      %v817 = vrot.slane %v235, 5
      %v818 = vsel %vm765, %v816, %v817
      %v819 = vrot.slane %v817, 4
      %v820 = vrot.slane %v236, 5
      %v821 = vsel %vm765, %v819, %v820
      %s822 = scalar_lea.vmem %s1, 4
      %v823 = vld [vmem:[%s822] sm:$0x3]
      %v824 = vunpack.c.l.b16 %v769
      %v825 = vunpack.c.l.b16 %v772
      %v826 = vunpack.c.l.b16 %v776
      %v827 = vunpack.c.l.b16 %v779
      %v828 = vunpack.c.l.b16 %v783
      %v829 = vunpack.c.l.b16 %v786
      %v830 = vunpack.c.l.b16 %v790
      %v831 = vunpack.c.l.b16 %v793
      %v832 = vunpack.c.l.b16 %v797
      %v833 = vunpack.c.l.b16 %v800
      %v834 = vunpack.c.l.b16 %v804
      %v835 = vunpack.c.l.b16 %v807
      %v836 = vunpack.c.l.b16 %v811
      %v837 = vunpack.c.l.b16 %v814
      %v838 = vunpack.c.l.b16 %v818
      %v839 = vunpack.c.l.b16 %v821
      %v840 = vpack.c.b16 %v825, %v824
      %v841 = vpack.c.b16 %v827, %v826
      %v842 = vpack.c.b16 %v829, %v828
      %v843 = vpack.c.b16 %v831, %v830
      %v844 = vpack.c.b16 %v833, %v832
      %v845 = vpack.c.b16 %v835, %v834
      %v846 = vpack.c.b16 %v837, %v836
      %v847 = vpack.c.b16 %v839, %v838
      %v849 = vsel %vm465, %v840, 0
      %v852 = vsel %vm465, %v841, 0
      %v855 = vsel %vm465, %v842, 0
      %v858 = vsel %vm465, %v843, 0
      %v861 = vsel %vm465, %v844, 0
      %v864 = vsel %vm465, %v845, 0
      %v867 = vsel %vm465, %v846, 0
      %v870 = vsel %vm465, %v847, 0
      %v873 = vsel %vm490, %v823, 0
      %875 = vmatprep.subr.bf16.mxu0 0
      %876 = vmatpush1.bf16.msra.mxu0 %v873
      %877 = vmatprep.subr.bf16.mxu0 0
      %878 = vmatpush1.bf16.msra.mxu0 0
      %879 = vmatprep.subr.bf16.mxu0 0
      %880 = vmatpush1.bf16.msra.mxu0 0
      %881 = vmatprep.subr.bf16.mxu0 0
      %882 = vmatpush1.bf16.msra.mxu0 0
      %883 = vmatprep.subr.bf16.mxu0 0
      %884 = vmatpush1.bf16.msra.mxu0 0
      %885 = vmatprep.subr.bf16.mxu0 0
      %886 = vmatpush1.bf16.msra.mxu0 0
      %887 = vmatprep.subr.bf16.mxu0 0
      %888 = vmatpush1.bf16.msra.mxu0 0
      %889 = vmatprep.subr.bf16.mxu0 0
      %890 = vmatpush1.bf16.msra.mxu0 0
      %891 = vmatprep.subr.bf16.mxu0 0
      %892 = vmatpush1.bf16.msra.mxu0 0
      %893 = vmatprep.subr.bf16.mxu0 0
      %894 = vmatpush1.bf16.msra.mxu0 0
      %895 = vmatprep.subr.bf16.mxu0 0
      %896 = vmatpush1.bf16.msra.mxu0 0
      %897 = vmatprep.subr.bf16.mxu0 0
      %898 = vmatpush1.bf16.msra.mxu0 0
      %899 = vmatprep.subr.bf16.mxu0 0
      %900 = vmatpush1.bf16.msra.mxu0 0
      %901 = vmatprep.subr.bf16.mxu0 0
      %902 = vmatpush1.bf16.msra.mxu0 0
      %903 = vmatprep.subr.bf16.mxu0 0
      %904 = vmatpush1.bf16.msra.mxu0 0
      %905 = vmatprep.subr.bf16.mxu0 0
      %906 = vmatpush1.bf16.msra.mxu0 0
      %907 = vmatprep.mubr.bf16.mxu0 0
      %908 = vmatmul.mubr.bf16.gmra.mrb[0].mxu0 %v849
      %v909 = vpop.f32.mrb[0].mxu0
      %v910 = vadd.f32 0.0, %v909
      %v911 = vpop.f32.mrb[0].mxu0
      %v912 = vpop.f32.mrb[0].mxu0
      %v913 = vadd.f32 0.0, %v912
      %v914 = vpop.f32.mrb[0].mxu0
      %915 = vmatprep.mubr.bf16.mxu0 0
      %916 = vmatmul.mubr.bf16.gmra.mrb[0].mxu0 %v852
      %v917 = vpop.f32.mrb[0].mxu0
      %v918 = vadd.f32 0.0, %v917
      %v919 = vpop.f32.mrb[0].mxu0
      %v920 = vpop.f32.mrb[0].mxu0
      %v921 = vadd.f32 0.0, %v920
      %v922 = vpop.f32.mrb[0].mxu0
      %923 = vmatprep.mubr.bf16.mxu0 0
      %924 = vmatmul.mubr.bf16.gmra.mrb[0].mxu0 %v855
      %v925 = vpop.f32.mrb[0].mxu0
      %v926 = vadd.f32 0.0, %v925
      %v927 = vpop.f32.mrb[0].mxu0
      %v928 = vpop.f32.mrb[0].mxu0
      %v929 = vadd.f32 0.0, %v928
      %v930 = vpop.f32.mrb[0].mxu0
      %931 = vmatprep.mubr.bf16.mxu0 0
      %932 = vmatmul.mubr.bf16.gmra.mrb[0].mxu0 %v858
      %v933 = vpop.f32.mrb[0].mxu0
      %v934 = vadd.f32 0.0, %v933
      %v935 = vpop.f32.mrb[0].mxu0
      %v936 = vpop.f32.mrb[0].mxu0
      %v937 = vadd.f32 0.0, %v936
      %v938 = vpop.f32.mrb[0].mxu0
      %939 = vmatprep.mubr.bf16.mxu0 0
      %940 = vmatmul.mubr.bf16.gmra.mrb[0].mxu0 %v861
      %v941 = vpop.f32.mrb[0].mxu0
      %v942 = vadd.f32 0.0, %v941
      %v943 = vpop.f32.mrb[0].mxu0
      %v944 = vpop.f32.mrb[0].mxu0
      %v945 = vadd.f32 0.0, %v944
      %v946 = vpop.f32.mrb[0].mxu0
      %947 = vmatprep.mubr.bf16.mxu0 0
      %948 = vmatmul.mubr.bf16.gmra.mrb[0].mxu0 %v864
      %v949 = vpop.f32.mrb[0].mxu0
      %v950 = vadd.f32 0.0, %v949
      %v951 = vpop.f32.mrb[0].mxu0
      %v952 = vpop.f32.mrb[0].mxu0
      %v953 = vadd.f32 0.0, %v952
      %v954 = vpop.f32.mrb[0].mxu0
      %955 = vmatprep.mubr.bf16.mxu0 0
      %956 = vmatmul.mubr.bf16.gmra.mrb[0].mxu0 %v867
      %v957 = vpop.f32.mrb[0].mxu0
      %v958 = vadd.f32 0.0, %v957
      %v959 = vpop.f32.mrb[0].mxu0
      %v960 = vpop.f32.mrb[0].mxu0
      %v961 = vadd.f32 0.0, %v960
      %v962 = vpop.f32.mrb[0].mxu0
      %963 = vmatprep.mubr.bf16.mxu0 0
      %964 = vmatmul.mubr.bf16.gmra.mrb[0].mxu0 %v870
      %v965 = vpop.f32.mrb[0].mxu0
      %v966 = vadd.f32 0.0, %v965
      %v967 = vpop.f32.mrb[0].mxu0
      %v968 = vpop.f32.mrb[0].mxu0
      %v969 = vadd.f32 0.0, %v968
      %v970 = vpop.f32.mrb[0].mxu0
      %971 = vdwg.mxu0
      %v972 = vadd.f32 %v693, %v910
      %v973 = vadd.f32 %v696, %v913
      %v974 = vadd.f32 %v701, %v918
      %v975 = vadd.f32 %v704, %v921
      %v976 = vadd.f32 %v709, %v926
      %v977 = vadd.f32 %v712, %v929
      %v978 = vadd.f32 %v717, %v934
      %v979 = vadd.f32 %v720, %v937
      %v980 = vadd.f32 %v725, %v942
      %v981 = vadd.f32 %v728, %v945
      %v982 = vadd.f32 %v733, %v950
      %v983 = vadd.f32 %v736, %v953
      %v984 = vadd.f32 %v741, %v958
      %v985 = vadd.f32 %v744, %v961
      %v986 = vadd.f32 %v749, %v966
      %v987 = vadd.f32 %v752, %v969
      %s988 = scalar_lea.vmem %s1, 6
      %v989 = vld [vmem:[%s988] sm:$0x3]
      %v992 = vunpack.c.l.b16 %v237
      %v993 = vunpack.c.l.b16 %v238
      %v994 = vpack.c.b16 %v993, %v992
      %v996 = vsel %vm465, %v994, 0
      %v999 = vsel %vm490, %v989, 0
      %1001 = vmatprep.subr.bf16.mxu0 0
      %1002 = vmatpush1.bf16.msra.mxu0 %v999
      %1003 = vmatprep.subr.bf16.mxu0 0
      %1004 = vmatpush1.bf16.msra.mxu0 0
      %1005 = vmatprep.subr.bf16.mxu0 0
      %1006 = vmatpush1.bf16.msra.mxu0 0
      %1007 = vmatprep.subr.bf16.mxu0 0
      %1008 = vmatpush1.bf16.msra.mxu0 0
      %1009 = vmatprep.subr.bf16.mxu0 0
      %1010 = vmatpush1.bf16.msra.mxu0 0
      %1011 = vmatprep.subr.bf16.mxu0 0
      %1012 = vmatpush1.bf16.msra.mxu0 0
      %1013 = vmatprep.subr.bf16.mxu0 0
      %1014 = vmatpush1.bf16.msra.mxu0 0
      %1015 = vmatprep.subr.bf16.mxu0 0
      %1016 = vmatpush1.bf16.msra.mxu0 0
      %1017 = vmatprep.subr.bf16.mxu0 0
      %1018 = vmatpush1.bf16.msra.mxu0 0
      %1019 = vmatprep.subr.bf16.mxu0 0
      %1020 = vmatpush1.bf16.msra.mxu0 0
      %1021 = vmatprep.subr.bf16.mxu0 0
      %1022 = vmatpush1.bf16.msra.mxu0 0
      %1023 = vmatprep.subr.bf16.mxu0 0
      %1024 = vmatpush1.bf16.msra.mxu0 0
      %1025 = vmatprep.subr.bf16.mxu0 0
      %1026 = vmatpush1.bf16.msra.mxu0 0
      %1027 = vmatprep.subr.bf16.mxu0 0
      %1028 = vmatpush1.bf16.msra.mxu0 0
      %1029 = vmatprep.subr.bf16.mxu0 0
      %1030 = vmatpush1.bf16.msra.mxu0 0
      %1031 = vmatprep.subr.bf16.mxu0 0
      %1032 = vmatpush1.bf16.msra.mxu0 0
      %1033 = vmatprep.mubr.bf16.mxu0 0
      %1034 = vmatmul.mubr.bf16.gmra.mrb[0].mxu0 %v635
      %v1035 = vpop.f32.mrb[0].mxu0
      %v1036 = vadd.f32 0.0, %v1035
      %v1037 = vpop.f32.mrb[0].mxu0
      %v1038 = vpop.f32.mrb[0].mxu0
      %v1039 = vadd.f32 0.0, %v1038
      %v1040 = vpop.f32.mrb[0].mxu0
      %1041 = vmatprep.mubr.bf16.mxu0 0
      %1042 = vmatmul.mubr.bf16.gmra.mrb[0].mxu0 %v638
      %v1043 = vpop.f32.mrb[0].mxu0
      %v1044 = vadd.f32 0.0, %v1043
      %v1045 = vpop.f32.mrb[0].mxu0
      %v1046 = vpop.f32.mrb[0].mxu0
      %v1047 = vadd.f32 0.0, %v1046
      %v1048 = vpop.f32.mrb[0].mxu0
      %1049 = vmatprep.mubr.bf16.mxu0 0
      %1050 = vmatmul.mubr.bf16.gmra.mrb[0].mxu0 %v641
      %v1051 = vpop.f32.mrb[0].mxu0
      %v1052 = vadd.f32 0.0, %v1051
      %v1053 = vpop.f32.mrb[0].mxu0
      %v1054 = vpop.f32.mrb[0].mxu0
      %v1055 = vadd.f32 0.0, %v1054
      %v1056 = vpop.f32.mrb[0].mxu0
      %1057 = vmatprep.mubr.bf16.mxu0 0
      %1058 = vmatmul.mubr.bf16.gmra.mrb[0].mxu0 %v644
      %v1059 = vpop.f32.mrb[0].mxu0
      %v1060 = vadd.f32 0.0, %v1059
      %v1061 = vpop.f32.mrb[0].mxu0
      %v1062 = vpop.f32.mrb[0].mxu0
      %v1063 = vadd.f32 0.0, %v1062
      %v1064 = vpop.f32.mrb[0].mxu0
      %1065 = vmatprep.mubr.bf16.mxu0 0
      %1066 = vmatmul.mubr.bf16.gmra.mrb[0].mxu0 %v647
      %v1067 = vpop.f32.mrb[0].mxu0
      %v1068 = vadd.f32 0.0, %v1067
      %v1069 = vpop.f32.mrb[0].mxu0
      %v1070 = vpop.f32.mrb[0].mxu0
      %v1071 = vadd.f32 0.0, %v1070
      %v1072 = vpop.f32.mrb[0].mxu0
      %1073 = vmatprep.mubr.bf16.mxu0 0
      %1074 = vmatmul.mubr.bf16.gmra.mrb[0].mxu0 %v650
      %v1075 = vpop.f32.mrb[0].mxu0
      %v1076 = vadd.f32 0.0, %v1075
      %v1077 = vpop.f32.mrb[0].mxu0
      %v1078 = vpop.f32.mrb[0].mxu0
      %v1079 = vadd.f32 0.0, %v1078
      %v1080 = vpop.f32.mrb[0].mxu0
      %1081 = vmatprep.mubr.bf16.mxu0 0
      %1082 = vmatmul.mubr.bf16.gmra.mrb[0].mxu0 %v653
      %v1083 = vpop.f32.mrb[0].mxu0
      %v1084 = vadd.f32 0.0, %v1083
      %v1085 = vpop.f32.mrb[0].mxu0
      %v1086 = vpop.f32.mrb[0].mxu0
      %v1087 = vadd.f32 0.0, %v1086
      %v1088 = vpop.f32.mrb[0].mxu0
      %1089 = vmatprep.mubr.bf16.mxu0 0
      %1090 = vmatmul.mubr.bf16.gmra.mrb[0].mxu0 %v996
      %v1091 = vpop.f32.mrb[0].mxu0
      %v1092 = vadd.f32 0.0, %v1091
      %v1093 = vpop.f32.mrb[0].mxu0
      %v1094 = vpop.f32.mrb[0].mxu0
      %v1095 = vadd.f32 0.0, %v1094
      %v1096 = vpop.f32.mrb[0].mxu0
      %1097 = vdwg.mxu0
      %v1098 = vadd.f32 %v972, %v1036
      %v1099 = vadd.f32 %v973, %v1039
      %v1100 = vadd.f32 %v974, %v1044
      %v1101 = vadd.f32 %v975, %v1047
      %v1102 = vadd.f32 %v976, %v1052
      %v1103 = vadd.f32 %v977, %v1055
      %v1104 = vadd.f32 %v978, %v1060
      %v1105 = vadd.f32 %v979, %v1063
      %v1106 = vadd.f32 %v980, %v1068
      %v1107 = vadd.f32 %v981, %v1071
      %v1108 = vadd.f32 %v982, %v1076
      %v1109 = vadd.f32 %v983, %v1079
      %v1110 = vadd.f32 %v984, %v1084
      %v1111 = vadd.f32 %v985, %v1087
      %v1112 = vadd.f32 %v986, %v1092
      %v1113 = vadd.f32 %v987, %v1095
      %v1115 = vshrl.u32 %v237, 16
      %v1117 = vrot.slane %v1115, 4
      %v1118 = vshll.u32 %v237, 16
      %v1120 = vrot.slane %v1118, 5
      %v1121 = vor.u32 %v1117, %v1120
      %v1122 = vrot.slane %v1121, 4
      %v1124 = vshll.u32 %v238, 16
      %v1126 = vrot.slane %v1124, 5
      %v1127 = vsel %vm246, %v1122, %v1126
      %v1128 = vshrl.u32 %v238, 16
      %v1130 = vrot.slane %v1128, 4
      %v1131 = vor.u32 %v1130, %v1126
      %v1132 = vrot.slane %v1131, 4
      %v1134 = vshll.u32 %v239, 16
      %v1136 = vrot.slane %v1134, 5
      %v1137 = vsel %vm246, %v1132, %v1136
      %s1138 = scalar_lea.vmem %s1, 8
      %v1139 = vld [vmem:[%s1138] sm:$0x3]
      %v1140 = vunpack.c.l.b16 %v1127
      %v1141 = vunpack.c.l.b16 %v1137
      %v1142 = vpack.c.b16 %v1141, %v1140
      %v1144 = vsel %vm465, %v1142, 0
      %v1147 = vsel %vm490, %v1139, 0
      %1149 = vmatprep.subr.bf16.mxu0 0
      %1150 = vmatpush1.bf16.msra.mxu0 %v1147
      %1151 = vmatprep.subr.bf16.mxu0 0
      %1152 = vmatpush1.bf16.msra.mxu0 0
      %1153 = vmatprep.subr.bf16.mxu0 0
      %1154 = vmatpush1.bf16.msra.mxu0 0
      %1155 = vmatprep.subr.bf16.mxu0 0
      %1156 = vmatpush1.bf16.msra.mxu0 0
      %1157 = vmatprep.subr.bf16.mxu0 0
      %1158 = vmatpush1.bf16.msra.mxu0 0
      %1159 = vmatprep.subr.bf16.mxu0 0
      %1160 = vmatpush1.bf16.msra.mxu0 0
      %1161 = vmatprep.subr.bf16.mxu0 0
      %1162 = vmatpush1.bf16.msra.mxu0 0
      %1163 = vmatprep.subr.bf16.mxu0 0
      %1164 = vmatpush1.bf16.msra.mxu0 0
      %1165 = vmatprep.subr.bf16.mxu0 0
      %1166 = vmatpush1.bf16.msra.mxu0 0
      %1167 = vmatprep.subr.bf16.mxu0 0
      %1168 = vmatpush1.bf16.msra.mxu0 0
      %1169 = vmatprep.subr.bf16.mxu0 0
      %1170 = vmatpush1.bf16.msra.mxu0 0
      %1171 = vmatprep.subr.bf16.mxu0 0
      %1172 = vmatpush1.bf16.msra.mxu0 0
      %1173 = vmatprep.subr.bf16.mxu0 0
      %1174 = vmatpush1.bf16.msra.mxu0 0
      %1175 = vmatprep.subr.bf16.mxu0 0
      %1176 = vmatpush1.bf16.msra.mxu0 0
      %1177 = vmatprep.subr.bf16.mxu0 0
      %1178 = vmatpush1.bf16.msra.mxu0 0
      %1179 = vmatprep.subr.bf16.mxu0 0
      %1180 = vmatpush1.bf16.msra.mxu0 0
      %1181 = vmatprep.mubr.bf16.mxu0 0
      %1182 = vmatmul.mubr.bf16.gmra.mrb[0].mxu0 %v470
      %v1183 = vpop.f32.mrb[0].mxu0
      %v1184 = vadd.f32 0.0, %v1183
      %v1185 = vpop.f32.mrb[0].mxu0
      %v1186 = vpop.f32.mrb[0].mxu0
      %v1187 = vadd.f32 0.0, %v1186
      %v1188 = vpop.f32.mrb[0].mxu0
      %1189 = vmatprep.mubr.bf16.mxu0 0
      %1190 = vmatmul.mubr.bf16.gmra.mrb[0].mxu0 %v473
      %v1191 = vpop.f32.mrb[0].mxu0
      %v1192 = vadd.f32 0.0, %v1191
      %v1193 = vpop.f32.mrb[0].mxu0
      %v1194 = vpop.f32.mrb[0].mxu0
      %v1195 = vadd.f32 0.0, %v1194
      %v1196 = vpop.f32.mrb[0].mxu0
      %1197 = vmatprep.mubr.bf16.mxu0 0
      %1198 = vmatmul.mubr.bf16.gmra.mrb[0].mxu0 %v476
      %v1199 = vpop.f32.mrb[0].mxu0
      %v1200 = vadd.f32 0.0, %v1199
      %v1201 = vpop.f32.mrb[0].mxu0
      %v1202 = vpop.f32.mrb[0].mxu0
      %v1203 = vadd.f32 0.0, %v1202
      %v1204 = vpop.f32.mrb[0].mxu0
      %1205 = vmatprep.mubr.bf16.mxu0 0
      %1206 = vmatmul.mubr.bf16.gmra.mrb[0].mxu0 %v479
      %v1207 = vpop.f32.mrb[0].mxu0
      %v1208 = vadd.f32 0.0, %v1207
      %v1209 = vpop.f32.mrb[0].mxu0
      %v1210 = vpop.f32.mrb[0].mxu0
      %v1211 = vadd.f32 0.0, %v1210
      %v1212 = vpop.f32.mrb[0].mxu0
      %1213 = vmatprep.mubr.bf16.mxu0 0
      %1214 = vmatmul.mubr.bf16.gmra.mrb[0].mxu0 %v482
      %v1215 = vpop.f32.mrb[0].mxu0
      %v1216 = vadd.f32 0.0, %v1215
      %v1217 = vpop.f32.mrb[0].mxu0
      %v1218 = vpop.f32.mrb[0].mxu0
      %v1219 = vadd.f32 0.0, %v1218
      %v1220 = vpop.f32.mrb[0].mxu0
      %1221 = vmatprep.mubr.bf16.mxu0 0
      %1222 = vmatmul.mubr.bf16.gmra.mrb[0].mxu0 %v485
      %v1223 = vpop.f32.mrb[0].mxu0
      %v1224 = vadd.f32 0.0, %v1223
      %v1225 = vpop.f32.mrb[0].mxu0
      %v1226 = vpop.f32.mrb[0].mxu0
      %v1227 = vadd.f32 0.0, %v1226
      %v1228 = vpop.f32.mrb[0].mxu0
      %1229 = vmatprep.mubr.bf16.mxu0 0
      %1230 = vmatmul.mubr.bf16.gmra.mrb[0].mxu0 %v488
      %v1231 = vpop.f32.mrb[0].mxu0
      %v1232 = vadd.f32 0.0, %v1231
      %v1233 = vpop.f32.mrb[0].mxu0
      %v1234 = vpop.f32.mrb[0].mxu0
      %v1235 = vadd.f32 0.0, %v1234
      %v1236 = vpop.f32.mrb[0].mxu0
      %1237 = vmatprep.mubr.bf16.mxu0 0
      %1238 = vmatmul.mubr.bf16.gmra.mrb[0].mxu0 %v1144
      %v1239 = vpop.f32.mrb[0].mxu0
      %v1240 = vadd.f32 0.0, %v1239
      %v1241 = vpop.f32.mrb[0].mxu0
      %v1242 = vpop.f32.mrb[0].mxu0
      %v1243 = vadd.f32 0.0, %v1242
      %v1244 = vpop.f32.mrb[0].mxu0
      %1245 = vdwg.mxu0
      %v1246 = vadd.f32 %v1098, %v1184
      %v1247 = vadd.f32 %v1099, %v1187
      %v1248 = vadd.f32 %v1100, %v1192
      %v1249 = vadd.f32 %v1101, %v1195
      %v1250 = vadd.f32 %v1102, %v1200
      %v1251 = vadd.f32 %v1103, %v1203
      %v1252 = vadd.f32 %v1104, %v1208
      %v1253 = vadd.f32 %v1105, %v1211
      %v1254 = vadd.f32 %v1106, %v1216
      %v1255 = vadd.f32 %v1107, %v1219
      %v1256 = vadd.f32 %v1108, %v1224
      %v1257 = vadd.f32 %v1109, %v1227
      %v1258 = vadd.f32 %v1110, %v1232
      %v1259 = vadd.f32 %v1111, %v1235
      %v1260 = vadd.f32 %v1112, %v1240
      %v1261 = vadd.f32 %v1113, %v1243
      %v1263 = vrot.slane %v237, 5
      %v1264 = vrot.slane %v1263, 4
      %v1265 = vrot.slane %v238, 5
      %v1266 = vsel %vm765, %v1264, %v1265
      %v1267 = vrot.slane %v1265, 4
      %v1268 = vrot.slane %v239, 5
      %v1269 = vsel %vm765, %v1267, %v1268
      %s1270 = scalar_lea.vmem %s1, 10
      %v1271 = vld [vmem:[%s1270] sm:$0x3]
      %v1272 = vunpack.c.l.b16 %v1266
      %v1273 = vunpack.c.l.b16 %v1269
      %v1274 = vpack.c.b16 %v1273, %v1272
      %v1276 = vsel %vm465, %v1274, 0
      %v1279 = vsel %vm490, %v1271, 0
      %1281 = vmatprep.subr.bf16.mxu0 0
      %1282 = vmatpush1.bf16.msra.mxu0 %v1279
      %1283 = vmatprep.subr.bf16.mxu0 0
      %1284 = vmatpush1.bf16.msra.mxu0 0
      %1285 = vmatprep.subr.bf16.mxu0 0
      %1286 = vmatpush1.bf16.msra.mxu0 0
      %1287 = vmatprep.subr.bf16.mxu0 0
      %1288 = vmatpush1.bf16.msra.mxu0 0
      %1289 = vmatprep.subr.bf16.mxu0 0
      %1290 = vmatpush1.bf16.msra.mxu0 0
      %1291 = vmatprep.subr.bf16.mxu0 0
      %1292 = vmatpush1.bf16.msra.mxu0 0
      %1293 = vmatprep.subr.bf16.mxu0 0
      %1294 = vmatpush1.bf16.msra.mxu0 0
      %1295 = vmatprep.subr.bf16.mxu0 0
      %1296 = vmatpush1.bf16.msra.mxu0 0
      %1297 = vmatprep.subr.bf16.mxu0 0
      %1298 = vmatpush1.bf16.msra.mxu0 0
      %1299 = vmatprep.subr.bf16.mxu0 0
      %1300 = vmatpush1.bf16.msra.mxu0 0
      %1301 = vmatprep.subr.bf16.mxu0 0
      %1302 = vmatpush1.bf16.msra.mxu0 0
      %1303 = vmatprep.subr.bf16.mxu0 0
      %1304 = vmatpush1.bf16.msra.mxu0 0
      %1305 = vmatprep.subr.bf16.mxu0 0
      %1306 = vmatpush1.bf16.msra.mxu0 0
      %1307 = vmatprep.subr.bf16.mxu0 0
      %1308 = vmatpush1.bf16.msra.mxu0 0
      %1309 = vmatprep.subr.bf16.mxu0 0
      %1310 = vmatpush1.bf16.msra.mxu0 0
      %1311 = vmatprep.subr.bf16.mxu0 0
      %1312 = vmatpush1.bf16.msra.mxu0 0
      %1313 = vmatprep.mubr.bf16.mxu0 0
      %1314 = vmatmul.mubr.bf16.gmra.mrb[0].mxu0 %v852
      %v1315 = vpop.f32.mrb[0].mxu0
      %v1316 = vadd.f32 0.0, %v1315
      %v1317 = vpop.f32.mrb[0].mxu0
      %v1318 = vpop.f32.mrb[0].mxu0
      %v1319 = vadd.f32 0.0, %v1318
      %v1320 = vpop.f32.mrb[0].mxu0
      %1321 = vmatprep.mubr.bf16.mxu0 0
      %1322 = vmatmul.mubr.bf16.gmra.mrb[0].mxu0 %v855
      %v1323 = vpop.f32.mrb[0].mxu0
      %v1324 = vadd.f32 0.0, %v1323
      %v1325 = vpop.f32.mrb[0].mxu0
      %v1326 = vpop.f32.mrb[0].mxu0
      %v1327 = vadd.f32 0.0, %v1326
      %v1328 = vpop.f32.mrb[0].mxu0
      %1329 = vmatprep.mubr.bf16.mxu0 0
      %1330 = vmatmul.mubr.bf16.gmra.mrb[0].mxu0 %v858
      %v1331 = vpop.f32.mrb[0].mxu0
      %v1332 = vadd.f32 0.0, %v1331
      %v1333 = vpop.f32.mrb[0].mxu0
      %v1334 = vpop.f32.mrb[0].mxu0
      %v1335 = vadd.f32 0.0, %v1334
      %v1336 = vpop.f32.mrb[0].mxu0
      %1337 = vmatprep.mubr.bf16.mxu0 0
      %1338 = vmatmul.mubr.bf16.gmra.mrb[0].mxu0 %v861
      %v1339 = vpop.f32.mrb[0].mxu0
      %v1340 = vadd.f32 0.0, %v1339
      %v1341 = vpop.f32.mrb[0].mxu0
      %v1342 = vpop.f32.mrb[0].mxu0
      %v1343 = vadd.f32 0.0, %v1342
      %v1344 = vpop.f32.mrb[0].mxu0
      %1345 = vmatprep.mubr.bf16.mxu0 0
      %1346 = vmatmul.mubr.bf16.gmra.mrb[0].mxu0 %v864
      %v1347 = vpop.f32.mrb[0].mxu0
      %v1348 = vadd.f32 0.0, %v1347
      %v1349 = vpop.f32.mrb[0].mxu0
      %v1350 = vpop.f32.mrb[0].mxu0
      %v1351 = vadd.f32 0.0, %v1350
      %v1352 = vpop.f32.mrb[0].mxu0
      %1353 = vmatprep.mubr.bf16.mxu0 0
      %1354 = vmatmul.mubr.bf16.gmra.mrb[0].mxu0 %v867
      %v1355 = vpop.f32.mrb[0].mxu0
      %v1356 = vadd.f32 0.0, %v1355
      %v1357 = vpop.f32.mrb[0].mxu0
      %v1358 = vpop.f32.mrb[0].mxu0
      %v1359 = vadd.f32 0.0, %v1358
      %v1360 = vpop.f32.mrb[0].mxu0
      %1361 = vmatprep.mubr.bf16.mxu0 0
      %1362 = vmatmul.mubr.bf16.gmra.mrb[0].mxu0 %v870
      %v1363 = vpop.f32.mrb[0].mxu0
      %v1364 = vadd.f32 0.0, %v1363
      %v1365 = vpop.f32.mrb[0].mxu0
      %v1366 = vpop.f32.mrb[0].mxu0
      %v1367 = vadd.f32 0.0, %v1366
      %v1368 = vpop.f32.mrb[0].mxu0
      %1369 = vmatprep.mubr.bf16.mxu0 0
      %1370 = vmatmul.mubr.bf16.gmra.mrb[0].mxu0 %v1276
      %v1371 = vpop.f32.mrb[0].mxu0
      %v1372 = vadd.f32 0.0, %v1371
      %v1373 = vpop.f32.mrb[0].mxu0
      %v1374 = vpop.f32.mrb[0].mxu0
      %v1375 = vadd.f32 0.0, %v1374
      %v1376 = vpop.f32.mrb[0].mxu0
      %1377 = vdwg.mxu0
      %v1378 = vadd.f32 %v1246, %v1316
      %v1379 = vadd.f32 %v1247, %v1319
      %v1380 = vadd.f32 %v1248, %v1324
      %v1381 = vadd.f32 %v1249, %v1327
      %v1382 = vadd.f32 %v1250, %v1332
      %v1383 = vadd.f32 %v1251, %v1335
      %v1384 = vadd.f32 %v1252, %v1340
      %v1385 = vadd.f32 %v1253, %v1343
      %v1386 = vadd.f32 %v1254, %v1348
      %v1387 = vadd.f32 %v1255, %v1351
      %v1388 = vadd.f32 %v1256, %v1356
      %v1389 = vadd.f32 %v1257, %v1359
      %v1390 = vadd.f32 %v1258, %v1364
      %v1391 = vadd.f32 %v1259, %v1367
      %v1392 = vadd.f32 %v1260, %v1372
      %v1393 = vadd.f32 %v1261, %v1375
      %s1394 = scalar_lea.vmem %s1, 12
      %v1395 = vld [vmem:[%s1394] sm:$0x3]
      %v1398 = vunpack.c.l.b16 %v240
      %v1399 = vunpack.c.l.b16 %v241
      %v1400 = vpack.c.b16 %v1399, %v1398
      %v1402 = vsel %vm465, %v1400, 0
      %v1405 = vsel %vm490, %v1395, 0
      %1407 = vmatprep.subr.bf16.mxu0 0
      %1408 = vmatpush1.bf16.msra.mxu0 %v1405
      %1409 = vmatprep.subr.bf16.mxu0 0
      %1410 = vmatpush1.bf16.msra.mxu0 0
      %1411 = vmatprep.subr.bf16.mxu0 0
      %1412 = vmatpush1.bf16.msra.mxu0 0
      %1413 = vmatprep.subr.bf16.mxu0 0
      %1414 = vmatpush1.bf16.msra.mxu0 0
      %1415 = vmatprep.subr.bf16.mxu0 0
      %1416 = vmatpush1.bf16.msra.mxu0 0
      %1417 = vmatprep.subr.bf16.mxu0 0
      %1418 = vmatpush1.bf16.msra.mxu0 0
      %1419 = vmatprep.subr.bf16.mxu0 0
      %1420 = vmatpush1.bf16.msra.mxu0 0
      %1421 = vmatprep.subr.bf16.mxu0 0
      %1422 = vmatpush1.bf16.msra.mxu0 0
      %1423 = vmatprep.subr.bf16.mxu0 0
      %1424 = vmatpush1.bf16.msra.mxu0 0
      %1425 = vmatprep.subr.bf16.mxu0 0
      %1426 = vmatpush1.bf16.msra.mxu0 0
      %1427 = vmatprep.subr.bf16.mxu0 0
      %1428 = vmatpush1.bf16.msra.mxu0 0
      %1429 = vmatprep.subr.bf16.mxu0 0
      %1430 = vmatpush1.bf16.msra.mxu0 0
      %1431 = vmatprep.subr.bf16.mxu0 0
      %1432 = vmatpush1.bf16.msra.mxu0 0
      %1433 = vmatprep.subr.bf16.mxu0 0
      %1434 = vmatpush1.bf16.msra.mxu0 0
      %1435 = vmatprep.subr.bf16.mxu0 0
      %1436 = vmatpush1.bf16.msra.mxu0 0
      %1437 = vmatprep.subr.bf16.mxu0 0
      %1438 = vmatpush1.bf16.msra.mxu0 0
      %1439 = vmatprep.mubr.bf16.mxu0 0
      %1440 = vmatmul.mubr.bf16.gmra.mrb[0].mxu0 %v638
      %v1441 = vpop.f32.mrb[0].mxu0
      %v1442 = vadd.f32 0.0, %v1441
      %v1443 = vpop.f32.mrb[0].mxu0
      %v1444 = vpop.f32.mrb[0].mxu0
      %v1445 = vadd.f32 0.0, %v1444
      %v1446 = vpop.f32.mrb[0].mxu0
      %1447 = vmatprep.mubr.bf16.mxu0 0
      %1448 = vmatmul.mubr.bf16.gmra.mrb[0].mxu0 %v641
      %v1449 = vpop.f32.mrb[0].mxu0
      %v1450 = vadd.f32 0.0, %v1449
      %v1451 = vpop.f32.mrb[0].mxu0
      %v1452 = vpop.f32.mrb[0].mxu0
      %v1453 = vadd.f32 0.0, %v1452
      %v1454 = vpop.f32.mrb[0].mxu0
      %1455 = vmatprep.mubr.bf16.mxu0 0
      %1456 = vmatmul.mubr.bf16.gmra.mrb[0].mxu0 %v644
      %v1457 = vpop.f32.mrb[0].mxu0
      %v1458 = vadd.f32 0.0, %v1457
      %v1459 = vpop.f32.mrb[0].mxu0
      %v1460 = vpop.f32.mrb[0].mxu0
      %v1461 = vadd.f32 0.0, %v1460
      %v1462 = vpop.f32.mrb[0].mxu0
      %1463 = vmatprep.mubr.bf16.mxu0 0
      %1464 = vmatmul.mubr.bf16.gmra.mrb[0].mxu0 %v647
      %v1465 = vpop.f32.mrb[0].mxu0
      %v1466 = vadd.f32 0.0, %v1465
      %v1467 = vpop.f32.mrb[0].mxu0
      %v1468 = vpop.f32.mrb[0].mxu0
      %v1469 = vadd.f32 0.0, %v1468
      %v1470 = vpop.f32.mrb[0].mxu0
      %1471 = vmatprep.mubr.bf16.mxu0 0
      %1472 = vmatmul.mubr.bf16.gmra.mrb[0].mxu0 %v650
      %v1473 = vpop.f32.mrb[0].mxu0
      %v1474 = vadd.f32 0.0, %v1473
      %v1475 = vpop.f32.mrb[0].mxu0
      %v1476 = vpop.f32.mrb[0].mxu0
      %v1477 = vadd.f32 0.0, %v1476
      %v1478 = vpop.f32.mrb[0].mxu0
      %1479 = vmatprep.mubr.bf16.mxu0 0
      %1480 = vmatmul.mubr.bf16.gmra.mrb[0].mxu0 %v653
      %v1481 = vpop.f32.mrb[0].mxu0
      %v1482 = vadd.f32 0.0, %v1481
      %v1483 = vpop.f32.mrb[0].mxu0
      %v1484 = vpop.f32.mrb[0].mxu0
      %v1485 = vadd.f32 0.0, %v1484
      %v1486 = vpop.f32.mrb[0].mxu0
      %1487 = vmatprep.mubr.bf16.mxu0 0
      %1488 = vmatmul.mubr.bf16.gmra.mrb[0].mxu0 %v996
      %v1489 = vpop.f32.mrb[0].mxu0
      %v1490 = vadd.f32 0.0, %v1489
      %v1491 = vpop.f32.mrb[0].mxu0
      %v1492 = vpop.f32.mrb[0].mxu0
      %v1493 = vadd.f32 0.0, %v1492
      %v1494 = vpop.f32.mrb[0].mxu0
      %1495 = vmatprep.mubr.bf16.mxu0 0
      %1496 = vmatmul.mubr.bf16.gmra.mrb[0].mxu0 %v1402
      %v1497 = vpop.f32.mrb[0].mxu0
      %v1498 = vadd.f32 0.0, %v1497
      %v1499 = vpop.f32.mrb[0].mxu0
      %v1500 = vpop.f32.mrb[0].mxu0
      %v1501 = vadd.f32 0.0, %v1500
      %v1502 = vpop.f32.mrb[0].mxu0
      %1503 = vdwg.mxu0
      %v1504 = vadd.f32 %v1378, %v1442
      %v1505 = vadd.f32 %v1379, %v1445
      %v1506 = vadd.f32 %v1380, %v1450
      %v1507 = vadd.f32 %v1381, %v1453
      %v1508 = vadd.f32 %v1382, %v1458
      %v1509 = vadd.f32 %v1383, %v1461
      %v1510 = vadd.f32 %v1384, %v1466
      %v1511 = vadd.f32 %v1385, %v1469
      %v1512 = vadd.f32 %v1386, %v1474
      %v1513 = vadd.f32 %v1387, %v1477
      %v1514 = vadd.f32 %v1388, %v1482
      %v1515 = vadd.f32 %v1389, %v1485
      %v1516 = vadd.f32 %v1390, %v1490
      %v1517 = vadd.f32 %v1391, %v1493
      %v1518 = vadd.f32 %v1392, %v1498
      %v1519 = vadd.f32 %v1393, %v1501
      %v1521 = vshrl.u32 %v240, 16
      %v1523 = vrot.slane %v1521, 4
      %v1524 = vshll.u32 %v240, 16
      %v1526 = vrot.slane %v1524, 5
      %v1527 = vor.u32 %v1523, %v1526
      %v1528 = vrot.slane %v1527, 4
      %v1530 = vshll.u32 %v241, 16
      %v1532 = vrot.slane %v1530, 5
      %v1533 = vsel %vm246, %v1528, %v1532
      %v1534 = vshrl.u32 %v241, 16
      %v1536 = vrot.slane %v1534, 4
      %v1537 = vor.u32 %v1536, %v1532
      %v1538 = vrot.slane %v1537, 4
      %v1540 = vshll.u32 %v242, 16
      %v1542 = vrot.slane %v1540, 5
      %v1543 = vsel %vm246, %v1538, %v1542
      %s1544 = scalar_lea.vmem %s1, 14
      %v1545 = vld [vmem:[%s1544] sm:$0x3]
      %v1546 = vunpack.c.l.b16 %v1533
      %v1547 = vunpack.c.l.b16 %v1543
      %v1548 = vpack.c.b16 %v1547, %v1546
      %v1550 = vsel %vm465, %v1548, 0
      %v1553 = vsel %vm490, %v1545, 0
      %1555 = vmatprep.subr.bf16.mxu0 0
      %1556 = vmatpush1.bf16.msra.mxu0 %v1553
      %1557 = vmatprep.subr.bf16.mxu0 0
      %1558 = vmatpush1.bf16.msra.mxu0 0
      %1559 = vmatprep.subr.bf16.mxu0 0
      %1560 = vmatpush1.bf16.msra.mxu0 0
      %1561 = vmatprep.subr.bf16.mxu0 0
      %1562 = vmatpush1.bf16.msra.mxu0 0
      %1563 = vmatprep.subr.bf16.mxu0 0
      %1564 = vmatpush1.bf16.msra.mxu0 0
      %1565 = vmatprep.subr.bf16.mxu0 0
      %1566 = vmatpush1.bf16.msra.mxu0 0
      %1567 = vmatprep.subr.bf16.mxu0 0
      %1568 = vmatpush1.bf16.msra.mxu0 0
      %1569 = vmatprep.subr.bf16.mxu0 0
      %1570 = vmatpush1.bf16.msra.mxu0 0
      %1571 = vmatprep.subr.bf16.mxu0 0
      %1572 = vmatpush1.bf16.msra.mxu0 0
      %1573 = vmatprep.subr.bf16.mxu0 0
      %1574 = vmatpush1.bf16.msra.mxu0 0
      %1575 = vmatprep.subr.bf16.mxu0 0
      %1576 = vmatpush1.bf16.msra.mxu0 0
      %1577 = vmatprep.subr.bf16.mxu0 0
      %1578 = vmatpush1.bf16.msra.mxu0 0
      %1579 = vmatprep.subr.bf16.mxu0 0
      %1580 = vmatpush1.bf16.msra.mxu0 0
      %1581 = vmatprep.subr.bf16.mxu0 0
      %1582 = vmatpush1.bf16.msra.mxu0 0
      %1583 = vmatprep.subr.bf16.mxu0 0
      %1584 = vmatpush1.bf16.msra.mxu0 0
      %1585 = vmatprep.subr.bf16.mxu0 0
      %1586 = vmatpush1.bf16.msra.mxu0 0
      %1587 = vmatprep.mubr.bf16.mxu0 0
      %1588 = vmatmul.mubr.bf16.gmra.mrb[0].mxu0 %v473
      %v1589 = vpop.f32.mrb[0].mxu0
      %v1590 = vadd.f32 0.0, %v1589
      %v1591 = vpop.f32.mrb[0].mxu0
      %v1592 = vpop.f32.mrb[0].mxu0
      %v1593 = vadd.f32 0.0, %v1592
      %v1594 = vpop.f32.mrb[0].mxu0
      %1595 = vmatprep.mubr.bf16.mxu0 0
      %1596 = vmatmul.mubr.bf16.gmra.mrb[0].mxu0 %v476
      %v1597 = vpop.f32.mrb[0].mxu0
      %v1598 = vadd.f32 0.0, %v1597
      %v1599 = vpop.f32.mrb[0].mxu0
      %v1600 = vpop.f32.mrb[0].mxu0
      %v1601 = vadd.f32 0.0, %v1600
      %v1602 = vpop.f32.mrb[0].mxu0
      %1603 = vmatprep.mubr.bf16.mxu0 0
      %1604 = vmatmul.mubr.bf16.gmra.mrb[0].mxu0 %v479
      %v1605 = vpop.f32.mrb[0].mxu0
      %v1606 = vadd.f32 0.0, %v1605
      %v1607 = vpop.f32.mrb[0].mxu0
      %v1608 = vpop.f32.mrb[0].mxu0
      %v1609 = vadd.f32 0.0, %v1608
      %v1610 = vpop.f32.mrb[0].mxu0
      %1611 = vmatprep.mubr.bf16.mxu0 0
      %1612 = vmatmul.mubr.bf16.gmra.mrb[0].mxu0 %v482
      %v1613 = vpop.f32.mrb[0].mxu0
      %v1614 = vadd.f32 0.0, %v1613
      %v1615 = vpop.f32.mrb[0].mxu0
      %v1616 = vpop.f32.mrb[0].mxu0
      %v1617 = vadd.f32 0.0, %v1616
      %v1618 = vpop.f32.mrb[0].mxu0
      %1619 = vmatprep.mubr.bf16.mxu0 0
      %1620 = vmatmul.mubr.bf16.gmra.mrb[0].mxu0 %v485
      %v1621 = vpop.f32.mrb[0].mxu0
      %v1622 = vadd.f32 0.0, %v1621
      %v1623 = vpop.f32.mrb[0].mxu0
      %v1624 = vpop.f32.mrb[0].mxu0
      %v1625 = vadd.f32 0.0, %v1624
      %v1626 = vpop.f32.mrb[0].mxu0
      %1627 = vmatprep.mubr.bf16.mxu0 0
      %1628 = vmatmul.mubr.bf16.gmra.mrb[0].mxu0 %v488
      %v1629 = vpop.f32.mrb[0].mxu0
      %v1630 = vadd.f32 0.0, %v1629
      %v1631 = vpop.f32.mrb[0].mxu0
      %v1632 = vpop.f32.mrb[0].mxu0
      %v1633 = vadd.f32 0.0, %v1632
      %v1634 = vpop.f32.mrb[0].mxu0
      %1635 = vmatprep.mubr.bf16.mxu0 0
      %1636 = vmatmul.mubr.bf16.gmra.mrb[0].mxu0 %v1144
      %v1637 = vpop.f32.mrb[0].mxu0
      %v1638 = vadd.f32 0.0, %v1637
      %v1639 = vpop.f32.mrb[0].mxu0
      %v1640 = vpop.f32.mrb[0].mxu0
      %v1641 = vadd.f32 0.0, %v1640
      %v1642 = vpop.f32.mrb[0].mxu0
      %1643 = vmatprep.mubr.bf16.mxu0 0
      %1644 = vmatmul.mubr.bf16.gmra.mrb[0].mxu0 %v1550
      %v1645 = vpop.f32.mrb[0].mxu0
      %v1646 = vadd.f32 0.0, %v1645
      %v1647 = vpop.f32.mrb[0].mxu0
      %v1648 = vpop.f32.mrb[0].mxu0
      %v1649 = vadd.f32 0.0, %v1648
      %v1650 = vpop.f32.mrb[0].mxu0
      %1651 = vdwg.mxu0
      %v1652 = vadd.f32 %v1504, %v1590
      %v1653 = vadd.f32 %v1505, %v1593
      %v1654 = vadd.f32 %v1506, %v1598
      %v1655 = vadd.f32 %v1507, %v1601
      %v1656 = vadd.f32 %v1508, %v1606
      %v1657 = vadd.f32 %v1509, %v1609
      %v1658 = vadd.f32 %v1510, %v1614
      %v1659 = vadd.f32 %v1511, %v1617
      %v1660 = vadd.f32 %v1512, %v1622
      %v1661 = vadd.f32 %v1513, %v1625
      %v1662 = vadd.f32 %v1514, %v1630
      %v1663 = vadd.f32 %v1515, %v1633
      %v1664 = vadd.f32 %v1516, %v1638
      %v1665 = vadd.f32 %v1517, %v1641
      %v1666 = vadd.f32 %v1518, %v1646
      %v1667 = vadd.f32 %v1519, %v1649
      %v1669 = vrot.slane %v240, 5
      %v1670 = vrot.slane %v1669, 4
      %v1671 = vrot.slane %v241, 5
      %v1672 = vsel %vm765, %v1670, %v1671
      %v1673 = vrot.slane %v1671, 4
      %v1674 = vrot.slane %v242, 5
      %v1675 = vsel %vm765, %v1673, %v1674
      %s1676 = scalar_lea.vmem %s1, 16
      %v1677 = vld [vmem:[%s1676] sm:$0x3]
      %v1678 = vunpack.c.l.b16 %v1672
      %v1679 = vunpack.c.l.b16 %v1675
      %v1680 = vpack.c.b16 %v1679, %v1678
      %v1682 = vsel %vm465, %v1680, 0
      %v1685 = vsel %vm490, %v1677, 0
      %1687 = vmatprep.subr.bf16.mxu0 0
      %1688 = vmatpush1.bf16.msra.mxu0 %v1685
      %1689 = vmatprep.subr.bf16.mxu0 0
      %1690 = vmatpush1.bf16.msra.mxu0 0
      %1691 = vmatprep.subr.bf16.mxu0 0
      %1692 = vmatpush1.bf16.msra.mxu0 0
      %1693 = vmatprep.subr.bf16.mxu0 0
      %1694 = vmatpush1.bf16.msra.mxu0 0
      %1695 = vmatprep.subr.bf16.mxu0 0
      %1696 = vmatpush1.bf16.msra.mxu0 0
      %1697 = vmatprep.subr.bf16.mxu0 0
      %1698 = vmatpush1.bf16.msra.mxu0 0
      %1699 = vmatprep.subr.bf16.mxu0 0
      %1700 = vmatpush1.bf16.msra.mxu0 0
      %1701 = vmatprep.subr.bf16.mxu0 0
      %1702 = vmatpush1.bf16.msra.mxu0 0
      %1703 = vmatprep.subr.bf16.mxu0 0
      %1704 = vmatpush1.bf16.msra.mxu0 0
      %1705 = vmatprep.subr.bf16.mxu0 0
      %1706 = vmatpush1.bf16.msra.mxu0 0
      %1707 = vmatprep.subr.bf16.mxu0 0
      %1708 = vmatpush1.bf16.msra.mxu0 0
      %1709 = vmatprep.subr.bf16.mxu0 0
      %1710 = vmatpush1.bf16.msra.mxu0 0
      %1711 = vmatprep.subr.bf16.mxu0 0
      %1712 = vmatpush1.bf16.msra.mxu0 0
      %1713 = vmatprep.subr.bf16.mxu0 0
      %1714 = vmatpush1.bf16.msra.mxu0 0
      %1715 = vmatprep.subr.bf16.mxu0 0
      %1716 = vmatpush1.bf16.msra.mxu0 0
      %1717 = vmatprep.subr.bf16.mxu0 0
      %1718 = vmatpush1.bf16.msra.mxu0 0
      %1719 = vmatprep.mubr.bf16.mxu0 0
      %1720 = vmatmul.mubr.bf16.gmra.mrb[0].mxu0 %v855
      %v1721 = vpop.f32.mrb[0].mxu0
      %v1722 = vadd.f32 0.0, %v1721
      %v1723 = vpop.f32.mrb[0].mxu0
      %v1724 = vpop.f32.mrb[0].mxu0
      %v1725 = vadd.f32 0.0, %v1724
      %v1726 = vpop.f32.mrb[0].mxu0
      %1727 = vmatprep.mubr.bf16.mxu0 0
      %1728 = vmatmul.mubr.bf16.gmra.mrb[0].mxu0 %v858
      %v1729 = vpop.f32.mrb[0].mxu0
      %v1730 = vadd.f32 0.0, %v1729
      %v1731 = vpop.f32.mrb[0].mxu0
      %v1732 = vpop.f32.mrb[0].mxu0
      %v1733 = vadd.f32 0.0, %v1732
      %v1734 = vpop.f32.mrb[0].mxu0
      %1735 = vmatprep.mubr.bf16.mxu0 0
      %1736 = vmatmul.mubr.bf16.gmra.mrb[0].mxu0 %v861
      %v1737 = vpop.f32.mrb[0].mxu0
      %v1738 = vadd.f32 0.0, %v1737
      %v1739 = vpop.f32.mrb[0].mxu0
      %v1740 = vpop.f32.mrb[0].mxu0
      %v1741 = vadd.f32 0.0, %v1740
      %v1742 = vpop.f32.mrb[0].mxu0
      %1743 = vmatprep.mubr.bf16.mxu0 0
      %1744 = vmatmul.mubr.bf16.gmra.mrb[0].mxu0 %v864
      %v1745 = vpop.f32.mrb[0].mxu0
      %v1746 = vadd.f32 0.0, %v1745
      %v1747 = vpop.f32.mrb[0].mxu0
      %v1748 = vpop.f32.mrb[0].mxu0
      %v1749 = vadd.f32 0.0, %v1748
      %v1750 = vpop.f32.mrb[0].mxu0
      %1751 = vmatprep.mubr.bf16.mxu0 0
      %1752 = vmatmul.mubr.bf16.gmra.mrb[0].mxu0 %v867
      %v1753 = vpop.f32.mrb[0].mxu0
      %v1754 = vadd.f32 0.0, %v1753
      %v1755 = vpop.f32.mrb[0].mxu0
      %v1756 = vpop.f32.mrb[0].mxu0
      %v1757 = vadd.f32 0.0, %v1756
      %v1758 = vpop.f32.mrb[0].mxu0
      %1759 = vmatprep.mubr.bf16.mxu0 0
      %1760 = vmatmul.mubr.bf16.gmra.mrb[0].mxu0 %v870
      %v1761 = vpop.f32.mrb[0].mxu0
      %v1762 = vadd.f32 0.0, %v1761
      %v1763 = vpop.f32.mrb[0].mxu0
      %v1764 = vpop.f32.mrb[0].mxu0
      %v1765 = vadd.f32 0.0, %v1764
      %v1766 = vpop.f32.mrb[0].mxu0
      %1767 = vmatprep.mubr.bf16.mxu0 0
      %1768 = vmatmul.mubr.bf16.gmra.mrb[0].mxu0 %v1276
      %v1769 = vpop.f32.mrb[0].mxu0
      %v1770 = vadd.f32 0.0, %v1769
      %v1771 = vpop.f32.mrb[0].mxu0
      %v1772 = vpop.f32.mrb[0].mxu0
      %v1773 = vadd.f32 0.0, %v1772
      %v1774 = vpop.f32.mrb[0].mxu0
      %1775 = vmatprep.mubr.bf16.mxu0 0
      %1776 = vmatmul.mubr.bf16.gmra.mrb[0].mxu0 %v1682
      %v1777 = vpop.f32.mrb[0].mxu0
      %v1778 = vadd.f32 0.0, %v1777
      %v1779 = vpop.f32.mrb[0].mxu0
      %v1780 = vpop.f32.mrb[0].mxu0
      %v1781 = vadd.f32 0.0, %v1780
      %v1782 = vpop.f32.mrb[0].mxu0
      %1783 = vdwg.mxu0
      %v1784 = vadd.f32 %v1652, %v1722
      %v1785 = vadd.f32 %v1653, %v1725
      %v1786 = vadd.f32 %v1654, %v1730
      %v1787 = vadd.f32 %v1655, %v1733
      %v1788 = vadd.f32 %v1656, %v1738
      %v1789 = vadd.f32 %v1657, %v1741
      %v1790 = vadd.f32 %v1658, %v1746
      %v1791 = vadd.f32 %v1659, %v1749
      %v1792 = vadd.f32 %v1660, %v1754
      %v1793 = vadd.f32 %v1661, %v1757
      %v1794 = vadd.f32 %v1662, %v1762
      %v1795 = vadd.f32 %v1663, %v1765
      %v1796 = vadd.f32 %v1664, %v1770
      %v1797 = vadd.f32 %v1665, %v1773
      %v1798 = vadd.f32 %v1666, %v1778
      %v1799 = vadd.f32 %v1667, %v1781
      %vm1800 = vcmask 261120
      %v1801 = vsel %vm1800, %v1784, 0.0
      %v1802 = vsel %vm1800, %v1785, 0.0
      %v1803 = vadd.f32 %v1801, %v1802
      %v1804 = vsel %vm1800, %v1786, 0.0
      %v1805 = vadd.f32 %v1803, %v1804
      %v1806 = vsel %vm1800, %v1787, 0.0
      %v1807 = vadd.f32 %v1805, %v1806
      %v1808 = vsel %vm1800, %v1788, 0.0
      %v1809 = vadd.f32 %v1807, %v1808
      %v1810 = vsel %vm1800, %v1789, 0.0
      %v1811 = vadd.f32 %v1809, %v1810
      %v1812 = vsel %vm1800, %v1790, 0.0
      %v1813 = vadd.f32 %v1811, %v1812
      %v1814 = vsel %vm1800, %v1791, 0.0
      %v1815 = vadd.f32 %v1813, %v1814
      %v1816 = vsel %vm1800, %v1792, 0.0
      %v1817 = vadd.f32 %v1815, %v1816
      %v1818 = vsel %vm1800, %v1793, 0.0
      %v1819 = vadd.f32 %v1817, %v1818
      %v1820 = vsel %vm1800, %v1794, 0.0
      %v1821 = vadd.f32 %v1819, %v1820
      %v1822 = vsel %vm1800, %v1795, 0.0
      %v1823 = vadd.f32 %v1821, %v1822
      %v1824 = vsel %vm1800, %v1796, 0.0
      %v1825 = vadd.f32 %v1823, %v1824
      %v1826 = vsel %vm1800, %v1797, 0.0
      %v1827 = vadd.f32 %v1825, %v1826
      %v1828 = vsel %vm1800, %v1798, 0.0
      %v1829 = vadd.f32 %v1827, %v1828
      %v1830 = vsel %vm1800, %v1799, 0.0
      %v1831 = vadd.f32 %v1829, %v1830
      %v1832 = vrot.slane %v1831, 4
      %v1833 = vadd.f32 %v1831, %v1832
      %v1834 = vrot.slane %v1833, 2
      %v1835 = vadd.f32 %v1833, %v1834
      %v1836 = vrot.slane %v1835, 1
      %v1837 = vadd.f32 %v1835, %v1836
      %vm1838 = vcmask 253952
      %1839 = vst.msk [vmem:[%s200] sm:$0x1] %vm1838, %v1837
      %v1840 = vmul.f32 %v1784, %v1784
      %v1841 = vmul.f32 %v1785, %v1785
      %v1842 = vmul.f32 %v1786, %v1786
      %v1843 = vmul.f32 %v1787, %v1787
      %v1844 = vmul.f32 %v1788, %v1788
      %v1845 = vmul.f32 %v1789, %v1789
      %v1846 = vmul.f32 %v1790, %v1790
      %v1847 = vmul.f32 %v1791, %v1791
      %v1848 = vmul.f32 %v1792, %v1792
      %v1849 = vmul.f32 %v1793, %v1793
      %v1850 = vmul.f32 %v1794, %v1794
      %v1851 = vmul.f32 %v1795, %v1795
      %v1852 = vmul.f32 %v1796, %v1796
      %v1853 = vmul.f32 %v1797, %v1797
      %v1854 = vmul.f32 %v1798, %v1798
      %v1855 = vmul.f32 %v1799, %v1799
      %v1856 = vsel %vm1800, %v1840, 0.0
      %v1857 = vsel %vm1800, %v1841, 0.0
      %v1858 = vadd.f32 %v1856, %v1857
      %v1859 = vsel %vm1800, %v1842, 0.0
      %v1860 = vadd.f32 %v1858, %v1859
      %v1861 = vsel %vm1800, %v1843, 0.0
      %v1862 = vadd.f32 %v1860, %v1861
      %v1863 = vsel %vm1800, %v1844, 0.0
      %v1864 = vadd.f32 %v1862, %v1863
      %v1865 = vsel %vm1800, %v1845, 0.0
      %v1866 = vadd.f32 %v1864, %v1865
      %v1867 = vsel %vm1800, %v1846, 0.0
      %v1868 = vadd.f32 %v1866, %v1867
      %v1869 = vsel %vm1800, %v1847, 0.0
      %v1870 = vadd.f32 %v1868, %v1869
      %v1871 = vsel %vm1800, %v1848, 0.0
      %v1872 = vadd.f32 %v1870, %v1871
      %v1873 = vsel %vm1800, %v1849, 0.0
      %v1874 = vadd.f32 %v1872, %v1873
      %v1875 = vsel %vm1800, %v1850, 0.0
      %v1876 = vadd.f32 %v1874, %v1875
      %v1877 = vsel %vm1800, %v1851, 0.0
      %v1878 = vadd.f32 %v1876, %v1877
      %v1879 = vsel %vm1800, %v1852, 0.0
      %v1880 = vadd.f32 %v1878, %v1879
      %v1881 = vsel %vm1800, %v1853, 0.0
      %v1882 = vadd.f32 %v1880, %v1881
      %v1883 = vsel %vm1800, %v1854, 0.0
      %v1884 = vadd.f32 %v1882, %v1883
      %v1885 = vsel %vm1800, %v1855, 0.0
      %v1886 = vadd.f32 %v1884, %v1885
      %v1887 = vrot.slane %v1886, 4
      %v1888 = vadd.f32 %v1886, %v1887
      %v1889 = vrot.slane %v1888, 2
      %v1890 = vadd.f32 %v1888, %v1889
      %v1891 = vrot.slane %v1890, 1
      %v1892 = vadd.f32 %v1890, %v1891
      %1893 = vst.msk [vmem:[%s207] sm:$0x1] %vm1838, %v1892
      %p1894 = scmp.lt.s32.totalorder %s19, 1
      %s1895 = scalar_select %p1894, %s19, 1
      %p1896 = scmp.lt.s32.totalorder %s20, 1
      %s1897 = scalar_select %p1896, %s20, 1
      %s1898 = smul.addr %s1895, 2
      %s1899 = sadd.s32 %s1897, %s1898
      %s1900 = scalar_lea.vmem %s2, %s1899
      %p1901 = scmp.lt.s32.totalorder %s19, 1
      %s1902 = scalar_select %p1901, %s19, 1
      %p1903 = scmp.lt.s32.totalorder %s20, 1
      %s1904 = scalar_select %p1903, %s20, 1
      %s1905 = smul.addr %s1902, 2
      %s1906 = sadd.s32 %s1904, %s1905
      %s1907 = scalar_lea.vmem %s3, %s1906
      // Predicated region
      $region29: #{_lambda_.2} parent=27 // pred_check
        %p1908 = pneg %p94
      $region30: #{_lambda_.2} parent=27 // pred_check_branch
        %1910 = sbr.rel (%p1908) target = $region32
      $region31: #{_lambda_.2} parent=27 // pred_region
        _
      $region32: #{_lambda_.2} parent=27 // pred_fallthru
        _
      // Predicated region
      $region33: #{_lambda_.2} parent=27 // pred_check
        %p1911 = pneg %p122
      $region34: #{_lambda_.2} parent=27 // pred_check_branch
        %1913 = sbr.rel (%p1911) target = $region36
      $region35: #{_lambda_.2} parent=27 // pred_region
        _
      $region36: #{_lambda_.2} parent=27 // pred_fallthru
        _
    $region28: #{_lambda_.2} parent=5 // pred_fallthru
      _
    %p1914 = scmp.le.s32.totalorder 2, %s10
    // Predicated region
    $region37: #{_lambda_.2} parent=5 // pred_check
      %p1915 = pneg %p1914
    $region38: #{_lambda_.2} parent=5 // pred_check_branch
      %1917 = sbr.rel (%p1915) target = $region40
    $region39: #{_lambda_.2} parent=5 // pred_region
      %s1918 = ssub.s32 %s10, 2
      // Predicated region
      $region41: #{_lambda_.2} parent=39 // pred_check
        %p1919 = pneg %p100
      $region42: #{_lambda_.2} parent=39 // pred_check_branch
        %1921 = sbr.rel (%p1919) target = $region44
      $region43: #{_lambda_.2} parent=39 // pred_region
        %p1922 = scmp.lt.s32.totalorder %s21, 1
        %s1923 = scalar_select %p1922, %s21, 1
        %p1924 = scmp.lt.s32.totalorder %s22, 1
        %s1925 = scalar_select %p1924, %s22, 1
        %s1926 = smul.addr %s1923, 2
        %s1927 = sadd.s32 %s1925, %s1926
        %s1928 = scalar_lea.vmem %s2, %s1927
      $region44: #{_lambda_.2} parent=39 // pred_fallthru
        _
      // Predicated region
      $region45: #{_lambda_.2} parent=39 // pred_check
        %p1929 = pneg %p128
      $region46: #{_lambda_.2} parent=39 // pred_check_branch
        %1931 = sbr.rel (%p1929) target = $region48
      $region47: #{_lambda_.2} parent=39 // pred_region
        %p1932 = scmp.lt.s32.totalorder %s21, 1
        %s1933 = scalar_select %p1932, %s21, 1
        %p1934 = scmp.lt.s32.totalorder %s22, 1
        %s1935 = scalar_select %p1934, %s22, 1
        %s1936 = smul.addr %s1933, 2
        %s1937 = sadd.s32 %s1935, %s1936
        %s1938 = scalar_lea.vmem %s3, %s1937
      $region48: #{_lambda_.2} parent=39 // pred_fallthru
        _
    $region40: #{_lambda_.2} parent=5 // pred_fallthru
      _
  $region6: #{_lambda_.2} parent=0 // loop_footer
    %s14 = sadd.s32 1, %s10
  $region7: #{_lambda_.2} parent=0 // loop_footer_branch
    %9 = sbr.rel target = $region3
  $region8: #{_lambda_.2} parent=0 // loop_exit
    _

// kernel: _lambda_.3
$region0: #{_lambda_.3}
  #allocation0 [shape = 'u32[]', space=smem, size = 0x4, offset = 0x4, fixed_abs, tag = 'smem constant byte address 0x4 - core index']
  #allocation1 [shape = 'u32[144,128]{1,0:T(1,128)}', space=vmem, size = 0x12000, scoped, tag = 'internal scratch']
  %s0 = inlined_call_operand.vmem [shape: bf16[2,18,18,4], index: 0, kind: input, shape index: {}]
  %s1 = inlined_call_operand.vmem [shape: bf16[9,4,32], index: 1, kind: input, shape index: {}]
  %s2 = inlined_call_operand.vmem [shape: f32[1,32], index: 2, kind: input, shape index: {}]
  %s3 = inlined_call_operand.vmem [shape: f32[1,32], index: 3, kind: input, shape index: {}]
  %s4 = inlined_call_operand.vmem [shape: f32[2,32,256], index: 4, kind: output, shape index: {}]
  %s5 = sld [smem:[#allocation0]]
  $region83: #{_lambda_.3} parent=0
    _
  %s7 = ssub.s32 1, %s5
  %s8 = scalar_select 0, %s7, %s5
  $region1: #{_lambda_.3} parent=0
    #allocation2 [shape = 'u8[32768]{0}', space=vmem, size = 0x8000, scoped, tag = 'output window, operand 0']
    loop: start=0, step=1, limit=6
    $region2: #{_lambda_.3} parent=1 // loop_pre_header
      _
    $region3: #{_lambda_.3} parent=1 // loop_header
      %s10 = sphi 0, %s14
      %p11 = scmp.ge.s32.totalorder %s10, 6
      %s17 = sphi 0, %s29
      %s18 = sphi 0, %s25
      %s19 = sphi 0, %s17
      %s20 = sphi 0, %s18
      %s21 = sphi 0, %s19
      %s22 = sphi 0, %s20
      %s32 = sphi 0, %s34
      %s35 = sphi 0, %s32
      %s36 = sphi 0, %s35
      %s52 = sphi 0, %s36
      %s56 = sphi 0, %s56
      %s58 = sphi 0, %s56
      %s59 = sphi 0, %s58
      %s73 = sphi 0, %s59
      %s77 = sphi 0, %s77
      %s79 = sphi 0, %s77
      %s80 = sphi 0, %s79
      %s94 = sphi 0, %s80
      %s98 = sphi 0, %s98
      %s100 = sphi 0, %s98
      %s101 = sphi 0, %s100
      %s115 = sphi 0, %s101
      %s123 = sphi 0, %s125
      %s126 = sphi 0, %s123
      %s127 = sphi 0, %s126
      %s143 = sphi 0, %s127
    $region4: #{_lambda_.3} parent=1 // loop_header_branch
      %13 = sbr.rel (%p11) target = $region8
    $region5: #{_lambda_.3} parent=1 // loop_body
      %s15 = ssub.s32 %s10, 1
      %s16 = ssub.s32 %s10, 2
      %s23 = sadd.s32 1, %s18
      %p24 = scmp.ge.s32.totalorder %s23, 2
      %s25 = scalar_select %p24, 0, %s23
      %s26 = sadd.s32 1, %s17
      %s27 = scalar_select %p24, %s26, %s17
      %p28 = scmp.ge.s32.totalorder %s27, 2
      %s29 = scalar_select %p28, 0, %s27
      %s30 = ssub.s32 %s17, %s29
      %p31 = scmp.eq.s32.totalorder %s30, 0
      %s33 = sadd.s32 %s32, 1
      %s34 = scalar_select %p31, %s32, %s33
      %p37 = pneg %p31
      %p38 = scmp.eq.s32.totalorder %s10, 3
      %p39 = por %p37, %p38
      %p40 = scmp.ne.s32.totalorder %s32, %s35
      %p41 = scmp.eq.s32.totalorder %s10, 0
      %p42 = por %p40, %p41
      %p43 = scmp.ne.s32.totalorder %s32, %s35
      %p44 = scmp.eq.s32.totalorder %s15, 3
      %p45 = por %p43, %p44
      %p46 = scmp.ne.s32.totalorder %s35, %s36
      %p47 = scmp.eq.s32.totalorder %s15, 0
      %p48 = por %p46, %p47
      %p49 = scmp.ne.s32.totalorder %s35, %s36
      %p50 = scmp.eq.s32.totalorder %s16, 3
      %p51 = por %p49, %p50
      %p53 = scmp.ne.s32.totalorder %s36, %s52
      %p54 = scmp.eq.s32.totalorder %s16, 0
      %p55 = por %p53, %p54
      %s57 = sadd.s32 %s56, 1
      %p60 = scmp.eq.s32.totalorder %s10, 3
      %p61 = scmp.ne.s32.totalorder %s56, %s58
      %p62 = scmp.eq.s32.totalorder %s10, 0
      %p63 = por %p61, %p62
      %p64 = scmp.ne.s32.totalorder %s56, %s58
      %p65 = scmp.eq.s32.totalorder %s15, 3
      %p66 = por %p64, %p65
      %p67 = scmp.ne.s32.totalorder %s58, %s59
      %p68 = scmp.eq.s32.totalorder %s15, 0
      %p69 = por %p67, %p68
      %p70 = scmp.ne.s32.totalorder %s58, %s59
      %p71 = scmp.eq.s32.totalorder %s16, 3
      %p72 = por %p70, %p71
      %p74 = scmp.ne.s32.totalorder %s59, %s73
      %p75 = scmp.eq.s32.totalorder %s16, 0
      %p76 = por %p74, %p75
      %s78 = sadd.s32 %s77, 1
      %p81 = scmp.eq.s32.totalorder %s10, 3
      %p82 = scmp.ne.s32.totalorder %s77, %s79
      %p83 = scmp.eq.s32.totalorder %s10, 0
      %p84 = por %p82, %p83
      %p85 = scmp.ne.s32.totalorder %s77, %s79
      %p86 = scmp.eq.s32.totalorder %s15, 3
      %p87 = por %p85, %p86
      %p88 = scmp.ne.s32.totalorder %s79, %s80
      %p89 = scmp.eq.s32.totalorder %s15, 0
      %p90 = por %p88, %p89
      %p91 = scmp.ne.s32.totalorder %s79, %s80
      %p92 = scmp.eq.s32.totalorder %s16, 3
      %p93 = por %p91, %p92
      %p95 = scmp.ne.s32.totalorder %s80, %s94
      %p96 = scmp.eq.s32.totalorder %s16, 0
      %p97 = por %p95, %p96
      %s99 = sadd.s32 %s98, 1
      %p102 = scmp.eq.s32.totalorder %s10, 3
      %p103 = scmp.ne.s32.totalorder %s98, %s100
      %p104 = scmp.eq.s32.totalorder %s10, 0
      %p105 = por %p103, %p104
      %p106 = scmp.ne.s32.totalorder %s98, %s100
      %p107 = scmp.eq.s32.totalorder %s15, 3
      %p108 = por %p106, %p107
      %p109 = scmp.ne.s32.totalorder %s100, %s101
      %p110 = scmp.eq.s32.totalorder %s15, 0
      %p111 = por %p109, %p110
      %p112 = scmp.ne.s32.totalorder %s100, %s101
      %p113 = scmp.eq.s32.totalorder %s16, 3
      %p114 = por %p112, %p113
      %p116 = scmp.ne.s32.totalorder %s101, %s115
      %p117 = scmp.eq.s32.totalorder %s16, 0
      %p118 = por %p116, %p117
      %s119 = ssub.s32 %s17, %s29
      %s120 = ssub.s32 %s18, %s25
      %s121 = sor.u32 %s119, %s120
      %p122 = scmp.eq.s32.totalorder %s121, 0
      %s124 = sadd.s32 %s123, 1
      %s125 = scalar_select %p122, %s123, %s124
      %p128 = pneg %p122
      %p129 = scmp.eq.s32.totalorder %s10, 3
      %p130 = por %p128, %p129
      %p131 = scmp.ne.s32.totalorder %s123, %s126
      %p132 = scmp.eq.s32.totalorder %s10, 0
      %p133 = por %p131, %p132
      %p134 = scmp.ne.s32.totalorder %s123, %s126
      %p135 = scmp.eq.s32.totalorder %s15, 3
      %p136 = por %p134, %p135
      %p137 = scmp.ne.s32.totalorder %s126, %s127
      %p138 = scmp.eq.s32.totalorder %s15, 0
      %p139 = por %p137, %p138
      %p140 = scmp.ne.s32.totalorder %s126, %s127
      %p141 = scmp.eq.s32.totalorder %s16, 3
      %p142 = por %p140, %p141
      %p144 = scmp.ne.s32.totalorder %s127, %s143
      %p145 = scmp.eq.s32.totalorder %s16, 0
      %p146 = por %p144, %p145
      %p147 = scmp.le.s32.totalorder 1, %s10
      %p148 = scmp.lt.s32.totalorder %s10, 5
      %p149 = pnand %p147, %p148
      %p150 = pneg %p149
      // Predicated region
      $region9: #{_lambda_.3} parent=5 // pred_check
        _
      $region10: #{_lambda_.3} parent=5 // pred_check_branch
        %152 = sbr.rel (%p149) target = $region12
      $region11: #{_lambda_.3} parent=5 // pred_region
        %s153 = ssub.s32 %s10, 1
        // Predicated region
        $region13: #{_lambda_.3} parent=11 // pred_check
          %p154 = pneg %p69
        $region14: #{_lambda_.3} parent=11 // pred_check_branch
          %156 = sbr.rel (%p154) target = $region16
        $region15: #{_lambda_.3} parent=11 // pred_region
          _
        $region16: #{_lambda_.3} parent=11 // pred_fallthru
          _
        // Predicated region
        $region17: #{_lambda_.3} parent=11 // pred_check
          %p157 = pneg %p90
        $region18: #{_lambda_.3} parent=11 // pred_check_branch
          %159 = sbr.rel (%p157) target = $region20
        $region19: #{_lambda_.3} parent=11 // pred_region
          _
        $region20: #{_lambda_.3} parent=11 // pred_fallthru
          _
        // Predicated region
        $region21: #{_lambda_.3} parent=11 // pred_check
          %p160 = pneg %p111
        $region22: #{_lambda_.3} parent=11 // pred_check_branch
          %162 = sbr.rel (%p160) target = $region24
        $region23: #{_lambda_.3} parent=11 // pred_region
          _
        $region24: #{_lambda_.3} parent=11 // pred_fallthru
          _
      $region12: #{_lambda_.3} parent=5 // pred_fallthru
        _
      %p163 = scmp.lt.s32.totalorder %s10, 4
      // Predicated region
      $region25: #{_lambda_.3} parent=5 // pred_check
        %p164 = pneg %p163
      $region26: #{_lambda_.3} parent=5 // pred_check_branch
        %166 = sbr.rel (%p164) target = $region28
      $region27: #{_lambda_.3} parent=5 // pred_region
        // Predicated region
        $region29: #{_lambda_.3} parent=27 // pred_check
          %p167 = pneg %p42
        $region30: #{_lambda_.3} parent=27 // pred_check_branch
          %169 = sbr.rel (%p167) target = $region32
        $region31: #{_lambda_.3} parent=27 // pred_region
          %p170 = scmp.lt.s32.totalorder %s17, 1
          %s171 = scalar_select %p170, %s17, 1
          %s172 = smul.addr %s171, 54
          %s173 = smul.addr %s172, 4
          %s174 = scalar_lea.vmem %s0, %s173
        $region32: #{_lambda_.3} parent=27 // pred_fallthru
          _
      $region28: #{_lambda_.3} parent=5 // pred_fallthru
        _
      %p175 = scmp.le.s32.totalorder 1, %s10
      %p176 = scmp.lt.s32.totalorder %s10, 5
      %p177 = pnand %p175, %p176
      %p178 = pneg %p177
      // Predicated region
      $region33: #{_lambda_.3} parent=5 // pred_check
        _
      $region34: #{_lambda_.3} parent=5 // pred_check_branch
        %180 = sbr.rel (%p177) target = $region36
      $region35: #{_lambda_.3} parent=5 // pred_region
        %s181 = ssub.s32 %s10, 1
        %p182 = scmp.lt.s32.totalorder %s19, 1
        %s183 = scalar_select %p182, %s19, 1
        %s184 = smul.addr %s183, 54
        %s185 = smul.addr %s184, 4
        %s186 = scalar_lea.vmem %s0, %s185
        %p187 = pneg %p48
        %p188 = pneg %p45
        %p189 = pneg %p69
        %p190 = pneg %p66
        %p191 = pneg %p90
        %p192 = pneg %p87
        %p193 = pneg %p111
        %p194 = pneg %p108
        %p195 = pneg %p139
        %p196 = pneg %p136
        %s197 = sand.u32 %s126, 1
        %s198 = sand.u32 %s126, 1
        %s199 = smul.addr %s198, 32
        %s200 = scalar_lea.vmem [#allocation2], %s199
        %p201 = scmp.lt.s32.totalorder %s19, 1
        %s202 = scalar_select %p201, %s19, 1
        %s203 = smul.addr %s202, 54
        %s204 = smul.addr %s203, 4
        %s205 = scalar_lea.vmem %s0, %s204
        %s207 = smul.u32 %s20, 8
        %s208 = smul.u32 %s207, 3
        %s209 = smul.addr %s208, 4
        %s210 = scalar_lea.vmem %s205, %s209
        %v211 = vld [vmem:[%s210] sm:$0xf]
        %v212 = vld [vmem:[%s210 + $0x4] sm:$0xf]
        %v213 = vld [vmem:[%s210 + $0x8] sm:$0x1]
        %v214 = vld [vmem:[%s210 + $0xc] sm:$0xf]
        %v215 = vld [vmem:[%s210 + $0x10] sm:$0xf]
        %v216 = vld [vmem:[%s210 + $0x14] sm:$0x1]
        %v217 = vld [vmem:[%s210 + $0x18] sm:$0xf]
        %v218 = vld [vmem:[%s210 + $0x1c] sm:$0xf]
        %v219 = vld [vmem:[%s210 + $0x20] sm:$0x1]
        %v220 = vld [vmem:[%s210 + $0x24] sm:$0xf]
        %v221 = vld [vmem:[%s210 + $0x28] sm:$0xf]
        %v222 = vld [vmem:[%s210 + $0x2c] sm:$0x1]
        %v223 = vld [vmem:[%s210 + $0x30] sm:$0xf]
        %v224 = vld [vmem:[%s210 + $0x34] sm:$0xf]
        %v225 = vld [vmem:[%s210 + $0x38] sm:$0x1]
        %v226 = vld [vmem:[%s210 + $0x3c] sm:$0xf]
        %v227 = vld [vmem:[%s210 + $0x40] sm:$0xf]
        %v228 = vld [vmem:[%s210 + $0x44] sm:$0x1]
        %v229 = vld [vmem:[%s210 + $0x48] sm:$0xf]
        %v230 = vld [vmem:[%s210 + $0x4c] sm:$0xf]
        %v231 = vld [vmem:[%s210 + $0x50] sm:$0x1]
        %v232 = vld [vmem:[%s210 + $0x54] sm:$0xf]
        %v233 = vld [vmem:[%s210 + $0x58] sm:$0xf]
        %v234 = vld [vmem:[%s210 + $0x5c] sm:$0x1]
        %v235 = vld [vmem:[%s210 + $0x60] sm:$0xf]
        %v236 = vld [vmem:[%s210 + $0x64] sm:$0xf]
        %v237 = vld [vmem:[%s210 + $0x68] sm:$0x1]
        %v238 = vld [vmem:[%s210 + $0x6c] sm:$0xf]
        %v239 = vld [vmem:[%s210 + $0x70] sm:$0xf]
        %v240 = vld [vmem:[%s210 + $0x74] sm:$0x1]
        %v241 = vld [vmem:[%s1] sm:$0x3]
        %vm242 = vsmask.f32 3328
        %vm243 = vsmask.f32 7440
        %vm244 = vmor %vm242, %vm243
        %v246 = vshrl.u32 %v211, 16
        %v248 = vrot.slane %v246, 4
        %v249 = vshll.u32 %v211, 16
        %v251 = vrot.slane %v249, 5
        %v252 = vor.u32 %v248, %v251
        %v253 = vrot.slane %v252, 4
        %v255 = vshll.u32 %v212, 16
        %v257 = vrot.slane %v255, 5
        %v258 = vsel %vm244, %v253, %v257
        %v259 = vshrl.u32 %v212, 16
        %v261 = vrot.slane %v259, 4
        %v262 = vor.u32 %v261, %v257
        %v263 = vrot.slane %v262, 4
        %v265 = vshll.u32 %v213, 16
        %v267 = vrot.slane %v265, 5
        %v268 = vsel %vm244, %v263, %v267
        %v270 = vshrl.u32 %v214, 16
        %v272 = vrot.slane %v270, 4
        %v273 = vshll.u32 %v214, 16
        %v275 = vrot.slane %v273, 5
        %v276 = vor.u32 %v272, %v275
        %v277 = vrot.slane %v276, 4
        %v279 = vshll.u32 %v215, 16
        %v281 = vrot.slane %v279, 5
        %v282 = vsel %vm244, %v277, %v281
        %v283 = vshrl.u32 %v215, 16
        %v285 = vrot.slane %v283, 4
        %v286 = vor.u32 %v285, %v281
        %v287 = vrot.slane %v286, 4
        %v289 = vshll.u32 %v216, 16
        %v291 = vrot.slane %v289, 5
        %v292 = vsel %vm244, %v287, %v291
        %v294 = vshrl.u32 %v217, 16
        %v296 = vrot.slane %v294, 4
        %v297 = vshll.u32 %v217, 16
        %v299 = vrot.slane %v297, 5
        %v300 = vor.u32 %v296, %v299
        %v301 = vrot.slane %v300, 4
        %v303 = vshll.u32 %v218, 16
        %v305 = vrot.slane %v303, 5
        %v306 = vsel %vm244, %v301, %v305
        %v307 = vshrl.u32 %v218, 16
        %v309 = vrot.slane %v307, 4
        %v310 = vor.u32 %v309, %v305
        %v311 = vrot.slane %v310, 4
        %v313 = vshll.u32 %v219, 16
        %v315 = vrot.slane %v313, 5
        %v316 = vsel %vm244, %v311, %v315
        %v318 = vshrl.u32 %v220, 16
        %v320 = vrot.slane %v318, 4
        %v321 = vshll.u32 %v220, 16
        %v323 = vrot.slane %v321, 5
        %v324 = vor.u32 %v320, %v323
        %v325 = vrot.slane %v324, 4
        %v327 = vshll.u32 %v221, 16
        %v329 = vrot.slane %v327, 5
        %v330 = vsel %vm244, %v325, %v329
        %v331 = vshrl.u32 %v221, 16
        %v333 = vrot.slane %v331, 4
        %v334 = vor.u32 %v333, %v329
        %v335 = vrot.slane %v334, 4
        %v337 = vshll.u32 %v222, 16
        %v339 = vrot.slane %v337, 5
        %v340 = vsel %vm244, %v335, %v339
        %v342 = vshrl.u32 %v223, 16
        %v344 = vrot.slane %v342, 4
        %v345 = vshll.u32 %v223, 16
        %v347 = vrot.slane %v345, 5
        %v348 = vor.u32 %v344, %v347
        %v349 = vrot.slane %v348, 4
        %v351 = vshll.u32 %v224, 16
        %v353 = vrot.slane %v351, 5
        %v354 = vsel %vm244, %v349, %v353
        %v355 = vshrl.u32 %v224, 16
        %v357 = vrot.slane %v355, 4
        %v358 = vor.u32 %v357, %v353
        %v359 = vrot.slane %v358, 4
        %v361 = vshll.u32 %v225, 16
        %v363 = vrot.slane %v361, 5
        %v364 = vsel %vm244, %v359, %v363
        %v366 = vshrl.u32 %v226, 16
        %v368 = vrot.slane %v366, 4
        %v369 = vshll.u32 %v226, 16
        %v371 = vrot.slane %v369, 5
        %v372 = vor.u32 %v368, %v371
        %v373 = vrot.slane %v372, 4
        %v375 = vshll.u32 %v227, 16
        %v377 = vrot.slane %v375, 5
        %v378 = vsel %vm244, %v373, %v377
        %v379 = vshrl.u32 %v227, 16
        %v381 = vrot.slane %v379, 4
        %v382 = vor.u32 %v381, %v377
        %v383 = vrot.slane %v382, 4
        %v385 = vshll.u32 %v228, 16
        %v387 = vrot.slane %v385, 5
        %v388 = vsel %vm244, %v383, %v387
        %v390 = vshrl.u32 %v229, 16
        %v392 = vrot.slane %v390, 4
        %v393 = vshll.u32 %v229, 16
        %v395 = vrot.slane %v393, 5
        %v396 = vor.u32 %v392, %v395
        %v397 = vrot.slane %v396, 4
        %v399 = vshll.u32 %v230, 16
        %v401 = vrot.slane %v399, 5
        %v402 = vsel %vm244, %v397, %v401
        %v403 = vshrl.u32 %v230, 16
        %v405 = vrot.slane %v403, 4
        %v406 = vor.u32 %v405, %v401
        %v407 = vrot.slane %v406, 4
        %v409 = vshll.u32 %v231, 16
        %v411 = vrot.slane %v409, 5
        %v412 = vsel %vm244, %v407, %v411
        %v414 = vshrl.u32 %v232, 16
        %v416 = vrot.slane %v414, 4
        %v417 = vshll.u32 %v232, 16
        %v419 = vrot.slane %v417, 5
        %v420 = vor.u32 %v416, %v419
        %v421 = vrot.slane %v420, 4
        %v423 = vshll.u32 %v233, 16
        %v425 = vrot.slane %v423, 5
        %v426 = vsel %vm244, %v421, %v425
        %v427 = vshrl.u32 %v233, 16
        %v429 = vrot.slane %v427, 4
        %v430 = vor.u32 %v429, %v425
        %v431 = vrot.slane %v430, 4
        %v433 = vshll.u32 %v234, 16
        %v435 = vrot.slane %v433, 5
        %v436 = vsel %vm244, %v431, %v435
        %s437 = scalar_lea.vmem %s1, 2
        %v438 = vld [vmem:[%s437] sm:$0x3]
        %v439 = vunpack.c.l.b16 %v258
        %v440 = vunpack.c.l.b16 %v268
        %v441 = vunpack.c.l.b16 %v282
        %v442 = vunpack.c.l.b16 %v292
        %v443 = vunpack.c.l.b16 %v306
        %v444 = vunpack.c.l.b16 %v316
        %v445 = vunpack.c.l.b16 %v330
        %v446 = vunpack.c.l.b16 %v340
        %v447 = vunpack.c.l.b16 %v354
        %v448 = vunpack.c.l.b16 %v364
        %v449 = vunpack.c.l.b16 %v378
        %v450 = vunpack.c.l.b16 %v388
        %v451 = vunpack.c.l.b16 %v402
        %v452 = vunpack.c.l.b16 %v412
        %v453 = vunpack.c.l.b16 %v426
        %v454 = vunpack.c.l.b16 %v436
        %v455 = vpack.c.b16 %v440, %v439
        %v456 = vpack.c.b16 %v442, %v441
        %v457 = vpack.c.b16 %v444, %v443
        %v458 = vpack.c.b16 %v446, %v445
        %v459 = vpack.c.b16 %v448, %v447
        %v460 = vpack.c.b16 %v450, %v449
        %v461 = vpack.c.b16 %v452, %v451
        %v462 = vpack.c.b16 %v454, %v453
        %vm463 = vcmask 31744
        %v465 = vsel %vm463, %v455, 0
        %v468 = vsel %vm463, %v456, 0
        %v471 = vsel %vm463, %v457, 0
        %v474 = vsel %vm463, %v458, 0
        %v477 = vsel %vm463, %v459, 0
        %v480 = vsel %vm463, %v460, 0
        %v483 = vsel %vm463, %v461, 0
        %v486 = vsel %vm463, %v462, 0
        %vm488 = vcmask 1041408
        %v490 = vsel %vm488, %v438, 0
        %492 = vmatprep.subr.bf16.mxu0 0
        %493 = vmatpush1.bf16.msra.mxu0 %v490
        %494 = vmatprep.subr.bf16.mxu0 0
        %495 = vmatpush1.bf16.msra.mxu0 0
        %496 = vmatprep.subr.bf16.mxu0 0
        %497 = vmatpush1.bf16.msra.mxu0 0
        %498 = vmatprep.subr.bf16.mxu0 0
        %499 = vmatpush1.bf16.msra.mxu0 0
        %500 = vmatprep.subr.bf16.mxu0 0
        %501 = vmatpush1.bf16.msra.mxu0 0
        %502 = vmatprep.subr.bf16.mxu0 0
        %503 = vmatpush1.bf16.msra.mxu0 0
        %504 = vmatprep.subr.bf16.mxu0 0
        %505 = vmatpush1.bf16.msra.mxu0 0
        %506 = vmatprep.subr.bf16.mxu0 0
        %507 = vmatpush1.bf16.msra.mxu0 0
        %508 = vmatprep.subr.bf16.mxu0 0
        %509 = vmatpush1.bf16.msra.mxu0 0
        %510 = vmatprep.subr.bf16.mxu0 0
        %511 = vmatpush1.bf16.msra.mxu0 0
        %512 = vmatprep.subr.bf16.mxu0 0
        %513 = vmatpush1.bf16.msra.mxu0 0
        %514 = vmatprep.subr.bf16.mxu0 0
        %515 = vmatpush1.bf16.msra.mxu0 0
        %516 = vmatprep.subr.bf16.mxu0 0
        %517 = vmatpush1.bf16.msra.mxu0 0
        %518 = vmatprep.subr.bf16.mxu0 0
        %519 = vmatpush1.bf16.msra.mxu0 0
        %520 = vmatprep.subr.bf16.mxu0 0
        %521 = vmatpush1.bf16.msra.mxu0 0
        %522 = vmatprep.subr.bf16.mxu0 0
        %523 = vmatpush1.bf16.msra.mxu0 0
        %524 = vmatprep.mubr.bf16.mxu0 0
        %525 = vmatmul.mubr.bf16.gmra.mrb[0].mxu0 %v465
        %v526 = vpop.f32.mrb[0].mxu0
        %v527 = vadd.f32 0.0, %v526
        %v528 = vpop.f32.mrb[0].mxu0
        %v529 = vpop.f32.mrb[0].mxu0
        %v530 = vadd.f32 0.0, %v529
        %v531 = vpop.f32.mrb[0].mxu0
        %532 = vmatprep.mubr.bf16.mxu0 0
        %533 = vmatmul.mubr.bf16.gmra.mrb[0].mxu0 %v468
        %v534 = vpop.f32.mrb[0].mxu0
        %v535 = vadd.f32 0.0, %v534
        %v536 = vpop.f32.mrb[0].mxu0
        %v537 = vpop.f32.mrb[0].mxu0
        %v538 = vadd.f32 0.0, %v537
        %v539 = vpop.f32.mrb[0].mxu0
        %540 = vmatprep.mubr.bf16.mxu0 0
        %541 = vmatmul.mubr.bf16.gmra.mrb[0].mxu0 %v471
        %v542 = vpop.f32.mrb[0].mxu0
        %v543 = vadd.f32 0.0, %v542
        %v544 = vpop.f32.mrb[0].mxu0
        %v545 = vpop.f32.mrb[0].mxu0
        %v546 = vadd.f32 0.0, %v545
        %v547 = vpop.f32.mrb[0].mxu0
        %548 = vmatprep.mubr.bf16.mxu0 0
        %549 = vmatmul.mubr.bf16.gmra.mrb[0].mxu0 %v474
        %v550 = vpop.f32.mrb[0].mxu0
        %v551 = vadd.f32 0.0, %v550
        %v552 = vpop.f32.mrb[0].mxu0
        %v553 = vpop.f32.mrb[0].mxu0
        %v554 = vadd.f32 0.0, %v553
        %v555 = vpop.f32.mrb[0].mxu0
        %556 = vmatprep.mubr.bf16.mxu0 0
        %557 = vmatmul.mubr.bf16.gmra.mrb[0].mxu0 %v477
        %v558 = vpop.f32.mrb[0].mxu0
        %v559 = vadd.f32 0.0, %v558
        %v560 = vpop.f32.mrb[0].mxu0
        %v561 = vpop.f32.mrb[0].mxu0
        %v562 = vadd.f32 0.0, %v561
        %v563 = vpop.f32.mrb[0].mxu0
        %564 = vmatprep.mubr.bf16.mxu0 0
        %565 = vmatmul.mubr.bf16.gmra.mrb[0].mxu0 %v480
        %v566 = vpop.f32.mrb[0].mxu0
        %v567 = vadd.f32 0.0, %v566
        %v568 = vpop.f32.mrb[0].mxu0
        %v569 = vpop.f32.mrb[0].mxu0
        %v570 = vadd.f32 0.0, %v569
        %v571 = vpop.f32.mrb[0].mxu0
        %572 = vmatprep.mubr.bf16.mxu0 0
        %573 = vmatmul.mubr.bf16.gmra.mrb[0].mxu0 %v483
        %v574 = vpop.f32.mrb[0].mxu0
        %v575 = vadd.f32 0.0, %v574
        %v576 = vpop.f32.mrb[0].mxu0
        %v577 = vpop.f32.mrb[0].mxu0
        %v578 = vadd.f32 0.0, %v577
        %v579 = vpop.f32.mrb[0].mxu0
        %580 = vmatprep.mubr.bf16.mxu0 0
        %581 = vmatmul.mubr.bf16.gmra.mrb[0].mxu0 %v486
        %v582 = vpop.f32.mrb[0].mxu0
        %v583 = vadd.f32 0.0, %v582
        %v584 = vpop.f32.mrb[0].mxu0
        %v585 = vpop.f32.mrb[0].mxu0
        %v586 = vadd.f32 0.0, %v585
        %v587 = vpop.f32.mrb[0].mxu0
        %588 = vdwg.mxu0
        %v605 = vunpack.c.l.b16 %v211
        %v606 = vunpack.c.l.b16 %v212
        %v607 = vunpack.c.l.b16 %v214
        %v608 = vunpack.c.l.b16 %v215
        %v609 = vunpack.c.l.b16 %v217
        %v610 = vunpack.c.l.b16 %v218
        %v611 = vunpack.c.l.b16 %v220
        %v612 = vunpack.c.l.b16 %v221
        %v613 = vunpack.c.l.b16 %v223
        %v614 = vunpack.c.l.b16 %v224
        %v615 = vunpack.c.l.b16 %v226
        %v616 = vunpack.c.l.b16 %v227
        %v617 = vunpack.c.l.b16 %v229
        %v618 = vunpack.c.l.b16 %v230
        %v619 = vunpack.c.l.b16 %v232
        %v620 = vunpack.c.l.b16 %v233
        %v621 = vpack.c.b16 %v606, %v605
        %v622 = vpack.c.b16 %v608, %v607
        %v623 = vpack.c.b16 %v610, %v609
        %v624 = vpack.c.b16 %v612, %v611
        %v625 = vpack.c.b16 %v614, %v613
        %v626 = vpack.c.b16 %v616, %v615
        %v627 = vpack.c.b16 %v618, %v617
        %v628 = vpack.c.b16 %v620, %v619
        %v630 = vsel %vm463, %v621, 0
        %v633 = vsel %vm463, %v622, 0
        %v636 = vsel %vm463, %v623, 0
        %v639 = vsel %vm463, %v624, 0
        %v642 = vsel %vm463, %v625, 0
        %v645 = vsel %vm463, %v626, 0
        %v648 = vsel %vm463, %v627, 0
        %v651 = vsel %vm463, %v628, 0
        %v654 = vsel %vm488, %v241, 0
        %656 = vmatprep.subr.bf16.mxu0 0
        %657 = vmatpush1.bf16.msra.mxu0 %v654
        %658 = vmatprep.subr.bf16.mxu0 0
        %659 = vmatpush1.bf16.msra.mxu0 0
        %660 = vmatprep.subr.bf16.mxu0 0
        %661 = vmatpush1.bf16.msra.mxu0 0
        %662 = vmatprep.subr.bf16.mxu0 0
        %663 = vmatpush1.bf16.msra.mxu0 0
        %664 = vmatprep.subr.bf16.mxu0 0
        %665 = vmatpush1.bf16.msra.mxu0 0
        %666 = vmatprep.subr.bf16.mxu0 0
        %667 = vmatpush1.bf16.msra.mxu0 0
        %668 = vmatprep.subr.bf16.mxu0 0
        %669 = vmatpush1.bf16.msra.mxu0 0
        %670 = vmatprep.subr.bf16.mxu0 0
        %671 = vmatpush1.bf16.msra.mxu0 0
        %672 = vmatprep.subr.bf16.mxu0 0
        %673 = vmatpush1.bf16.msra.mxu0 0
        %674 = vmatprep.subr.bf16.mxu0 0
        %675 = vmatpush1.bf16.msra.mxu0 0
        %676 = vmatprep.subr.bf16.mxu0 0
        %677 = vmatpush1.bf16.msra.mxu0 0
        %678 = vmatprep.subr.bf16.mxu0 0
        %679 = vmatpush1.bf16.msra.mxu0 0
        %680 = vmatprep.subr.bf16.mxu0 0
        %681 = vmatpush1.bf16.msra.mxu0 0
        %682 = vmatprep.subr.bf16.mxu0 0
        %683 = vmatpush1.bf16.msra.mxu0 0
        %684 = vmatprep.subr.bf16.mxu0 0
        %685 = vmatpush1.bf16.msra.mxu0 0
        %686 = vmatprep.subr.bf16.mxu0 0
        %687 = vmatpush1.bf16.msra.mxu0 0
        %688 = vmatprep.mubr.bf16.mxu0 0
        %689 = vmatmul.mubr.bf16.gmra.mrb[0].mxu0 %v630
        %v690 = vpop.f32.mrb[0].mxu0
        %v691 = vadd.f32 %v527, %v690
        %v692 = vpop.f32.mrb[0].mxu0
        %v693 = vpop.f32.mrb[0].mxu0
        %v694 = vadd.f32 %v530, %v693
        %v695 = vpop.f32.mrb[0].mxu0
        %696 = vmatprep.mubr.bf16.mxu0 0
        %697 = vmatmul.mubr.bf16.gmra.mrb[0].mxu0 %v633
        %v698 = vpop.f32.mrb[0].mxu0
        %v699 = vadd.f32 %v535, %v698
        %v700 = vpop.f32.mrb[0].mxu0
        %v701 = vpop.f32.mrb[0].mxu0
        %v702 = vadd.f32 %v538, %v701
        %v703 = vpop.f32.mrb[0].mxu0
        %704 = vmatprep.mubr.bf16.mxu0 0
        %705 = vmatmul.mubr.bf16.gmra.mrb[0].mxu0 %v636
        %v706 = vpop.f32.mrb[0].mxu0
        %v707 = vadd.f32 %v543, %v706
        %v708 = vpop.f32.mrb[0].mxu0
        %v709 = vpop.f32.mrb[0].mxu0
        %v710 = vadd.f32 %v546, %v709
        %v711 = vpop.f32.mrb[0].mxu0
        %712 = vmatprep.mubr.bf16.mxu0 0
        %713 = vmatmul.mubr.bf16.gmra.mrb[0].mxu0 %v639
        %v714 = vpop.f32.mrb[0].mxu0
        %v715 = vadd.f32 %v551, %v714
        %v716 = vpop.f32.mrb[0].mxu0
        %v717 = vpop.f32.mrb[0].mxu0
        %v718 = vadd.f32 %v554, %v717
        %v719 = vpop.f32.mrb[0].mxu0
        %720 = vmatprep.mubr.bf16.mxu0 0
        %721 = vmatmul.mubr.bf16.gmra.mrb[0].mxu0 %v642
        %v722 = vpop.f32.mrb[0].mxu0
        %v723 = vadd.f32 %v559, %v722
        %v724 = vpop.f32.mrb[0].mxu0
        %v725 = vpop.f32.mrb[0].mxu0
        %v726 = vadd.f32 %v562, %v725
        %v727 = vpop.f32.mrb[0].mxu0
        %728 = vmatprep.mubr.bf16.mxu0 0
        %729 = vmatmul.mubr.bf16.gmra.mrb[0].mxu0 %v645
        %v730 = vpop.f32.mrb[0].mxu0
        %v731 = vadd.f32 %v567, %v730
        %v732 = vpop.f32.mrb[0].mxu0
        %v733 = vpop.f32.mrb[0].mxu0
        %v734 = vadd.f32 %v570, %v733
        %v735 = vpop.f32.mrb[0].mxu0
        %736 = vmatprep.mubr.bf16.mxu0 0
        %737 = vmatmul.mubr.bf16.gmra.mrb[0].mxu0 %v648
        %v738 = vpop.f32.mrb[0].mxu0
        %v739 = vadd.f32 %v575, %v738
        %v740 = vpop.f32.mrb[0].mxu0
        %v741 = vpop.f32.mrb[0].mxu0
        %v742 = vadd.f32 %v578, %v741
        %v743 = vpop.f32.mrb[0].mxu0
        %744 = vmatprep.mubr.bf16.mxu0 0
        %745 = vmatmul.mubr.bf16.gmra.mrb[0].mxu0 %v651
        %v746 = vpop.f32.mrb[0].mxu0
        %v747 = vadd.f32 %v583, %v746
        %v748 = vpop.f32.mrb[0].mxu0
        %v749 = vpop.f32.mrb[0].mxu0
        %v750 = vadd.f32 %v586, %v749
        %v751 = vpop.f32.mrb[0].mxu0
        %752 = vdwg.mxu0
        %vm761 = vcmask 1042432
        %vm762 = vcmask 1046532
        %vm763 = vmor %vm761, %vm762
        %v764 = vrot.slane %v211, 5
        %v765 = vrot.slane %v764, 4
        %v766 = vrot.slane %v212, 5
        %v767 = vsel %vm763, %v765, %v766
        %v768 = vrot.slane %v766, 4
        %v769 = vrot.slane %v213, 5
        %v770 = vsel %vm763, %v768, %v769
        %v771 = vrot.slane %v214, 5
        %v772 = vrot.slane %v771, 4
        %v773 = vrot.slane %v215, 5
        %v774 = vsel %vm763, %v772, %v773
        %v775 = vrot.slane %v773, 4
        %v776 = vrot.slane %v216, 5
        %v777 = vsel %vm763, %v775, %v776
        %v778 = vrot.slane %v217, 5
        %v779 = vrot.slane %v778, 4
        %v780 = vrot.slane %v218, 5
        %v781 = vsel %vm763, %v779, %v780
        %v782 = vrot.slane %v780, 4
        %v783 = vrot.slane %v219, 5
        %v784 = vsel %vm763, %v782, %v783
        %v785 = vrot.slane %v220, 5
        %v786 = vrot.slane %v785, 4
        %v787 = vrot.slane %v221, 5
        %v788 = vsel %vm763, %v786, %v787
        %v789 = vrot.slane %v787, 4
        %v790 = vrot.slane %v222, 5
        %v791 = vsel %vm763, %v789, %v790
        %v792 = vrot.slane %v223, 5
        %v793 = vrot.slane %v792, 4
        %v794 = vrot.slane %v224, 5
        %v795 = vsel %vm763, %v793, %v794
        %v796 = vrot.slane %v794, 4
        %v797 = vrot.slane %v225, 5
        %v798 = vsel %vm763, %v796, %v797
        %v799 = vrot.slane %v226, 5
        %v800 = vrot.slane %v799, 4
        %v801 = vrot.slane %v227, 5
        %v802 = vsel %vm763, %v800, %v801
        %v803 = vrot.slane %v801, 4
        %v804 = vrot.slane %v228, 5
        %v805 = vsel %vm763, %v803, %v804
        %v806 = vrot.slane %v229, 5
        %v807 = vrot.slane %v806, 4
        %v808 = vrot.slane %v230, 5
        %v809 = vsel %vm763, %v807, %v808
        %v810 = vrot.slane %v808, 4
        %v811 = vrot.slane %v231, 5
        %v812 = vsel %vm763, %v810, %v811
        %v813 = vrot.slane %v232, 5
        %v814 = vrot.slane %v813, 4
        %v815 = vrot.slane %v233, 5
        %v816 = vsel %vm763, %v814, %v815
        %v817 = vrot.slane %v815, 4
        %v818 = vrot.slane %v234, 5
        %v819 = vsel %vm763, %v817, %v818
        %s820 = scalar_lea.vmem %s1, 4
        %v821 = vld [vmem:[%s820] sm:$0x3]
        %v822 = vunpack.c.l.b16 %v767
        %v823 = vunpack.c.l.b16 %v770
        %v824 = vunpack.c.l.b16 %v774
        %v825 = vunpack.c.l.b16 %v777
        %v826 = vunpack.c.l.b16 %v781
        %v827 = vunpack.c.l.b16 %v784
        %v828 = vunpack.c.l.b16 %v788
        %v829 = vunpack.c.l.b16 %v791
        %v830 = vunpack.c.l.b16 %v795
        %v831 = vunpack.c.l.b16 %v798
        %v832 = vunpack.c.l.b16 %v802
        %v833 = vunpack.c.l.b16 %v805
        %v834 = vunpack.c.l.b16 %v809
        %v835 = vunpack.c.l.b16 %v812
        %v836 = vunpack.c.l.b16 %v816
        %v837 = vunpack.c.l.b16 %v819
        %v838 = vpack.c.b16 %v823, %v822
        %v839 = vpack.c.b16 %v825, %v824
        %v840 = vpack.c.b16 %v827, %v826
        %v841 = vpack.c.b16 %v829, %v828
        %v842 = vpack.c.b16 %v831, %v830
        %v843 = vpack.c.b16 %v833, %v832
        %v844 = vpack.c.b16 %v835, %v834
        %v845 = vpack.c.b16 %v837, %v836
        %v847 = vsel %vm463, %v838, 0
        %v850 = vsel %vm463, %v839, 0
        %v853 = vsel %vm463, %v840, 0
        %v856 = vsel %vm463, %v841, 0
        %v859 = vsel %vm463, %v842, 0
        %v862 = vsel %vm463, %v843, 0
        %v865 = vsel %vm463, %v844, 0
        %v868 = vsel %vm463, %v845, 0
        %v871 = vsel %vm488, %v821, 0
        %873 = vmatprep.subr.bf16.mxu0 0
        %874 = vmatpush1.bf16.msra.mxu0 %v871
        %875 = vmatprep.subr.bf16.mxu0 0
        %876 = vmatpush1.bf16.msra.mxu0 0
        %877 = vmatprep.subr.bf16.mxu0 0
        %878 = vmatpush1.bf16.msra.mxu0 0
        %879 = vmatprep.subr.bf16.mxu0 0
        %880 = vmatpush1.bf16.msra.mxu0 0
        %881 = vmatprep.subr.bf16.mxu0 0
        %882 = vmatpush1.bf16.msra.mxu0 0
        %883 = vmatprep.subr.bf16.mxu0 0
        %884 = vmatpush1.bf16.msra.mxu0 0
        %885 = vmatprep.subr.bf16.mxu0 0
        %886 = vmatpush1.bf16.msra.mxu0 0
        %887 = vmatprep.subr.bf16.mxu0 0
        %888 = vmatpush1.bf16.msra.mxu0 0
        %889 = vmatprep.subr.bf16.mxu0 0
        %890 = vmatpush1.bf16.msra.mxu0 0
        %891 = vmatprep.subr.bf16.mxu0 0
        %892 = vmatpush1.bf16.msra.mxu0 0
        %893 = vmatprep.subr.bf16.mxu0 0
        %894 = vmatpush1.bf16.msra.mxu0 0
        %895 = vmatprep.subr.bf16.mxu0 0
        %896 = vmatpush1.bf16.msra.mxu0 0
        %897 = vmatprep.subr.bf16.mxu0 0
        %898 = vmatpush1.bf16.msra.mxu0 0
        %899 = vmatprep.subr.bf16.mxu0 0
        %900 = vmatpush1.bf16.msra.mxu0 0
        %901 = vmatprep.subr.bf16.mxu0 0
        %902 = vmatpush1.bf16.msra.mxu0 0
        %903 = vmatprep.subr.bf16.mxu0 0
        %904 = vmatpush1.bf16.msra.mxu0 0
        %905 = vmatprep.mubr.bf16.mxu0 0
        %906 = vmatmul.mubr.bf16.gmra.mrb[0].mxu0 %v847
        %v907 = vpop.f32.mrb[0].mxu0
        %v908 = vadd.f32 0.0, %v907
        %v909 = vpop.f32.mrb[0].mxu0
        %v910 = vpop.f32.mrb[0].mxu0
        %v911 = vadd.f32 0.0, %v910
        %v912 = vpop.f32.mrb[0].mxu0
        %913 = vmatprep.mubr.bf16.mxu0 0
        %914 = vmatmul.mubr.bf16.gmra.mrb[0].mxu0 %v850
        %v915 = vpop.f32.mrb[0].mxu0
        %v916 = vadd.f32 0.0, %v915
        %v917 = vpop.f32.mrb[0].mxu0
        %v918 = vpop.f32.mrb[0].mxu0
        %v919 = vadd.f32 0.0, %v918
        %v920 = vpop.f32.mrb[0].mxu0
        %921 = vmatprep.mubr.bf16.mxu0 0
        %922 = vmatmul.mubr.bf16.gmra.mrb[0].mxu0 %v853
        %v923 = vpop.f32.mrb[0].mxu0
        %v924 = vadd.f32 0.0, %v923
        %v925 = vpop.f32.mrb[0].mxu0
        %v926 = vpop.f32.mrb[0].mxu0
        %v927 = vadd.f32 0.0, %v926
        %v928 = vpop.f32.mrb[0].mxu0
        %929 = vmatprep.mubr.bf16.mxu0 0
        %930 = vmatmul.mubr.bf16.gmra.mrb[0].mxu0 %v856
        %v931 = vpop.f32.mrb[0].mxu0
        %v932 = vadd.f32 0.0, %v931
        %v933 = vpop.f32.mrb[0].mxu0
        %v934 = vpop.f32.mrb[0].mxu0
        %v935 = vadd.f32 0.0, %v934
        %v936 = vpop.f32.mrb[0].mxu0
        %937 = vmatprep.mubr.bf16.mxu0 0
        %938 = vmatmul.mubr.bf16.gmra.mrb[0].mxu0 %v859
        %v939 = vpop.f32.mrb[0].mxu0
        %v940 = vadd.f32 0.0, %v939
        %v941 = vpop.f32.mrb[0].mxu0
        %v942 = vpop.f32.mrb[0].mxu0
        %v943 = vadd.f32 0.0, %v942
        %v944 = vpop.f32.mrb[0].mxu0
        %945 = vmatprep.mubr.bf16.mxu0 0
        %946 = vmatmul.mubr.bf16.gmra.mrb[0].mxu0 %v862
        %v947 = vpop.f32.mrb[0].mxu0
        %v948 = vadd.f32 0.0, %v947
        %v949 = vpop.f32.mrb[0].mxu0
        %v950 = vpop.f32.mrb[0].mxu0
        %v951 = vadd.f32 0.0, %v950
        %v952 = vpop.f32.mrb[0].mxu0
        %953 = vmatprep.mubr.bf16.mxu0 0
        %954 = vmatmul.mubr.bf16.gmra.mrb[0].mxu0 %v865
        %v955 = vpop.f32.mrb[0].mxu0
        %v956 = vadd.f32 0.0, %v955
        %v957 = vpop.f32.mrb[0].mxu0
        %v958 = vpop.f32.mrb[0].mxu0
        %v959 = vadd.f32 0.0, %v958
        %v960 = vpop.f32.mrb[0].mxu0
        %961 = vmatprep.mubr.bf16.mxu0 0
        %962 = vmatmul.mubr.bf16.gmra.mrb[0].mxu0 %v868
        %v963 = vpop.f32.mrb[0].mxu0
        %v964 = vadd.f32 0.0, %v963
        %v965 = vpop.f32.mrb[0].mxu0
        %v966 = vpop.f32.mrb[0].mxu0
        %v967 = vadd.f32 0.0, %v966
        %v968 = vpop.f32.mrb[0].mxu0
        %969 = vdwg.mxu0
        %v970 = vadd.f32 %v691, %v908
        %v971 = vadd.f32 %v694, %v911
        %v972 = vadd.f32 %v699, %v916
        %v973 = vadd.f32 %v702, %v919
        %v974 = vadd.f32 %v707, %v924
        %v975 = vadd.f32 %v710, %v927
        %v976 = vadd.f32 %v715, %v932
        %v977 = vadd.f32 %v718, %v935
        %v978 = vadd.f32 %v723, %v940
        %v979 = vadd.f32 %v726, %v943
        %v980 = vadd.f32 %v731, %v948
        %v981 = vadd.f32 %v734, %v951
        %v982 = vadd.f32 %v739, %v956
        %v983 = vadd.f32 %v742, %v959
        %v984 = vadd.f32 %v747, %v964
        %v985 = vadd.f32 %v750, %v967
        %s986 = scalar_lea.vmem %s1, 6
        %v987 = vld [vmem:[%s986] sm:$0x3]
        %v990 = vunpack.c.l.b16 %v235
        %v991 = vunpack.c.l.b16 %v236
        %v992 = vpack.c.b16 %v991, %v990
        %v994 = vsel %vm463, %v992, 0
        %v997 = vsel %vm488, %v987, 0
        %999 = vmatprep.subr.bf16.mxu0 0
        %1000 = vmatpush1.bf16.msra.mxu0 %v997
        %1001 = vmatprep.subr.bf16.mxu0 0
        %1002 = vmatpush1.bf16.msra.mxu0 0
        %1003 = vmatprep.subr.bf16.mxu0 0
        %1004 = vmatpush1.bf16.msra.mxu0 0
        %1005 = vmatprep.subr.bf16.mxu0 0
        %1006 = vmatpush1.bf16.msra.mxu0 0
        %1007 = vmatprep.subr.bf16.mxu0 0
        %1008 = vmatpush1.bf16.msra.mxu0 0
        %1009 = vmatprep.subr.bf16.mxu0 0
        %1010 = vmatpush1.bf16.msra.mxu0 0
        %1011 = vmatprep.subr.bf16.mxu0 0
        %1012 = vmatpush1.bf16.msra.mxu0 0
        %1013 = vmatprep.subr.bf16.mxu0 0
        %1014 = vmatpush1.bf16.msra.mxu0 0
        %1015 = vmatprep.subr.bf16.mxu0 0
        %1016 = vmatpush1.bf16.msra.mxu0 0
        %1017 = vmatprep.subr.bf16.mxu0 0
        %1018 = vmatpush1.bf16.msra.mxu0 0
        %1019 = vmatprep.subr.bf16.mxu0 0
        %1020 = vmatpush1.bf16.msra.mxu0 0
        %1021 = vmatprep.subr.bf16.mxu0 0
        %1022 = vmatpush1.bf16.msra.mxu0 0
        %1023 = vmatprep.subr.bf16.mxu0 0
        %1024 = vmatpush1.bf16.msra.mxu0 0
        %1025 = vmatprep.subr.bf16.mxu0 0
        %1026 = vmatpush1.bf16.msra.mxu0 0
        %1027 = vmatprep.subr.bf16.mxu0 0
        %1028 = vmatpush1.bf16.msra.mxu0 0
        %1029 = vmatprep.subr.bf16.mxu0 0
        %1030 = vmatpush1.bf16.msra.mxu0 0
        %1031 = vmatprep.mubr.bf16.mxu0 0
        %1032 = vmatmul.mubr.bf16.gmra.mrb[0].mxu0 %v633
        %v1033 = vpop.f32.mrb[0].mxu0
        %v1034 = vadd.f32 0.0, %v1033
        %v1035 = vpop.f32.mrb[0].mxu0
        %v1036 = vpop.f32.mrb[0].mxu0
        %v1037 = vadd.f32 0.0, %v1036
        %v1038 = vpop.f32.mrb[0].mxu0
        %1039 = vmatprep.mubr.bf16.mxu0 0
        %1040 = vmatmul.mubr.bf16.gmra.mrb[0].mxu0 %v636
        %v1041 = vpop.f32.mrb[0].mxu0
        %v1042 = vadd.f32 0.0, %v1041
        %v1043 = vpop.f32.mrb[0].mxu0
        %v1044 = vpop.f32.mrb[0].mxu0
        %v1045 = vadd.f32 0.0, %v1044
        %v1046 = vpop.f32.mrb[0].mxu0
        %1047 = vmatprep.mubr.bf16.mxu0 0
        %1048 = vmatmul.mubr.bf16.gmra.mrb[0].mxu0 %v639
        %v1049 = vpop.f32.mrb[0].mxu0
        %v1050 = vadd.f32 0.0, %v1049
        %v1051 = vpop.f32.mrb[0].mxu0
        %v1052 = vpop.f32.mrb[0].mxu0
        %v1053 = vadd.f32 0.0, %v1052
        %v1054 = vpop.f32.mrb[0].mxu0
        %1055 = vmatprep.mubr.bf16.mxu0 0
        %1056 = vmatmul.mubr.bf16.gmra.mrb[0].mxu0 %v642
        %v1057 = vpop.f32.mrb[0].mxu0
        %v1058 = vadd.f32 0.0, %v1057
        %v1059 = vpop.f32.mrb[0].mxu0
        %v1060 = vpop.f32.mrb[0].mxu0
        %v1061 = vadd.f32 0.0, %v1060
        %v1062 = vpop.f32.mrb[0].mxu0
        %1063 = vmatprep.mubr.bf16.mxu0 0
        %1064 = vmatmul.mubr.bf16.gmra.mrb[0].mxu0 %v645
        %v1065 = vpop.f32.mrb[0].mxu0
        %v1066 = vadd.f32 0.0, %v1065
        %v1067 = vpop.f32.mrb[0].mxu0
        %v1068 = vpop.f32.mrb[0].mxu0
        %v1069 = vadd.f32 0.0, %v1068
        %v1070 = vpop.f32.mrb[0].mxu0
        %1071 = vmatprep.mubr.bf16.mxu0 0
        %1072 = vmatmul.mubr.bf16.gmra.mrb[0].mxu0 %v648
        %v1073 = vpop.f32.mrb[0].mxu0
        %v1074 = vadd.f32 0.0, %v1073
        %v1075 = vpop.f32.mrb[0].mxu0
        %v1076 = vpop.f32.mrb[0].mxu0
        %v1077 = vadd.f32 0.0, %v1076
        %v1078 = vpop.f32.mrb[0].mxu0
        %1079 = vmatprep.mubr.bf16.mxu0 0
        %1080 = vmatmul.mubr.bf16.gmra.mrb[0].mxu0 %v651
        %v1081 = vpop.f32.mrb[0].mxu0
        %v1082 = vadd.f32 0.0, %v1081
        %v1083 = vpop.f32.mrb[0].mxu0
        %v1084 = vpop.f32.mrb[0].mxu0
        %v1085 = vadd.f32 0.0, %v1084
        %v1086 = vpop.f32.mrb[0].mxu0
        %1087 = vmatprep.mubr.bf16.mxu0 0
        %1088 = vmatmul.mubr.bf16.gmra.mrb[0].mxu0 %v994
        %v1089 = vpop.f32.mrb[0].mxu0
        %v1090 = vadd.f32 0.0, %v1089
        %v1091 = vpop.f32.mrb[0].mxu0
        %v1092 = vpop.f32.mrb[0].mxu0
        %v1093 = vadd.f32 0.0, %v1092
        %v1094 = vpop.f32.mrb[0].mxu0
        %1095 = vdwg.mxu0
        %v1096 = vadd.f32 %v970, %v1034
        %v1097 = vadd.f32 %v971, %v1037
        %v1098 = vadd.f32 %v972, %v1042
        %v1099 = vadd.f32 %v973, %v1045
        %v1100 = vadd.f32 %v974, %v1050
        %v1101 = vadd.f32 %v975, %v1053
        %v1102 = vadd.f32 %v976, %v1058
        %v1103 = vadd.f32 %v977, %v1061
        %v1104 = vadd.f32 %v978, %v1066
        %v1105 = vadd.f32 %v979, %v1069
        %v1106 = vadd.f32 %v980, %v1074
        %v1107 = vadd.f32 %v981, %v1077
        %v1108 = vadd.f32 %v982, %v1082
        %v1109 = vadd.f32 %v983, %v1085
        %v1110 = vadd.f32 %v984, %v1090
        %v1111 = vadd.f32 %v985, %v1093
        %v1113 = vshrl.u32 %v235, 16
        %v1115 = vrot.slane %v1113, 4
        %v1116 = vshll.u32 %v235, 16
        %v1118 = vrot.slane %v1116, 5
        %v1119 = vor.u32 %v1115, %v1118
        %v1120 = vrot.slane %v1119, 4
        %v1122 = vshll.u32 %v236, 16
        %v1124 = vrot.slane %v1122, 5
        %v1125 = vsel %vm244, %v1120, %v1124
        %v1126 = vshrl.u32 %v236, 16
        %v1128 = vrot.slane %v1126, 4
        %v1129 = vor.u32 %v1128, %v1124
        %v1130 = vrot.slane %v1129, 4
        %v1132 = vshll.u32 %v237, 16
        %v1134 = vrot.slane %v1132, 5
        %v1135 = vsel %vm244, %v1130, %v1134
        %s1136 = scalar_lea.vmem %s1, 8
        %v1137 = vld [vmem:[%s1136] sm:$0x3]
        %v1138 = vunpack.c.l.b16 %v1125
        %v1139 = vunpack.c.l.b16 %v1135
        %v1140 = vpack.c.b16 %v1139, %v1138
        %v1142 = vsel %vm463, %v1140, 0
        %v1145 = vsel %vm488, %v1137, 0
        %1147 = vmatprep.subr.bf16.mxu0 0
        %1148 = vmatpush1.bf16.msra.mxu0 %v1145
        %1149 = vmatprep.subr.bf16.mxu0 0
        %1150 = vmatpush1.bf16.msra.mxu0 0
        %1151 = vmatprep.subr.bf16.mxu0 0
        %1152 = vmatpush1.bf16.msra.mxu0 0
        %1153 = vmatprep.subr.bf16.mxu0 0
        %1154 = vmatpush1.bf16.msra.mxu0 0
        %1155 = vmatprep.subr.bf16.mxu0 0
        %1156 = vmatpush1.bf16.msra.mxu0 0
        %1157 = vmatprep.subr.bf16.mxu0 0
        %1158 = vmatpush1.bf16.msra.mxu0 0
        %1159 = vmatprep.subr.bf16.mxu0 0
        %1160 = vmatpush1.bf16.msra.mxu0 0
        %1161 = vmatprep.subr.bf16.mxu0 0
        %1162 = vmatpush1.bf16.msra.mxu0 0
        %1163 = vmatprep.subr.bf16.mxu0 0
        %1164 = vmatpush1.bf16.msra.mxu0 0
        %1165 = vmatprep.subr.bf16.mxu0 0
        %1166 = vmatpush1.bf16.msra.mxu0 0
        %1167 = vmatprep.subr.bf16.mxu0 0
        %1168 = vmatpush1.bf16.msra.mxu0 0
        %1169 = vmatprep.subr.bf16.mxu0 0
        %1170 = vmatpush1.bf16.msra.mxu0 0
        %1171 = vmatprep.subr.bf16.mxu0 0
        %1172 = vmatpush1.bf16.msra.mxu0 0
        %1173 = vmatprep.subr.bf16.mxu0 0
        %1174 = vmatpush1.bf16.msra.mxu0 0
        %1175 = vmatprep.subr.bf16.mxu0 0
        %1176 = vmatpush1.bf16.msra.mxu0 0
        %1177 = vmatprep.subr.bf16.mxu0 0
        %1178 = vmatpush1.bf16.msra.mxu0 0
        %1179 = vmatprep.mubr.bf16.mxu0 0
        %1180 = vmatmul.mubr.bf16.gmra.mrb[0].mxu0 %v468
        %v1181 = vpop.f32.mrb[0].mxu0
        %v1182 = vadd.f32 0.0, %v1181
        %v1183 = vpop.f32.mrb[0].mxu0
        %v1184 = vpop.f32.mrb[0].mxu0
        %v1185 = vadd.f32 0.0, %v1184
        %v1186 = vpop.f32.mrb[0].mxu0
        %1187 = vmatprep.mubr.bf16.mxu0 0
        %1188 = vmatmul.mubr.bf16.gmra.mrb[0].mxu0 %v471
        %v1189 = vpop.f32.mrb[0].mxu0
        %v1190 = vadd.f32 0.0, %v1189
        %v1191 = vpop.f32.mrb[0].mxu0
        %v1192 = vpop.f32.mrb[0].mxu0
        %v1193 = vadd.f32 0.0, %v1192
        %v1194 = vpop.f32.mrb[0].mxu0
        %1195 = vmatprep.mubr.bf16.mxu0 0
        %1196 = vmatmul.mubr.bf16.gmra.mrb[0].mxu0 %v474
        %v1197 = vpop.f32.mrb[0].mxu0
        %v1198 = vadd.f32 0.0, %v1197
        %v1199 = vpop.f32.mrb[0].mxu0
        %v1200 = vpop.f32.mrb[0].mxu0
        %v1201 = vadd.f32 0.0, %v1200
        %v1202 = vpop.f32.mrb[0].mxu0
        %1203 = vmatprep.mubr.bf16.mxu0 0
        %1204 = vmatmul.mubr.bf16.gmra.mrb[0].mxu0 %v477
        %v1205 = vpop.f32.mrb[0].mxu0
        %v1206 = vadd.f32 0.0, %v1205
        %v1207 = vpop.f32.mrb[0].mxu0
        %v1208 = vpop.f32.mrb[0].mxu0
        %v1209 = vadd.f32 0.0, %v1208
        %v1210 = vpop.f32.mrb[0].mxu0
        %1211 = vmatprep.mubr.bf16.mxu0 0
        %1212 = vmatmul.mubr.bf16.gmra.mrb[0].mxu0 %v480
        %v1213 = vpop.f32.mrb[0].mxu0
        %v1214 = vadd.f32 0.0, %v1213
        %v1215 = vpop.f32.mrb[0].mxu0
        %v1216 = vpop.f32.mrb[0].mxu0
        %v1217 = vadd.f32 0.0, %v1216
        %v1218 = vpop.f32.mrb[0].mxu0
        %1219 = vmatprep.mubr.bf16.mxu0 0
        %1220 = vmatmul.mubr.bf16.gmra.mrb[0].mxu0 %v483
        %v1221 = vpop.f32.mrb[0].mxu0
        %v1222 = vadd.f32 0.0, %v1221
        %v1223 = vpop.f32.mrb[0].mxu0
        %v1224 = vpop.f32.mrb[0].mxu0
        %v1225 = vadd.f32 0.0, %v1224
        %v1226 = vpop.f32.mrb[0].mxu0
        %1227 = vmatprep.mubr.bf16.mxu0 0
        %1228 = vmatmul.mubr.bf16.gmra.mrb[0].mxu0 %v486
        %v1229 = vpop.f32.mrb[0].mxu0
        %v1230 = vadd.f32 0.0, %v1229
        %v1231 = vpop.f32.mrb[0].mxu0
        %v1232 = vpop.f32.mrb[0].mxu0
        %v1233 = vadd.f32 0.0, %v1232
        %v1234 = vpop.f32.mrb[0].mxu0
        %1235 = vmatprep.mubr.bf16.mxu0 0
        %1236 = vmatmul.mubr.bf16.gmra.mrb[0].mxu0 %v1142
        %v1237 = vpop.f32.mrb[0].mxu0
        %v1238 = vadd.f32 0.0, %v1237
        %v1239 = vpop.f32.mrb[0].mxu0
        %v1240 = vpop.f32.mrb[0].mxu0
        %v1241 = vadd.f32 0.0, %v1240
        %v1242 = vpop.f32.mrb[0].mxu0
        %1243 = vdwg.mxu0
        %v1244 = vadd.f32 %v1096, %v1182
        %v1245 = vadd.f32 %v1097, %v1185
        %v1246 = vadd.f32 %v1098, %v1190
        %v1247 = vadd.f32 %v1099, %v1193
        %v1248 = vadd.f32 %v1100, %v1198
        %v1249 = vadd.f32 %v1101, %v1201
        %v1250 = vadd.f32 %v1102, %v1206
        %v1251 = vadd.f32 %v1103, %v1209
        %v1252 = vadd.f32 %v1104, %v1214
        %v1253 = vadd.f32 %v1105, %v1217
        %v1254 = vadd.f32 %v1106, %v1222
        %v1255 = vadd.f32 %v1107, %v1225
        %v1256 = vadd.f32 %v1108, %v1230
        %v1257 = vadd.f32 %v1109, %v1233
        %v1258 = vadd.f32 %v1110, %v1238
        %v1259 = vadd.f32 %v1111, %v1241
        %v1261 = vrot.slane %v235, 5
        %v1262 = vrot.slane %v1261, 4
        %v1263 = vrot.slane %v236, 5
        %v1264 = vsel %vm763, %v1262, %v1263
        %v1265 = vrot.slane %v1263, 4
        %v1266 = vrot.slane %v237, 5
        %v1267 = vsel %vm763, %v1265, %v1266
        %s1268 = scalar_lea.vmem %s1, 10
        %v1269 = vld [vmem:[%s1268] sm:$0x3]
        %v1270 = vunpack.c.l.b16 %v1264
        %v1271 = vunpack.c.l.b16 %v1267
        %v1272 = vpack.c.b16 %v1271, %v1270
        %v1274 = vsel %vm463, %v1272, 0
        %v1277 = vsel %vm488, %v1269, 0
        %1279 = vmatprep.subr.bf16.mxu0 0
        %1280 = vmatpush1.bf16.msra.mxu0 %v1277
        %1281 = vmatprep.subr.bf16.mxu0 0
        %1282 = vmatpush1.bf16.msra.mxu0 0
        %1283 = vmatprep.subr.bf16.mxu0 0
        %1284 = vmatpush1.bf16.msra.mxu0 0
        %1285 = vmatprep.subr.bf16.mxu0 0
        %1286 = vmatpush1.bf16.msra.mxu0 0
        %1287 = vmatprep.subr.bf16.mxu0 0
        %1288 = vmatpush1.bf16.msra.mxu0 0
        %1289 = vmatprep.subr.bf16.mxu0 0
        %1290 = vmatpush1.bf16.msra.mxu0 0
        %1291 = vmatprep.subr.bf16.mxu0 0
        %1292 = vmatpush1.bf16.msra.mxu0 0
        %1293 = vmatprep.subr.bf16.mxu0 0
        %1294 = vmatpush1.bf16.msra.mxu0 0
        %1295 = vmatprep.subr.bf16.mxu0 0
        %1296 = vmatpush1.bf16.msra.mxu0 0
        %1297 = vmatprep.subr.bf16.mxu0 0
        %1298 = vmatpush1.bf16.msra.mxu0 0
        %1299 = vmatprep.subr.bf16.mxu0 0
        %1300 = vmatpush1.bf16.msra.mxu0 0
        %1301 = vmatprep.subr.bf16.mxu0 0
        %1302 = vmatpush1.bf16.msra.mxu0 0
        %1303 = vmatprep.subr.bf16.mxu0 0
        %1304 = vmatpush1.bf16.msra.mxu0 0
        %1305 = vmatprep.subr.bf16.mxu0 0
        %1306 = vmatpush1.bf16.msra.mxu0 0
        %1307 = vmatprep.subr.bf16.mxu0 0
        %1308 = vmatpush1.bf16.msra.mxu0 0
        %1309 = vmatprep.subr.bf16.mxu0 0
        %1310 = vmatpush1.bf16.msra.mxu0 0
        %1311 = vmatprep.mubr.bf16.mxu0 0
        %1312 = vmatmul.mubr.bf16.gmra.mrb[0].mxu0 %v850
        %v1313 = vpop.f32.mrb[0].mxu0
        %v1314 = vadd.f32 0.0, %v1313
        %v1315 = vpop.f32.mrb[0].mxu0
        %v1316 = vpop.f32.mrb[0].mxu0
        %v1317 = vadd.f32 0.0, %v1316
        %v1318 = vpop.f32.mrb[0].mxu0
        %1319 = vmatprep.mubr.bf16.mxu0 0
        %1320 = vmatmul.mubr.bf16.gmra.mrb[0].mxu0 %v853
        %v1321 = vpop.f32.mrb[0].mxu0
        %v1322 = vadd.f32 0.0, %v1321
        %v1323 = vpop.f32.mrb[0].mxu0
        %v1324 = vpop.f32.mrb[0].mxu0
        %v1325 = vadd.f32 0.0, %v1324
        %v1326 = vpop.f32.mrb[0].mxu0
        %1327 = vmatprep.mubr.bf16.mxu0 0
        %1328 = vmatmul.mubr.bf16.gmra.mrb[0].mxu0 %v856
        %v1329 = vpop.f32.mrb[0].mxu0
        %v1330 = vadd.f32 0.0, %v1329
        %v1331 = vpop.f32.mrb[0].mxu0
        %v1332 = vpop.f32.mrb[0].mxu0
        %v1333 = vadd.f32 0.0, %v1332
        %v1334 = vpop.f32.mrb[0].mxu0
        %1335 = vmatprep.mubr.bf16.mxu0 0
        %1336 = vmatmul.mubr.bf16.gmra.mrb[0].mxu0 %v859
        %v1337 = vpop.f32.mrb[0].mxu0
        %v1338 = vadd.f32 0.0, %v1337
        %v1339 = vpop.f32.mrb[0].mxu0
        %v1340 = vpop.f32.mrb[0].mxu0
        %v1341 = vadd.f32 0.0, %v1340
        %v1342 = vpop.f32.mrb[0].mxu0
        %1343 = vmatprep.mubr.bf16.mxu0 0
        %1344 = vmatmul.mubr.bf16.gmra.mrb[0].mxu0 %v862
        %v1345 = vpop.f32.mrb[0].mxu0
        %v1346 = vadd.f32 0.0, %v1345
        %v1347 = vpop.f32.mrb[0].mxu0
        %v1348 = vpop.f32.mrb[0].mxu0
        %v1349 = vadd.f32 0.0, %v1348
        %v1350 = vpop.f32.mrb[0].mxu0
        %1351 = vmatprep.mubr.bf16.mxu0 0
        %1352 = vmatmul.mubr.bf16.gmra.mrb[0].mxu0 %v865
        %v1353 = vpop.f32.mrb[0].mxu0
        %v1354 = vadd.f32 0.0, %v1353
        %v1355 = vpop.f32.mrb[0].mxu0
        %v1356 = vpop.f32.mrb[0].mxu0
        %v1357 = vadd.f32 0.0, %v1356
        %v1358 = vpop.f32.mrb[0].mxu0
        %1359 = vmatprep.mubr.bf16.mxu0 0
        %1360 = vmatmul.mubr.bf16.gmra.mrb[0].mxu0 %v868
        %v1361 = vpop.f32.mrb[0].mxu0
        %v1362 = vadd.f32 0.0, %v1361
        %v1363 = vpop.f32.mrb[0].mxu0
        %v1364 = vpop.f32.mrb[0].mxu0
        %v1365 = vadd.f32 0.0, %v1364
        %v1366 = vpop.f32.mrb[0].mxu0
        %1367 = vmatprep.mubr.bf16.mxu0 0
        %1368 = vmatmul.mubr.bf16.gmra.mrb[0].mxu0 %v1274
        %v1369 = vpop.f32.mrb[0].mxu0
        %v1370 = vadd.f32 0.0, %v1369
        %v1371 = vpop.f32.mrb[0].mxu0
        %v1372 = vpop.f32.mrb[0].mxu0
        %v1373 = vadd.f32 0.0, %v1372
        %v1374 = vpop.f32.mrb[0].mxu0
        %1375 = vdwg.mxu0
        %v1376 = vadd.f32 %v1244, %v1314
        %v1377 = vadd.f32 %v1245, %v1317
        %v1378 = vadd.f32 %v1246, %v1322
        %v1379 = vadd.f32 %v1247, %v1325
        %v1380 = vadd.f32 %v1248, %v1330
        %v1381 = vadd.f32 %v1249, %v1333
        %v1382 = vadd.f32 %v1250, %v1338
        %v1383 = vadd.f32 %v1251, %v1341
        %v1384 = vadd.f32 %v1252, %v1346
        %v1385 = vadd.f32 %v1253, %v1349
        %v1386 = vadd.f32 %v1254, %v1354
        %v1387 = vadd.f32 %v1255, %v1357
        %v1388 = vadd.f32 %v1256, %v1362
        %v1389 = vadd.f32 %v1257, %v1365
        %v1390 = vadd.f32 %v1258, %v1370
        %v1391 = vadd.f32 %v1259, %v1373
        %s1392 = scalar_lea.vmem %s1, 12
        %v1393 = vld [vmem:[%s1392] sm:$0x3]
        %v1396 = vunpack.c.l.b16 %v238
        %v1397 = vunpack.c.l.b16 %v239
        %v1398 = vpack.c.b16 %v1397, %v1396
        %v1400 = vsel %vm463, %v1398, 0
        %v1403 = vsel %vm488, %v1393, 0
        %1405 = vmatprep.subr.bf16.mxu0 0
        %1406 = vmatpush1.bf16.msra.mxu0 %v1403
        %1407 = vmatprep.subr.bf16.mxu0 0
        %1408 = vmatpush1.bf16.msra.mxu0 0
        %1409 = vmatprep.subr.bf16.mxu0 0
        %1410 = vmatpush1.bf16.msra.mxu0 0
        %1411 = vmatprep.subr.bf16.mxu0 0
        %1412 = vmatpush1.bf16.msra.mxu0 0
        %1413 = vmatprep.subr.bf16.mxu0 0
        %1414 = vmatpush1.bf16.msra.mxu0 0
        %1415 = vmatprep.subr.bf16.mxu0 0
        %1416 = vmatpush1.bf16.msra.mxu0 0
        %1417 = vmatprep.subr.bf16.mxu0 0
        %1418 = vmatpush1.bf16.msra.mxu0 0
        %1419 = vmatprep.subr.bf16.mxu0 0
        %1420 = vmatpush1.bf16.msra.mxu0 0
        %1421 = vmatprep.subr.bf16.mxu0 0
        %1422 = vmatpush1.bf16.msra.mxu0 0
        %1423 = vmatprep.subr.bf16.mxu0 0
        %1424 = vmatpush1.bf16.msra.mxu0 0
        %1425 = vmatprep.subr.bf16.mxu0 0
        %1426 = vmatpush1.bf16.msra.mxu0 0
        %1427 = vmatprep.subr.bf16.mxu0 0
        %1428 = vmatpush1.bf16.msra.mxu0 0
        %1429 = vmatprep.subr.bf16.mxu0 0
        %1430 = vmatpush1.bf16.msra.mxu0 0
        %1431 = vmatprep.subr.bf16.mxu0 0
        %1432 = vmatpush1.bf16.msra.mxu0 0
        %1433 = vmatprep.subr.bf16.mxu0 0
        %1434 = vmatpush1.bf16.msra.mxu0 0
        %1435 = vmatprep.subr.bf16.mxu0 0
        %1436 = vmatpush1.bf16.msra.mxu0 0
        %1437 = vmatprep.mubr.bf16.mxu0 0
        %1438 = vmatmul.mubr.bf16.gmra.mrb[0].mxu0 %v636
        %v1439 = vpop.f32.mrb[0].mxu0
        %v1440 = vadd.f32 0.0, %v1439
        %v1441 = vpop.f32.mrb[0].mxu0
        %v1442 = vpop.f32.mrb[0].mxu0
        %v1443 = vadd.f32 0.0, %v1442
        %v1444 = vpop.f32.mrb[0].mxu0
        %1445 = vmatprep.mubr.bf16.mxu0 0
        %1446 = vmatmul.mubr.bf16.gmra.mrb[0].mxu0 %v639
        %v1447 = vpop.f32.mrb[0].mxu0
        %v1448 = vadd.f32 0.0, %v1447
        %v1449 = vpop.f32.mrb[0].mxu0
        %v1450 = vpop.f32.mrb[0].mxu0
        %v1451 = vadd.f32 0.0, %v1450
        %v1452 = vpop.f32.mrb[0].mxu0
        %1453 = vmatprep.mubr.bf16.mxu0 0
        %1454 = vmatmul.mubr.bf16.gmra.mrb[0].mxu0 %v642
        %v1455 = vpop.f32.mrb[0].mxu0
        %v1456 = vadd.f32 0.0, %v1455
        %v1457 = vpop.f32.mrb[0].mxu0
        %v1458 = vpop.f32.mrb[0].mxu0
        %v1459 = vadd.f32 0.0, %v1458
        %v1460 = vpop.f32.mrb[0].mxu0
        %1461 = vmatprep.mubr.bf16.mxu0 0
        %1462 = vmatmul.mubr.bf16.gmra.mrb[0].mxu0 %v645
        %v1463 = vpop.f32.mrb[0].mxu0
        %v1464 = vadd.f32 0.0, %v1463
        %v1465 = vpop.f32.mrb[0].mxu0
        %v1466 = vpop.f32.mrb[0].mxu0
        %v1467 = vadd.f32 0.0, %v1466
        %v1468 = vpop.f32.mrb[0].mxu0
        %1469 = vmatprep.mubr.bf16.mxu0 0
        %1470 = vmatmul.mubr.bf16.gmra.mrb[0].mxu0 %v648
        %v1471 = vpop.f32.mrb[0].mxu0
        %v1472 = vadd.f32 0.0, %v1471
        %v1473 = vpop.f32.mrb[0].mxu0
        %v1474 = vpop.f32.mrb[0].mxu0
        %v1475 = vadd.f32 0.0, %v1474
        %v1476 = vpop.f32.mrb[0].mxu0
        %1477 = vmatprep.mubr.bf16.mxu0 0
        %1478 = vmatmul.mubr.bf16.gmra.mrb[0].mxu0 %v651
        %v1479 = vpop.f32.mrb[0].mxu0
        %v1480 = vadd.f32 0.0, %v1479
        %v1481 = vpop.f32.mrb[0].mxu0
        %v1482 = vpop.f32.mrb[0].mxu0
        %v1483 = vadd.f32 0.0, %v1482
        %v1484 = vpop.f32.mrb[0].mxu0
        %1485 = vmatprep.mubr.bf16.mxu0 0
        %1486 = vmatmul.mubr.bf16.gmra.mrb[0].mxu0 %v994
        %v1487 = vpop.f32.mrb[0].mxu0
        %v1488 = vadd.f32 0.0, %v1487
        %v1489 = vpop.f32.mrb[0].mxu0
        %v1490 = vpop.f32.mrb[0].mxu0
        %v1491 = vadd.f32 0.0, %v1490
        %v1492 = vpop.f32.mrb[0].mxu0
        %1493 = vmatprep.mubr.bf16.mxu0 0
        %1494 = vmatmul.mubr.bf16.gmra.mrb[0].mxu0 %v1400
        %v1495 = vpop.f32.mrb[0].mxu0
        %v1496 = vadd.f32 0.0, %v1495
        %v1497 = vpop.f32.mrb[0].mxu0
        %v1498 = vpop.f32.mrb[0].mxu0
        %v1499 = vadd.f32 0.0, %v1498
        %v1500 = vpop.f32.mrb[0].mxu0
        %1501 = vdwg.mxu0
        %v1502 = vadd.f32 %v1376, %v1440
        %v1503 = vadd.f32 %v1377, %v1443
        %v1504 = vadd.f32 %v1378, %v1448
        %v1505 = vadd.f32 %v1379, %v1451
        %v1506 = vadd.f32 %v1380, %v1456
        %v1507 = vadd.f32 %v1381, %v1459
        %v1508 = vadd.f32 %v1382, %v1464
        %v1509 = vadd.f32 %v1383, %v1467
        %v1510 = vadd.f32 %v1384, %v1472
        %v1511 = vadd.f32 %v1385, %v1475
        %v1512 = vadd.f32 %v1386, %v1480
        %v1513 = vadd.f32 %v1387, %v1483
        %v1514 = vadd.f32 %v1388, %v1488
        %v1515 = vadd.f32 %v1389, %v1491
        %v1516 = vadd.f32 %v1390, %v1496
        %v1517 = vadd.f32 %v1391, %v1499
        %v1519 = vshrl.u32 %v238, 16
        %v1521 = vrot.slane %v1519, 4
        %v1522 = vshll.u32 %v238, 16
        %v1524 = vrot.slane %v1522, 5
        %v1525 = vor.u32 %v1521, %v1524
        %v1526 = vrot.slane %v1525, 4
        %v1528 = vshll.u32 %v239, 16
        %v1530 = vrot.slane %v1528, 5
        %v1531 = vsel %vm244, %v1526, %v1530
        %v1532 = vshrl.u32 %v239, 16
        %v1534 = vrot.slane %v1532, 4
        %v1535 = vor.u32 %v1534, %v1530
        %v1536 = vrot.slane %v1535, 4
        %v1538 = vshll.u32 %v240, 16
        %v1540 = vrot.slane %v1538, 5
        %v1541 = vsel %vm244, %v1536, %v1540
        %s1542 = scalar_lea.vmem %s1, 14
        %v1543 = vld [vmem:[%s1542] sm:$0x3]
        %v1544 = vunpack.c.l.b16 %v1531
        %v1545 = vunpack.c.l.b16 %v1541
        %v1546 = vpack.c.b16 %v1545, %v1544
        %v1548 = vsel %vm463, %v1546, 0
        %v1551 = vsel %vm488, %v1543, 0
        %1553 = vmatprep.subr.bf16.mxu0 0
        %1554 = vmatpush1.bf16.msra.mxu0 %v1551
        %1555 = vmatprep.subr.bf16.mxu0 0
        %1556 = vmatpush1.bf16.msra.mxu0 0
        %1557 = vmatprep.subr.bf16.mxu0 0
        %1558 = vmatpush1.bf16.msra.mxu0 0
        %1559 = vmatprep.subr.bf16.mxu0 0
        %1560 = vmatpush1.bf16.msra.mxu0 0
        %1561 = vmatprep.subr.bf16.mxu0 0
        %1562 = vmatpush1.bf16.msra.mxu0 0
        %1563 = vmatprep.subr.bf16.mxu0 0
        %1564 = vmatpush1.bf16.msra.mxu0 0
        %1565 = vmatprep.subr.bf16.mxu0 0
        %1566 = vmatpush1.bf16.msra.mxu0 0
        %1567 = vmatprep.subr.bf16.mxu0 0
        %1568 = vmatpush1.bf16.msra.mxu0 0
        %1569 = vmatprep.subr.bf16.mxu0 0
        %1570 = vmatpush1.bf16.msra.mxu0 0
        %1571 = vmatprep.subr.bf16.mxu0 0
        %1572 = vmatpush1.bf16.msra.mxu0 0
        %1573 = vmatprep.subr.bf16.mxu0 0
        %1574 = vmatpush1.bf16.msra.mxu0 0
        %1575 = vmatprep.subr.bf16.mxu0 0
        %1576 = vmatpush1.bf16.msra.mxu0 0
        %1577 = vmatprep.subr.bf16.mxu0 0
        %1578 = vmatpush1.bf16.msra.mxu0 0
        %1579 = vmatprep.subr.bf16.mxu0 0
        %1580 = vmatpush1.bf16.msra.mxu0 0
        %1581 = vmatprep.subr.bf16.mxu0 0
        %1582 = vmatpush1.bf16.msra.mxu0 0
        %1583 = vmatprep.subr.bf16.mxu0 0
        %1584 = vmatpush1.bf16.msra.mxu0 0
        %1585 = vmatprep.mubr.bf16.mxu0 0
        %1586 = vmatmul.mubr.bf16.gmra.mrb[0].mxu0 %v471
        %v1587 = vpop.f32.mrb[0].mxu0
        %v1588 = vadd.f32 0.0, %v1587
        %v1589 = vpop.f32.mrb[0].mxu0
        %v1590 = vpop.f32.mrb[0].mxu0
        %v1591 = vadd.f32 0.0, %v1590
        %v1592 = vpop.f32.mrb[0].mxu0
        %1593 = vmatprep.mubr.bf16.mxu0 0
        %1594 = vmatmul.mubr.bf16.gmra.mrb[0].mxu0 %v474
        %v1595 = vpop.f32.mrb[0].mxu0
        %v1596 = vadd.f32 0.0, %v1595
        %v1597 = vpop.f32.mrb[0].mxu0
        %v1598 = vpop.f32.mrb[0].mxu0
        %v1599 = vadd.f32 0.0, %v1598
        %v1600 = vpop.f32.mrb[0].mxu0
        %1601 = vmatprep.mubr.bf16.mxu0 0
        %1602 = vmatmul.mubr.bf16.gmra.mrb[0].mxu0 %v477
        %v1603 = vpop.f32.mrb[0].mxu0
        %v1604 = vadd.f32 0.0, %v1603
        %v1605 = vpop.f32.mrb[0].mxu0
        %v1606 = vpop.f32.mrb[0].mxu0
        %v1607 = vadd.f32 0.0, %v1606
        %v1608 = vpop.f32.mrb[0].mxu0
        %1609 = vmatprep.mubr.bf16.mxu0 0
        %1610 = vmatmul.mubr.bf16.gmra.mrb[0].mxu0 %v480
        %v1611 = vpop.f32.mrb[0].mxu0
        %v1612 = vadd.f32 0.0, %v1611
        %v1613 = vpop.f32.mrb[0].mxu0
        %v1614 = vpop.f32.mrb[0].mxu0
        %v1615 = vadd.f32 0.0, %v1614
        %v1616 = vpop.f32.mrb[0].mxu0
        %1617 = vmatprep.mubr.bf16.mxu0 0
        %1618 = vmatmul.mubr.bf16.gmra.mrb[0].mxu0 %v483
        %v1619 = vpop.f32.mrb[0].mxu0
        %v1620 = vadd.f32 0.0, %v1619
        %v1621 = vpop.f32.mrb[0].mxu0
        %v1622 = vpop.f32.mrb[0].mxu0
        %v1623 = vadd.f32 0.0, %v1622
        %v1624 = vpop.f32.mrb[0].mxu0
        %1625 = vmatprep.mubr.bf16.mxu0 0
        %1626 = vmatmul.mubr.bf16.gmra.mrb[0].mxu0 %v486
        %v1627 = vpop.f32.mrb[0].mxu0
        %v1628 = vadd.f32 0.0, %v1627
        %v1629 = vpop.f32.mrb[0].mxu0
        %v1630 = vpop.f32.mrb[0].mxu0
        %v1631 = vadd.f32 0.0, %v1630
        %v1632 = vpop.f32.mrb[0].mxu0
        %1633 = vmatprep.mubr.bf16.mxu0 0
        %1634 = vmatmul.mubr.bf16.gmra.mrb[0].mxu0 %v1142
        %v1635 = vpop.f32.mrb[0].mxu0
        %v1636 = vadd.f32 0.0, %v1635
        %v1637 = vpop.f32.mrb[0].mxu0
        %v1638 = vpop.f32.mrb[0].mxu0
        %v1639 = vadd.f32 0.0, %v1638
        %v1640 = vpop.f32.mrb[0].mxu0
        %1641 = vmatprep.mubr.bf16.mxu0 0
        %1642 = vmatmul.mubr.bf16.gmra.mrb[0].mxu0 %v1548
        %v1643 = vpop.f32.mrb[0].mxu0
        %v1644 = vadd.f32 0.0, %v1643
        %v1645 = vpop.f32.mrb[0].mxu0
        %v1646 = vpop.f32.mrb[0].mxu0
        %v1647 = vadd.f32 0.0, %v1646
        %v1648 = vpop.f32.mrb[0].mxu0
        %1649 = vdwg.mxu0
        %v1650 = vadd.f32 %v1502, %v1588
        %v1651 = vadd.f32 %v1503, %v1591
        %v1652 = vadd.f32 %v1504, %v1596
        %v1653 = vadd.f32 %v1505, %v1599
        %v1654 = vadd.f32 %v1506, %v1604
        %v1655 = vadd.f32 %v1507, %v1607
        %v1656 = vadd.f32 %v1508, %v1612
        %v1657 = vadd.f32 %v1509, %v1615
        %v1658 = vadd.f32 %v1510, %v1620
        %v1659 = vadd.f32 %v1511, %v1623
        %v1660 = vadd.f32 %v1512, %v1628
        %v1661 = vadd.f32 %v1513, %v1631
        %v1662 = vadd.f32 %v1514, %v1636
        %v1663 = vadd.f32 %v1515, %v1639
        %v1664 = vadd.f32 %v1516, %v1644
        %v1665 = vadd.f32 %v1517, %v1647
        %v1667 = vrot.slane %v238, 5
        %v1668 = vrot.slane %v1667, 4
        %v1669 = vrot.slane %v239, 5
        %v1670 = vsel %vm763, %v1668, %v1669
        %v1671 = vrot.slane %v1669, 4
        %v1672 = vrot.slane %v240, 5
        %v1673 = vsel %vm763, %v1671, %v1672
        %s1674 = scalar_lea.vmem %s1, 16
        %v1675 = vld [vmem:[%s1674] sm:$0x3]
        %v1676 = vunpack.c.l.b16 %v1670
        %v1677 = vunpack.c.l.b16 %v1673
        %v1678 = vpack.c.b16 %v1677, %v1676
        %v1680 = vsel %vm463, %v1678, 0
        %v1683 = vsel %vm488, %v1675, 0
        %1685 = vmatprep.subr.bf16.mxu0 0
        %1686 = vmatpush1.bf16.msra.mxu0 %v1683
        %1687 = vmatprep.subr.bf16.mxu0 0
        %1688 = vmatpush1.bf16.msra.mxu0 0
        %1689 = vmatprep.subr.bf16.mxu0 0
        %1690 = vmatpush1.bf16.msra.mxu0 0
        %1691 = vmatprep.subr.bf16.mxu0 0
        %1692 = vmatpush1.bf16.msra.mxu0 0
        %1693 = vmatprep.subr.bf16.mxu0 0
        %1694 = vmatpush1.bf16.msra.mxu0 0
        %1695 = vmatprep.subr.bf16.mxu0 0
        %1696 = vmatpush1.bf16.msra.mxu0 0
        %1697 = vmatprep.subr.bf16.mxu0 0
        %1698 = vmatpush1.bf16.msra.mxu0 0
        %1699 = vmatprep.subr.bf16.mxu0 0
        %1700 = vmatpush1.bf16.msra.mxu0 0
        %1701 = vmatprep.subr.bf16.mxu0 0
        %1702 = vmatpush1.bf16.msra.mxu0 0
        %1703 = vmatprep.subr.bf16.mxu0 0
        %1704 = vmatpush1.bf16.msra.mxu0 0
        %1705 = vmatprep.subr.bf16.mxu0 0
        %1706 = vmatpush1.bf16.msra.mxu0 0
        %1707 = vmatprep.subr.bf16.mxu0 0
        %1708 = vmatpush1.bf16.msra.mxu0 0
        %1709 = vmatprep.subr.bf16.mxu0 0
        %1710 = vmatpush1.bf16.msra.mxu0 0
        %1711 = vmatprep.subr.bf16.mxu0 0
        %1712 = vmatpush1.bf16.msra.mxu0 0
        %1713 = vmatprep.subr.bf16.mxu0 0
        %1714 = vmatpush1.bf16.msra.mxu0 0
        %1715 = vmatprep.subr.bf16.mxu0 0
        %1716 = vmatpush1.bf16.msra.mxu0 0
        %1717 = vmatprep.mubr.bf16.mxu0 0
        %1718 = vmatmul.mubr.bf16.gmra.mrb[0].mxu0 %v853
        %v1719 = vpop.f32.mrb[0].mxu0
        %v1720 = vadd.f32 0.0, %v1719
        %v1721 = vpop.f32.mrb[0].mxu0
        %v1722 = vpop.f32.mrb[0].mxu0
        %v1723 = vadd.f32 0.0, %v1722
        %v1724 = vpop.f32.mrb[0].mxu0
        %1725 = vmatprep.mubr.bf16.mxu0 0
        %1726 = vmatmul.mubr.bf16.gmra.mrb[0].mxu0 %v856
        %v1727 = vpop.f32.mrb[0].mxu0
        %v1728 = vadd.f32 0.0, %v1727
        %v1729 = vpop.f32.mrb[0].mxu0
        %v1730 = vpop.f32.mrb[0].mxu0
        %v1731 = vadd.f32 0.0, %v1730
        %v1732 = vpop.f32.mrb[0].mxu0
        %1733 = vmatprep.mubr.bf16.mxu0 0
        %1734 = vmatmul.mubr.bf16.gmra.mrb[0].mxu0 %v859
        %v1735 = vpop.f32.mrb[0].mxu0
        %v1736 = vadd.f32 0.0, %v1735
        %v1737 = vpop.f32.mrb[0].mxu0
        %v1738 = vpop.f32.mrb[0].mxu0
        %v1739 = vadd.f32 0.0, %v1738
        %v1740 = vpop.f32.mrb[0].mxu0
        %1741 = vmatprep.mubr.bf16.mxu0 0
        %1742 = vmatmul.mubr.bf16.gmra.mrb[0].mxu0 %v862
        %v1743 = vpop.f32.mrb[0].mxu0
        %v1744 = vadd.f32 0.0, %v1743
        %v1745 = vpop.f32.mrb[0].mxu0
        %v1746 = vpop.f32.mrb[0].mxu0
        %v1747 = vadd.f32 0.0, %v1746
        %v1748 = vpop.f32.mrb[0].mxu0
        %1749 = vmatprep.mubr.bf16.mxu0 0
        %1750 = vmatmul.mubr.bf16.gmra.mrb[0].mxu0 %v865
        %v1751 = vpop.f32.mrb[0].mxu0
        %v1752 = vadd.f32 0.0, %v1751
        %v1753 = vpop.f32.mrb[0].mxu0
        %v1754 = vpop.f32.mrb[0].mxu0
        %v1755 = vadd.f32 0.0, %v1754
        %v1756 = vpop.f32.mrb[0].mxu0
        %1757 = vmatprep.mubr.bf16.mxu0 0
        %1758 = vmatmul.mubr.bf16.gmra.mrb[0].mxu0 %v868
        %v1759 = vpop.f32.mrb[0].mxu0
        %v1760 = vadd.f32 0.0, %v1759
        %v1761 = vpop.f32.mrb[0].mxu0
        %v1762 = vpop.f32.mrb[0].mxu0
        %v1763 = vadd.f32 0.0, %v1762
        %v1764 = vpop.f32.mrb[0].mxu0
        %1765 = vmatprep.mubr.bf16.mxu0 0
        %1766 = vmatmul.mubr.bf16.gmra.mrb[0].mxu0 %v1274
        %v1767 = vpop.f32.mrb[0].mxu0
        %v1768 = vadd.f32 0.0, %v1767
        %v1769 = vpop.f32.mrb[0].mxu0
        %v1770 = vpop.f32.mrb[0].mxu0
        %v1771 = vadd.f32 0.0, %v1770
        %v1772 = vpop.f32.mrb[0].mxu0
        %1773 = vmatprep.mubr.bf16.mxu0 0
        %1774 = vmatmul.mubr.bf16.gmra.mrb[0].mxu0 %v1680
        %v1775 = vpop.f32.mrb[0].mxu0
        %v1776 = vadd.f32 0.0, %v1775
        %v1777 = vpop.f32.mrb[0].mxu0
        %v1778 = vpop.f32.mrb[0].mxu0
        %v1779 = vadd.f32 0.0, %v1778
        %v1780 = vpop.f32.mrb[0].mxu0
        %1781 = vdwg.mxu0
        %v1782 = vadd.f32 %v1650, %v1720
        %v1783 = vadd.f32 %v1651, %v1723
        %v1784 = vadd.f32 %v1652, %v1728
        %v1785 = vadd.f32 %v1653, %v1731
        %v1786 = vadd.f32 %v1654, %v1736
        %v1787 = vadd.f32 %v1655, %v1739
        %v1788 = vadd.f32 %v1656, %v1744
        %v1789 = vadd.f32 %v1657, %v1747
        %v1790 = vadd.f32 %v1658, %v1752
        %v1791 = vadd.f32 %v1659, %v1755
        %v1792 = vadd.f32 %v1660, %v1760
        %v1793 = vadd.f32 %v1661, %v1763
        %v1794 = vadd.f32 %v1662, %v1768
        %v1795 = vadd.f32 %v1663, %v1771
        %v1796 = vadd.f32 %v1664, %v1776
        %v1797 = vadd.f32 %v1665, %v1779
        %v1798 = vld [vmem:[%s2] sm:$0x1]
        %v1800 = vlaneseq
        %v1801 = vshrl.u32 %v1800, 7
        %v1802 = vsub.s32 0, %v1801
        %v1803 = vrot.slane %v1798, %v1802
        %v1805 = vmul.f32 %v1782, %v1803
        %v1806 = vmul.f32 %v1783, %v1803
        %v1807 = vmul.f32 %v1784, %v1803
        %v1808 = vmul.f32 %v1785, %v1803
        %v1809 = vmul.f32 %v1786, %v1803
        %v1810 = vmul.f32 %v1787, %v1803
        %v1811 = vmul.f32 %v1788, %v1803
        %v1812 = vmul.f32 %v1789, %v1803
        %v1813 = vmul.f32 %v1790, %v1803
        %v1814 = vmul.f32 %v1791, %v1803
        %v1815 = vmul.f32 %v1792, %v1803
        %v1816 = vmul.f32 %v1793, %v1803
        %v1817 = vmul.f32 %v1794, %v1803
        %v1818 = vmul.f32 %v1795, %v1803
        %v1819 = vmul.f32 %v1796, %v1803
        %v1820 = vmul.f32 %v1797, %v1803
        %v1821 = vld [vmem:[%s3] sm:$0x1]
        %v1823 = vlaneseq
        %v1824 = vshrl.u32 %v1823, 7
        %v1825 = vsub.s32 0, %v1824
        %v1826 = vrot.slane %v1821, %v1825
        %v1828 = vadd.f32 %v1805, %v1826
        %v1829 = vadd.f32 %v1806, %v1826
        %v1830 = vadd.f32 %v1807, %v1826
        %v1831 = vadd.f32 %v1808, %v1826
        %v1832 = vadd.f32 %v1809, %v1826
        %v1833 = vadd.f32 %v1810, %v1826
        %v1834 = vadd.f32 %v1811, %v1826
        %v1835 = vadd.f32 %v1812, %v1826
        %v1836 = vadd.f32 %v1813, %v1826
        %v1837 = vadd.f32 %v1814, %v1826
        %v1838 = vadd.f32 %v1815, %v1826
        %v1839 = vadd.f32 %v1816, %v1826
        %v1840 = vadd.f32 %v1817, %v1826
        %v1841 = vadd.f32 %v1818, %v1826
        %v1842 = vadd.f32 %v1819, %v1826
        %v1843 = vadd.f32 %v1820, %v1826
        %1844 = vxpose.xlu0.b32.start [1/16] %v1828, 128
        %1845 = vxpose.xlu0.b32.cont [2/16] %v1829, 128
        %1846 = vxpose.xlu0.b32.cont [3/16] %v1830, 128
        %1847 = vxpose.xlu0.b32.cont [4/16] %v1831, 128
        %1848 = vxpose.xlu0.b32.cont [5/16] %v1832, 128
        %1849 = vxpose.xlu0.b32.cont [6/16] %v1833, 128
        %1850 = vxpose.xlu0.b32.cont [7/16] %v1834, 128
        %1851 = vxpose.xlu0.b32.cont [8/16] %v1835, 128
        %1852 = vxpose.xlu0.b32.cont [9/16] %v1836, 128
        %1853 = vxpose.xlu0.b32.cont [10/16] %v1837, 128
        %1854 = vxpose.xlu0.b32.cont [11/16] %v1838, 128
        %1855 = vxpose.xlu0.b32.cont [12/16] %v1839, 128
        %1856 = vxpose.xlu0.b32.cont [13/16] %v1840, 128
        %1857 = vxpose.xlu0.b32.cont [14/16] %v1841, 128
        %1858 = vxpose.xlu0.b32.cont [15/16] %v1842, 128
        %1859 = vxpose.xlu0.b32.end [16/16] %v1843, 128
        %v1860 = vpop.trf.xlu0
        %v1861 = vpop.trf.xlu0
        %v1862 = vpop.trf.xlu0
        %v1863 = vpop.trf.xlu0
        %v1864 = vpop.trf.xlu0
        %v1865 = vpop.trf.xlu0
        %v1866 = vpop.trf.xlu0
        %v1867 = vpop.trf.xlu0
        %v1868 = vpop.trf.xlu0
        %v1869 = vpop.trf.xlu0
        %v1870 = vpop.trf.xlu0
        %v1871 = vpop.trf.xlu0
        %v1872 = vpop.trf.xlu0
        %v1873 = vpop.trf.xlu0
        %v1874 = vpop.trf.xlu0
        %v1875 = vpop.trf.xlu0
        %1876 = vst [vmem:[%s200] sm:$0xff] %v1860
        %1877 = vst [vmem:[%s200 + $0x8] sm:$0xff] %v1861
        %1878 = vst [vmem:[%s200 + $0x10] sm:$0xff] %v1862
        %1879 = vst [vmem:[%s200 + $0x18] sm:$0xff] %v1863
        %s1880 = sand.u32 %s126, 1
        %s1881 = sand.u32 %s126, 1
        %s1882 = smul.addr %s1881, 32
        %s1883 = scalar_lea.vmem [#allocation2], %s1882
        // Predicated region
        $region37: #{_lambda_.3} parent=35 // pred_check
          %p1884 = pneg %p136
        $region38: #{_lambda_.3} parent=35 // pred_check_branch
          %1886 = sbr.rel (%p1884) target = $region40
        $region39: #{_lambda_.3} parent=35 // pred_region
          %s1887 = smul.addr %s19, 8
          %s1888 = sadd.s32 %s20, %s1887
          %s1889 = smul.addr %s1888, 8
          %s1890 = scalar_lea.vmem %s4, %s1889
          // Predicated region
          $region41: #{_lambda_.3} parent=39 // pred_check
            _
          $region42: #{_lambda_.3} parent=39 // pred_check_branch
            %1892 = sbr.rel (0) target = $region44
          $region43: #{_lambda_.3} parent=39 // pred_region
            // Predicated region
            $region45: #{_lambda_.3} parent=43 // pred_check
              _
            $region46: #{_lambda_.3} parent=43 // pred_check_branch
              %1894 = sbr.rel (0) target = $region48
            $region47: #{_lambda_.3} parent=43 // pred_region
              // Predicated region
              $region60: #{_lambda_.3} parent=47 // pred_check
                _
              $region61: #{_lambda_.3} parent=47 // pred_check_branch
                %1915 = sbr.rel (0) target = $region63
              $region62: #{_lambda_.3} parent=47 // pred_region
                loop: start=0, step=1, limit=1
                $region64: #{_lambda_.3} parent=62 // loop_pre_header
                  _
                $region65: #{_lambda_.3} parent=62 // loop_header
                  %s1917 = sphi 0, %s1921
                  %p1918 = scmp.ge.s32.totalorder %s1917, 1
                  %s1922 = sphi %s1883, %s1883
                  %s1923 = sphi %s1890, %s1890
                $region66: #{_lambda_.3} parent=62 // loop_header_branch
                  %1920 = sbr.rel (%p1918) target = $region70
                $region67: #{_lambda_.3} parent=62 // loop_body
                  %v1924 = vld [vmem:[%s1922] sm:$0xff]
                  %1925 = vst [vmem:[%s1923] sm:$0xff] %v1924
                  %v1926 = vld [vmem:[%s1922 + $0x8] sm:$0xff]
                  %1927 = vst [vmem:[%s1923 + $0x10] sm:$0xff] %v1926
                  %v1928 = vld [vmem:[%s1922 + $0x10] sm:$0xff]
                  %1929 = vst [vmem:[%s1923 + $0x20] sm:$0xff] %v1928
                  %v1930 = vld [vmem:[%s1922 + $0x18] sm:$0xff]
                  %1931 = vst [vmem:[%s1923 + $0x30] sm:$0xff] %v1930
                $region68: #{_lambda_.3} parent=62 // loop_footer
                  %s1921 = sadd.s32 1, %s1917
                $region69: #{_lambda_.3} parent=62 // loop_footer_branch
                  %1916 = sbr.rel target = $region65
                $region70: #{_lambda_.3} parent=62 // loop_exit
                  _
              $region63: #{_lambda_.3} parent=47 // pred_fallthru
                _
              // Predicated region
              $region71: #{_lambda_.3} parent=47 // pred_check
                _
              $region72: #{_lambda_.3} parent=47 // pred_check_branch
                %1933 = sbr.rel target = $region74
              $region73: #{_lambda_.3} parent=47 // pred_region
                _
              $region74: #{_lambda_.3} parent=47 // pred_fallthru
                _
            $region48: #{_lambda_.3} parent=43 // pred_fallthru
              _
            // Predicated region
            $region49: #{_lambda_.3} parent=43 // pred_check
              _
            $region50: #{_lambda_.3} parent=43 // pred_check_branch
              %1896 = sbr.rel target = $region52
            $region51: #{_lambda_.3} parent=43 // pred_region
              loop: start=0, step=1, limit=1
              $region53: #{_lambda_.3} parent=51 // loop_pre_header
                _
              $region54: #{_lambda_.3} parent=51 // loop_header
                %s1899 = sphi 0, %s1903
                %p1900 = scmp.ge.s32.totalorder %s1899, 1
                %s1904 = sphi %s1883, %s1883
                %s1905 = sphi %s1890, %s1890
              $region55: #{_lambda_.3} parent=51 // loop_header_branch
                %1902 = sbr.rel (%p1900) target = $region59
              $region56: #{_lambda_.3} parent=51 // loop_body
                %v1906 = vld [vmem:[%s1904] sm:$0xff]
                %1907 = vst [vmem:[%s1905] sm:$0xff] %v1906
                %v1908 = vld [vmem:[%s1904 + $0x8] sm:$0xff]
                %1909 = vst [vmem:[%s1905 + $0x10] sm:$0xff] %v1908
                %v1910 = vld [vmem:[%s1904 + $0x10] sm:$0xff]
                %1911 = vst [vmem:[%s1905 + $0x20] sm:$0xff] %v1910
                %v1912 = vld [vmem:[%s1904 + $0x18] sm:$0xff]
                %1913 = vst [vmem:[%s1905 + $0x30] sm:$0xff] %v1912
              $region57: #{_lambda_.3} parent=51 // loop_footer
                %s1903 = sadd.s32 1, %s1899
              $region58: #{_lambda_.3} parent=51 // loop_footer_branch
                %1898 = sbr.rel target = $region54
              $region59: #{_lambda_.3} parent=51 // loop_exit
                _
            $region52: #{_lambda_.3} parent=43 // pred_fallthru
              _
          $region44: #{_lambda_.3} parent=39 // pred_fallthru
            _
          %1934 = vnop
        $region40: #{_lambda_.3} parent=35 // pred_fallthru
          _
      $region36: #{_lambda_.3} parent=5 // pred_fallthru
        _
      %p1935 = scmp.le.s32.totalorder 2, %s10
      // Predicated region
      $region75: #{_lambda_.3} parent=5 // pred_check
        %p1936 = pneg %p1935
      $region76: #{_lambda_.3} parent=5 // pred_check_branch
        %1938 = sbr.rel (%p1936) target = $region78
      $region77: #{_lambda_.3} parent=5 // pred_region
        %s1939 = ssub.s32 %s10, 2
        // Predicated region
        $region79: #{_lambda_.3} parent=77 // pred_check
          %p1940 = pneg %p142
        $region80: #{_lambda_.3} parent=77 // pred_check_branch
          %1942 = sbr.rel (%p1940) target = $region82
        $region81: #{_lambda_.3} parent=77 // pred_region
          %s1943 = sand.u32 %s127, 1
          %s1944 = sand.u32 %s127, 1
          %s1945 = smul.addr %s1944, 32
          %s1946 = scalar_lea.vmem [#allocation2], %s1945
        $region82: #{_lambda_.3} parent=77 // pred_fallthru
          _
      $region78: #{_lambda_.3} parent=5 // pred_fallthru
        _
    $region6: #{_lambda_.3} parent=1 // loop_footer
      %s14 = sadd.s32 1, %s10
    $region7: #{_lambda_.3} parent=1 // loop_footer_branch
      %9 = sbr.rel target = $region3
    $region8: #{_lambda_.3} parent=1 // loop_exit
      _

</llo_original>
